<compile_context>
chip_gen: v7x
topology: tpu7x:2x2x1
jax: 0.10.0
libtpu: 0.0.40
codegen_flags: <defaults>
</compile_context>

<pallas_src>
import functools

import jax
import jax.numpy as jnp
from jax.experimental import pallas as pl
from jax.experimental.pallas import tpu as pltpu


def _gelu_tanh(x):
    # TODO(synk): PyTorch nn.GELU() defaults to the exact erf formulation; Mosaic
    # has no guaranteed erf lowering, so the tanh approximation is used here
    # (max abs deviation from exact GELU ~1e-3).  Constants are weakly typed so
    # the computation stays in x.dtype (f32 or bf16).
    c = 0.7978845608028654  # sqrt(2/pi)
    return 0.5 * x * (1.0 + jnp.tanh(c * (x + 0.044715 * x * x * x)))


def _block_start(rb, tr):
    """Row-block start offset; adds a multiple-of-8 hint on the traced path."""
    r0 = rb * tr
    return r0 if isinstance(r0, int) else pl.multiple_of(r0, 8)


def _for_each_block(nb, body):
    """Unrolled Python loop for small static trip counts (LLO sees across
    blocks); lax.fori_loop for larger ones (bounds vreg live ranges, code size)."""
    if nb <= 8:
        for rb in range(nb):
            body(rb)
    else:
        def _wrap(rb, carry):
            body(rb)
            return carry
        jax.lax.fori_loop(0, nb, _wrap, 0)


def mb_block_kernel(x_ref, w1_ref, b1_ref, dw_ref, b2_ref, w3_ref, b3_ref,
                    o_ref, hbuf_ref, *, tr_a):
    _, H, W, C = x_ref.shape
    HD = w1_ref.shape[1]
    cdt = hbuf_ref.dtype                 # elementwise compute dtype (f32 or bf16)

    TR = 8                               # phase-B row block: ~16 live acc vregs
    NB = H // TR
    M = TR * W
    TRA = tr_a                           # phase-A row block (fills MXU LHS)
    NBA = H // TRA
    MA = TRA * W

    # ---- hoisted small operands (BN scales already folded into the weights) ---
    w1 = w1_ref[...]                     # (C, HD)  bf16
    w3 = w3_ref[...]                     # (HD, C)  bf16
    b1 = b1_ref[...]                     # (1, HD)  cdt
    b2 = b2_ref[...]                     # (1, HD)  cdt
    b3 = b3_ref[...]                     # (1, C)   f32
    dwk = [dw_ref[k:k + 1, :] for k in range(9)]      # 9 x (1, HD) taps, cdt

    # Column-boundary masks for the in-register W shifts.  Rows are processed in
    # flattened row-major (TR*W, HD) form, so x == i % W; a circular sublane roll
    # wraps across W-row boundaries exactly at the positions these masks zero.
    wpos = jax.lax.broadcasted_iota(jnp.int32, (M, 1), 0) % W
    mask_l = wpos > 0            # x-1 is in range
    mask_r = wpos < (W - 1)      # x+1 is in range

    # Zero only the two H-halo rows of the padded activation buffer; the interior
    # is fully overwritten every grid step.
    # NOTE: do NOT gate this on program_id == 0 -- with "parallel" grid semantics
    # another TensorCore starts at a non-zero program_id and would otherwise see
    # uninitialized halos in its private scratch.
    zrow = jnp.zeros((1, W, HD), cdt)
    hbuf_ref[0:1] = zrow
    hbuf_ref[H + 1:H + 2] = zrow

    # ---- phase A: expand_conv (1x1 conv == matmul) + folded BN bias + GELU -----
    # Result lands in hbuf rows 1..H (H-halo padded; (W, HD) stays tile-aligned).
    def phase_a(rb):
        r0 = _block_start(rb, TRA)
        xb = x_ref[0, pl.ds(r0, TRA)].reshape(MA, C)
        h = jnp.dot(xb.astype(jnp.bfloat16), w1,
                    preferred_element_type=jnp.float32)
        h = _gelu_tanh(h.astype(cdt) + b1)
        hbuf_ref[pl.ds(r0 + 1, TRA)] = h.reshape(TRA, W, HD)

    _for_each_block(NBA, phase_a)

    # ---- phase B: 3x3 depthwise (stride 1, pad 1) + BN bias + GELU,
    #               1x1 pro_conv + BN bias, residual add ------------------------
    def phase_b(rb):
        r0 = _block_start(rb, TR)
        acc = jnp.zeros((M, HD), cdt)
        for dy in range(3):
            # Output row y reads input row y + dy - 1, i.e. hbuf row y + dy.
            rows = hbuf_ref[pl.ds(r0 + dy, TR)].reshape(M, HD)
            # x-1 / x+1 shifts: circular sublane roll + boundary mask (XLU + VPU,
            # no misaligned VMEM traffic).  shift=M-1 is the -1 rotate.
            lft = jnp.where(mask_l, pltpu.roll(rows, shift=1, axis=0), 0.0)
            rgt = jnp.where(mask_r, pltpu.roll(rows, shift=M - 1, axis=0), 0.0)
            acc = (acc + lft * dwk[dy * 3 + 0]
                       + rows * dwk[dy * 3 + 1]
                       + rgt * dwk[dy * 3 + 2])
        g = _gelu_tanh(acc + b2)
        y = jnp.dot(g.astype(jnp.bfloat16), w3,
                    preferred_element_type=jnp.float32)
        y = y + b3
        xres = x_ref[0, pl.ds(r0, TR)].reshape(M, C).astype(jnp.float32)
        o_ref[0, pl.ds(r0, TR)] = (xres + y).reshape(TR, W, C).astype(o_ref.dtype)

    _for_each_block(NB, phase_b)


def _elementwise_dtype():
    """bf16 elementwise only where the VPU is bf16-native (v6e / v7x)."""
    try:
        kind = jax.devices()[0].device_kind.lower()
    except Exception:
        return jnp.float32
    if ("v6" in kind) or ("v7" in kind) or ("7x" in kind):
        return jnp.bfloat16
    return jnp.float32


def mb_block_forward(x_nchw, params):
    # TODO(synk): ideally the surrounding model stays NHWC end-to-end; each of
    # these transposes is a full HBM round-trip of the activation tensor and can
    # dominate wall clock for this compute-light block.
    x = jnp.transpose(x_nchw, (0, 2, 3, 1))   # NCHW -> NHWC
    N, H, W, C = x.shape
    HD = params["w1"].shape[1]

    # TODO(synk): H/W not divisible by 8 would need halo-aware padding (zero
    # padding the *input* changes the depthwise boundary rows); treat them as
    # unsupported rather than falling back to a full-image accumulator.
    assert H % 8 == 0 and W % 8 == 0, "MB_Block kernel requires H % 8 == 0 and W % 8 == 0"

    cdt = _elementwise_dtype()

    # Fold the (inference-mode) BN scales into the conv weights so only the bias
    # adds remain in-kernel; 1x1-conv weights go to bf16 (MXU-native everywhere).
    w1 = (params["w1"] * params["s1"]).astype(jnp.bfloat16)   # (C, HD)
    dw = (params["dw"] * params["s2"]).astype(cdt)            # (9, HD)
    w3 = (params["w3"] * params["s3"]).astype(jnp.bfloat16)   # (HD, C)
    b1 = params["b1"].astype(cdt)                             # (1, HD)
    b2 = params["b2"].astype(cdt)                             # (1, HD)
    b3 = params["b3"].astype(jnp.float32)                     # (1, C)

    # Phase-A row block: bigger block fills the MXU LHS better (phase A carries
    # no big accumulator); phase B stays at 8 rows inside the kernel.
    tr_a = next(t for t in (32, 16, 8) if H % t == 0)

    # Explicit scoped-VMEM budget: hbuf + double-buffered in/out blocks + weights.
    esize = jnp.dtype(cdt).itemsize
    hbuf_bytes = (H + 2) * W * HD * esize
    io_bytes = 2 * 2 * H * W * C * x.dtype.itemsize
    w_bytes = 2 * (2 * C * HD * 2 + (9 + 2) * HD * esize + C * 4)
    vmem_limit = int(1.5 * (hbuf_bytes + io_bytes + w_bytes)) + (4 << 20)
    vmem_limit = max(8 << 20, min(vmem_limit, 96 << 20))

    kernel = functools.partial(mb_block_kernel, tr_a=tr_a)

    out_nhwc = pl.pallas_call(
        kernel,
        out_shape=jax.ShapeDtypeStruct((N, H, W, C), x.dtype),
        grid_spec=pltpu.PrefetchScalarGridSpec(
            num_scalar_prefetch=0,
            grid=(N,),
            in_specs=[
                pl.BlockSpec((1, H, W, C), lambda n: (n, 0, 0, 0)),
                pl.BlockSpec((C, HD), lambda n: (0, 0)),
                pl.BlockSpec((1, HD), lambda n: (0, 0)),
                pl.BlockSpec((9, HD), lambda n: (0, 0)),
                pl.BlockSpec((1, HD), lambda n: (0, 0)),
                pl.BlockSpec((HD, C), lambda n: (0, 0)),
                pl.BlockSpec((1, C), lambda n: (0, 0)),
            ],
            out_specs=pl.BlockSpec((1, H, W, C), lambda n: (n, 0, 0, 0)),
            # Activation buffer padded only along H (halo rows); (W, HD) stays
            # tile-aligned.  dtype == elementwise compute dtype: bf16 on v6e/v7x
            # halves hbuf VMEM and phase-B load traffic.
            scratch_shapes=[pltpu.VMEM((H + 2, W, HD), cdt)],
        ),
        compiler_params=pltpu.CompilerParams(
            dimension_semantics=("parallel",),
            vmem_limit_bytes=vmem_limit),
    )(x, w1, b1, dw, b2, w3, b3)

    # TODO(synk): with N smaller than the TensorCore count (v7x) a per-image grid
    # step gives no cross-step pipelining; a (N, H//TB) grid with halo re-fetch
    # would hide the input/output DMA at large H*W.
    # TODO(synk): with C < 128 the residual/store path uses lane-sparse vregs; a
    # lane-dense (1, H, W*C) out_spec + in-kernel repack would cut masked stores
    # 4x but relies on a cross-tile reshape lowering.
    return jnp.transpose(out_nhwc, (0, 3, 1, 2))   # NHWC -> NCHW


def mb_block_reference(x_nchw, params):
    """Pure-JAX reference (same folded-BN / tanh-GELU semantics, f32 matmuls)."""
    x = jnp.transpose(x_nchw, (0, 2, 3, 1)).astype(jnp.float32)
    h = jnp.einsum("nhwc,cd->nhwd", x, params["w1"])
    h = h * params["s1"][0] + params["b1"][0]
    h = _gelu_tanh(h)
    dw = params["dw"].reshape(3, 3, 1, -1)          # HWIO, depthwise
    g = jax.lax.conv_general_dilated(
        h, dw, window_strides=(1, 1), padding="SAME",
        dimension_numbers=("NHWC", "HWIO", "NHWC"),
        feature_group_count=h.shape[-1])
    g = g * params["s2"][0] + params["b2"][0]
    g = _gelu_tanh(g)
    y = jnp.einsum("nhwd,dc->nhwc", g, params["w3"])
    y = y * params["s3"][0] + params["b3"][0]
    return jnp.transpose(x + y, (0, 3, 1, 2))


def _folded_bn(key, c, eps=1e-5):
    k1, k2, k3, k4 = jax.random.split(key, 4)
    gamma = jax.random.uniform(k1, (c,), jnp.float32, 0.8, 1.2)
    beta = jax.random.normal(k2, (c,), jnp.float32) * 0.05
    mean = jax.random.normal(k3, (c,), jnp.float32) * 0.05
    var = jax.random.uniform(k4, (c,), jnp.float32, 0.5, 1.5)
    scale = gamma / jnp.sqrt(var + eps)
    bias = beta - mean * scale
    return scale.reshape(1, c), bias.reshape(1, c)


def make_params(key, dim, expansion=4):
    hidden = int(dim * expansion)
    ks = jax.random.split(key, 6)
    w1 = jax.random.normal(ks[0], (dim, hidden), jnp.float32) * 0.05
    dw = jax.random.normal(ks[1], (9, hidden), jnp.float32) * 0.10
    w3 = jax.random.normal(ks[2], (hidden, dim), jnp.float32) * 0.05
    s1, b1 = _folded_bn(ks[3], hidden)
    s2, b2 = _folded_bn(ks[4], hidden)
    s3, b3 = _folded_bn(ks[5], dim)
    return {"w1": w1, "s1": s1, "b1": b1, "dw": dw, "s2": s2, "b2": b2,
            "w3": w3, "s3": s3, "b3": b3}


if __name__ == "__main__":
    N, DIM, H, W = 2, 32, 16, 16
    key = jax.random.PRNGKey(0)
    kx, kp = jax.random.split(key)
    x = jax.random.normal(kx, (N, DIM, H, W), jnp.float32)   # NCHW, like PyTorch
    params = make_params(kp, DIM, expansion=4)

    out = jax.block_until_ready(mb_block_forward(x, params))
    ref = jax.block_until_ready(mb_block_reference(x, params))

    assert out.shape == x.shape and out.dtype == x.dtype
    max_err = float(jnp.max(jnp.abs(out - ref)))
    assert max_err < 5e-2, f"mismatch vs reference: {max_err}"
    print("KERNEL_OK")
</pallas_src>

<mosaic_0001>
module attributes {stable_mosaic.version = 11 : i64} {
  func.func @mb_block_kernel(%arg0: i32, %arg1: memref<1x16x16x32xf32, #tpu.memory_space<vmem>>, %arg2: memref<32x128xbf16, #tpu.memory_space<vmem>>, %arg3: memref<1x128xf32, #tpu.memory_space<vmem>>, %arg4: memref<9x128xf32, #tpu.memory_space<vmem>>, %arg5: memref<1x128xf32, #tpu.memory_space<vmem>>, %arg6: memref<128x32xbf16, #tpu.memory_space<vmem>>, %arg7: memref<1x32xf32, #tpu.memory_space<vmem>>, %arg8: memref<1x16x16x32xf32, #tpu.memory_space<vmem>>, %arg9: memref<18x16x128xf32, #tpu.memory_space<vmem>>) attributes {dimension_semantics = [#tpu.dimension_semantics<parallel>], iteration_bounds = array<i64: 2>, scalar_prefetch = 0 : i64, scratch_operands = 1 : i64, tpu.core_type = #tpu.core_type<tc>, window_params = [{transform_indices = @transform_0, window_bounds = array<i64: 1, 16, 16, 32>}, {pipeline_mode = #tpu.pipeline_mode<synchronous>, transform_indices = @transform_1, window_bounds = array<i64: 32, 128>}, {pipeline_mode = #tpu.pipeline_mode<synchronous>, transform_indices = @transform_2, window_bounds = array<i64: 1, 128>}, {pipeline_mode = #tpu.pipeline_mode<synchronous>, transform_indices = @transform_3, window_bounds = array<i64: 9, 128>}, {pipeline_mode = #tpu.pipeline_mode<synchronous>, transform_indices = @transform_4, window_bounds = array<i64: 1, 128>}, {pipeline_mode = #tpu.pipeline_mode<synchronous>, transform_indices = @transform_5, window_bounds = array<i64: 128, 32>}, {pipeline_mode = #tpu.pipeline_mode<synchronous>, transform_indices = @transform_6, window_bounds = array<i64: 1, 32>}, {transform_indices = @transform_7, window_bounds = array<i64: 1, 16, 16, 32>}]} {
    %c0 = arith.constant 0 : index
    %c0_0 = arith.constant 0 : index
    %0 = vector.load %arg2[%c0, %c0_0] : memref<32x128xbf16, #tpu.memory_space<vmem>>, vector<32x128xbf16>
    %c0_1 = arith.constant 0 : index
    %c0_2 = arith.constant 0 : index
    %1 = vector.load %arg6[%c0_1, %c0_2] : memref<128x32xbf16, #tpu.memory_space<vmem>>, vector<128x32xbf16>
    %c0_3 = arith.constant 0 : index
    %c0_4 = arith.constant 0 : index
    %2 = vector.load %arg3[%c0_3, %c0_4] : memref<1x128xf32, #tpu.memory_space<vmem>>, vector<1x128xf32>
    %c0_5 = arith.constant 0 : index
    %c0_6 = arith.constant 0 : index
    %3 = vector.load %arg5[%c0_5, %c0_6] : memref<1x128xf32, #tpu.memory_space<vmem>>, vector<1x128xf32>
    %c0_7 = arith.constant 0 : index
    %c0_8 = arith.constant 0 : index
    %4 = vector.load %arg7[%c0_7, %c0_8] : memref<1x32xf32, #tpu.memory_space<vmem>>, vector<1x32xf32>
    %c0_9 = arith.constant 0 : index
    %c0_10 = arith.constant 0 : index
    %5 = vector.load %arg4[%c0_9, %c0_10] : memref<9x128xf32, #tpu.memory_space<vmem>>, vector<1x128xf32>
    %c1 = arith.constant 1 : index
    %c0_11 = arith.constant 0 : index
    %6 = vector.load %arg4[%c1, %c0_11] : memref<9x128xf32, #tpu.memory_space<vmem>>, vector<1x128xf32>
    %c2 = arith.constant 2 : index
    %c0_12 = arith.constant 0 : index
    %7 = vector.load %arg4[%c2, %c0_12] : memref<9x128xf32, #tpu.memory_space<vmem>>, vector<1x128xf32>
    %c3 = arith.constant 3 : index
    %c0_13 = arith.constant 0 : index
    %8 = vector.load %arg4[%c3, %c0_13] : memref<9x128xf32, #tpu.memory_space<vmem>>, vector<1x128xf32>
    %c4 = arith.constant 4 : index
    %c0_14 = arith.constant 0 : index
    %9 = vector.load %arg4[%c4, %c0_14] : memref<9x128xf32, #tpu.memory_space<vmem>>, vector<1x128xf32>
    %c5 = arith.constant 5 : index
    %c0_15 = arith.constant 0 : index
    %10 = vector.load %arg4[%c5, %c0_15] : memref<9x128xf32, #tpu.memory_space<vmem>>, vector<1x128xf32>
    %c6 = arith.constant 6 : index
    %c0_16 = arith.constant 0 : index
    %11 = vector.load %arg4[%c6, %c0_16] : memref<9x128xf32, #tpu.memory_space<vmem>>, vector<1x128xf32>
    %c7 = arith.constant 7 : index
    %c0_17 = arith.constant 0 : index
    %12 = vector.load %arg4[%c7, %c0_17] : memref<9x128xf32, #tpu.memory_space<vmem>>, vector<1x128xf32>
    %c8 = arith.constant 8 : index
    %c0_18 = arith.constant 0 : index
    %13 = vector.load %arg4[%c8, %c0_18] : memref<9x128xf32, #tpu.memory_space<vmem>>, vector<1x128xf32>
    %14 = tpu.iota {dimensions = array<i32: 0>} : vector<128x1xi32>
    %c16_i32 = arith.constant 16 : i32
    %c0_i32 = arith.constant 0 : i32
    %15 = arith.cmpi eq, %c16_i32, %c0_i32 : i32
    %c1_i32 = arith.constant 1 : i32
    %16 = arith.select %15, %c1_i32, %c16_i32 : i32
    %17 = vector.broadcast %16 : i32 to vector<128x1xi32>
    %18 = arith.remsi %14, %17 : vector<128x1xi32>
    %c0_i32_19 = arith.constant 0 : i32
    %19 = vector.broadcast %c0_i32_19 : i32 to vector<128x1xi32>
    %20 = arith.cmpi ne, %18, %19 : vector<128x1xi32>
    %c0_i32_20 = arith.constant 0 : i32
    %21 = vector.broadcast %c0_i32_20 : i32 to vector<128x1xi32>
    %22 = arith.cmpi slt, %18, %21 : vector<128x1xi32>
    %c0_i32_21 = arith.constant 0 : i32
    %23 = arith.cmpi slt, %16, %c0_i32_21 : i32
    %24 = vector.broadcast %23 : i1 to vector<128x1xi1>
    %25 = vector.broadcast %24 : vector<128x1xi1> to vector<128x1xi1>
    %26 = arith.xori %22, %25 : vector<128x1xi1>
    %27 = arith.andi %26, %20 : vector<128x1xi1>
    %28 = vector.broadcast %16 : i32 to vector<128x1xi32>
    %29 = arith.addi %18, %28 : vector<128x1xi32>
    %30 = arith.select %27, %29, %18 : vector<128x1xi1>, vector<128x1xi32>
    %c0_i32_22 = arith.constant 0 : i32
    %31 = vector.broadcast %c0_i32_22 : i32 to vector<128x1xi32>
    %32 = arith.cmpi sgt, %30, %31 : vector<128x1xi32>
    %c15_i32 = arith.constant 15 : i32
    %33 = vector.broadcast %c15_i32 : i32 to vector<128x1xi32>
    %34 = arith.cmpi slt, %30, %33 : vector<128x1xi32>
    %cst = arith.constant 0.000000e+00 : f32
    %35 = vector.broadcast %cst : f32 to vector<1x16x128xf32>
    %c0_23 = arith.constant 0 : index
    %c0_24 = arith.constant 0 : index
    %c0_25 = arith.constant 0 : index
    %36 = vector.load %arg9[%c0_23, %c0_24, %c0_25] : memref<18x16x128xf32, #tpu.memory_space<vmem>>, vector<1x16x128xf32>
    tpu.vector_store %arg9[%c0_23, %c0_24, %c0_25], %35 {strides = array<i32>} : memref<18x16x128xf32, #tpu.memory_space<vmem>>, vector<1x16x128xf32>,
    %c17 = arith.constant 17 : index
    %c0_26 = arith.constant 0 : index
    %c0_27 = arith.constant 0 : index
    %37 = vector.load %arg9[%c17, %c0_26, %c0_27] : memref<18x16x128xf32, #tpu.memory_space<vmem>>, vector<1x16x128xf32>
    tpu.vector_store %arg9[%c17, %c0_26, %c0_27], %35 {strides = array<i32>} : memref<18x16x128xf32, #tpu.memory_space<vmem>>, vector<1x16x128xf32>,
    %c0_28 = arith.constant 0 : index
    %c0_29 = arith.constant 0 : index
    %c0_30 = arith.constant 0 : index
    %c0_31 = arith.constant 0 : index
    %38 = vector.load %arg1[%c0_28, %c0_29, %c0_30, %c0_31] : memref<1x16x16x32xf32, #tpu.memory_space<vmem>>, vector<1x16x16x32xf32>
    %39 = vector.shape_cast %38 : vector<1x16x16x32xf32> to vector<16x16x32xf32>
    %40 = vector.shape_cast %39 : vector<16x16x32xf32> to vector<256x32xf32>
    %41 = arith.truncf %40 : vector<256x32xf32> to vector<256x32xbf16>
    %cst_32 = arith.constant dense<0.000000e+00> : vector<256x128xf32>
    %42 = tpu.matmul %41, %0, %cst_32 {dimension_numbers = #tpu.dot_dimension_numbers<[1], [0], [0], [1], [0, 0, 1, 1], [], []>} : vector<256x32xbf16>, vector<32x128xbf16>, vector<256x128xf32> -> vector<256x128xf32>
    %43 = vector.broadcast %2 : vector<1x128xf32> to vector<256x128xf32>
    %44 = arith.addf %42, %43 : vector<256x128xf32>
    %cst_33 = arith.constant 5.000000e-01 : f32
    %45 = vector.broadcast %cst_33 : f32 to vector<256x128xf32>
    %46 = arith.mulf %45, %44 : vector<256x128xf32>
    %cst_34 = arith.constant 4.471500e-02 : f32
    %47 = vector.broadcast %cst_34 : f32 to vector<256x128xf32>
    %48 = arith.mulf %47, %44 : vector<256x128xf32>
    %49 = arith.mulf %48, %44 : vector<256x128xf32>
    %50 = arith.mulf %49, %44 : vector<256x128xf32>
    %51 = arith.addf %44, %50 : vector<256x128xf32>
    %cst_35 = arith.constant 0.797884583 : f32
    %52 = vector.broadcast %cst_35 : f32 to vector<256x128xf32>
    %53 = arith.mulf %52, %51 : vector<256x128xf32>
    %54 = math.tanh %53 : vector<256x128xf32>
    %cst_36 = arith.constant 1.000000e+00 : f32
    %55 = vector.broadcast %cst_36 : f32 to vector<256x128xf32>
    %56 = arith.addf %55, %54 : vector<256x128xf32>
    %57 = arith.mulf %46, %56 : vector<256x128xf32>
    %58 = vector.shape_cast %57 : vector<256x128xf32> to vector<16x16x128xf32>
    %c1_37 = arith.constant 1 : index
    %c0_38 = arith.constant 0 : index
    %c0_39 = arith.constant 0 : index
    %59 = vector.load %arg9[%c1_37, %c0_38, %c0_39] : memref<18x16x128xf32, #tpu.memory_space<vmem>>, vector<16x16x128xf32>
    tpu.vector_store %arg9[%c1_37, %c0_38, %c0_39], %58 {strides = array<i32>} : memref<18x16x128xf32, #tpu.memory_space<vmem>>, vector<16x16x128xf32>,
    %cst_40 = arith.constant 0.000000e+00 : f32
    %60 = vector.broadcast %cst_40 : f32 to vector<128x128xf32>
    %c0_41 = arith.constant 0 : index
    %c0_42 = arith.constant 0 : index
    %c0_43 = arith.constant 0 : index
    %61 = vector.load %arg9[%c0_41, %c0_42, %c0_43] : memref<18x16x128xf32, #tpu.memory_space<vmem>>, vector<8x16x128xf32>
    %62 = vector.shape_cast %61 : vector<8x16x128xf32> to vector<128x128xf32>
    %c1_i32_44 = arith.constant 1 : i32
    %63 = tpu.dynamic_rotate %62 by %c1_i32_44 dim 0 : vector<128x128xf32>, i32 -> vector<128x128xf32>
    %cst_45 = arith.constant 0.000000e+00 : f32
    %64 = vector.shape_cast %32 : vector<128x1xi1> to vector<128x1xi1>
    %65 = vector.broadcast %64 : vector<128x1xi1> to vector<128x128xi1>
    %66 = vector.broadcast %cst_45 : f32 to vector<128x128xf32>
    %67 = arith.select %65, %63, %66 : vector<128x128xi1>, vector<128x128xf32>
    %c127_i32 = arith.constant 127 : i32
    %68 = tpu.dynamic_rotate %62 by %c127_i32 dim 0 : vector<128x128xf32>, i32 -> vector<128x128xf32>
    %cst_46 = arith.constant 0.000000e+00 : f32
    %69 = vector.shape_cast %34 : vector<128x1xi1> to vector<128x1xi1>
    %70 = vector.broadcast %69 : vector<128x1xi1> to vector<128x128xi1>
    %71 = vector.broadcast %cst_46 : f32 to vector<128x128xf32>
    %72 = arith.select %70, %68, %71 : vector<128x128xi1>, vector<128x128xf32>
    %73 = vector.broadcast %5 : vector<1x128xf32> to vector<128x128xf32>
    %74 = arith.mulf %67, %73 : vector<128x128xf32>
    %75 = arith.addf %60, %74 : vector<128x128xf32>
    %76 = vector.broadcast %6 : vector<1x128xf32> to vector<128x128xf32>
    %77 = arith.mulf %62, %76 : vector<128x128xf32>
    %78 = arith.addf %75, %77 : vector<128x128xf32>
    %79 = vector.broadcast %7 : vector<1x128xf32> to vector<128x128xf32>
    %80 = arith.mulf %72, %79 : vector<128x128xf32>
    %81 = arith.addf %78, %80 : vector<128x128xf32>
    %c1_47 = arith.constant 1 : index
    %c0_48 = arith.constant 0 : index
    %c0_49 = arith.constant 0 : index
    %82 = vector.load %arg9[%c1_47, %c0_48, %c0_49] : memref<18x16x128xf32, #tpu.memory_space<vmem>>, vector<8x16x128xf32>
    %83 = vector.shape_cast %82 : vector<8x16x128xf32> to vector<128x128xf32>
    %c1_i32_50 = arith.constant 1 : i32
    %84 = tpu.dynamic_rotate %83 by %c1_i32_50 dim 0 : vector<128x128xf32>, i32 -> vector<128x128xf32>
    %cst_51 = arith.constant 0.000000e+00 : f32
    %85 = vector.shape_cast %32 : vector<128x1xi1> to vector<128x1xi1>
    %86 = vector.broadcast %85 : vector<128x1xi1> to vector<128x128xi1>
    %87 = vector.broadcast %cst_51 : f32 to vector<128x128xf32>
    %88 = arith.select %86, %84, %87 : vector<128x128xi1>, vector<128x128xf32>
    %c127_i32_52 = arith.constant 127 : i32
    %89 = tpu.dynamic_rotate %83 by %c127_i32_52 dim 0 : vector<128x128xf32>, i32 -> vector<128x128xf32>
    %cst_53 = arith.constant 0.000000e+00 : f32
    %90 = vector.shape_cast %34 : vector<128x1xi1> to vector<128x1xi1>
    %91 = vector.broadcast %90 : vector<128x1xi1> to vector<128x128xi1>
    %92 = vector.broadcast %cst_53 : f32 to vector<128x128xf32>
    %93 = arith.select %91, %89, %92 : vector<128x128xi1>, vector<128x128xf32>
    %94 = vector.broadcast %8 : vector<1x128xf32> to vector<128x128xf32>
    %95 = arith.mulf %88, %94 : vector<128x128xf32>
    %96 = arith.addf %81, %95 : vector<128x128xf32>
    %97 = vector.broadcast %9 : vector<1x128xf32> to vector<128x128xf32>
    %98 = arith.mulf %83, %97 : vector<128x128xf32>
    %99 = arith.addf %96, %98 : vector<128x128xf32>
    %100 = vector.broadcast %10 : vector<1x128xf32> to vector<128x128xf32>
    %101 = arith.mulf %93, %100 : vector<128x128xf32>
    %102 = arith.addf %99, %101 : vector<128x128xf32>
    %c2_54 = arith.constant 2 : index
    %c0_55 = arith.constant 0 : index
    %c0_56 = arith.constant 0 : index
    %103 = vector.load %arg9[%c2_54, %c0_55, %c0_56] : memref<18x16x128xf32, #tpu.memory_space<vmem>>, vector<8x16x128xf32>
    %104 = vector.shape_cast %103 : vector<8x16x128xf32> to vector<128x128xf32>
    %c1_i32_57 = arith.constant 1 : i32
    %105 = tpu.dynamic_rotate %104 by %c1_i32_57 dim 0 : vector<128x128xf32>, i32 -> vector<128x128xf32>
    %cst_58 = arith.constant 0.000000e+00 : f32
    %106 = vector.shape_cast %32 : vector<128x1xi1> to vector<128x1xi1>
    %107 = vector.broadcast %106 : vector<128x1xi1> to vector<128x128xi1>
    %108 = vector.broadcast %cst_58 : f32 to vector<128x128xf32>
    %109 = arith.select %107, %105, %108 : vector<128x128xi1>, vector<128x128xf32>
    %c127_i32_59 = arith.constant 127 : i32
    %110 = tpu.dynamic_rotate %104 by %c127_i32_59 dim 0 : vector<128x128xf32>, i32 -> vector<128x128xf32>
    %cst_60 = arith.constant 0.000000e+00 : f32
    %111 = vector.shape_cast %34 : vector<128x1xi1> to vector<128x1xi1>
    %112 = vector.broadcast %111 : vector<128x1xi1> to vector<128x128xi1>
    %113 = vector.broadcast %cst_60 : f32 to vector<128x128xf32>
    %114 = arith.select %112, %110, %113 : vector<128x128xi1>, vector<128x128xf32>
    %115 = vector.broadcast %11 : vector<1x128xf32> to vector<128x128xf32>
    %116 = arith.mulf %109, %115 : vector<128x128xf32>
    %117 = arith.addf %102, %116 : vector<128x128xf32>
    %118 = vector.broadcast %12 : vector<1x128xf32> to vector<128x128xf32>
    %119 = arith.mulf %104, %118 : vector<128x128xf32>
    %120 = arith.addf %117, %119 : vector<128x128xf32>
    %121 = vector.broadcast %13 : vector<1x128xf32> to vector<128x128xf32>
    %122 = arith.mulf %114, %121 : vector<128x128xf32>
    %123 = arith.addf %120, %122 : vector<128x128xf32>
    %124 = vector.broadcast %3 : vector<1x128xf32> to vector<128x128xf32>
    %125 = arith.addf %123, %124 : vector<128x128xf32>
    %cst_61 = arith.constant 5.000000e-01 : f32
    %126 = vector.broadcast %cst_61 : f32 to vector<128x128xf32>
    %127 = arith.mulf %126, %125 : vector<128x128xf32>
    %cst_62 = arith.constant 4.471500e-02 : f32
    %128 = vector.broadcast %cst_62 : f32 to vector<128x128xf32>
    %129 = arith.mulf %128, %125 : vector<128x128xf32>
    %130 = arith.mulf %129, %125 : vector<128x128xf32>
    %131 = arith.mulf %130, %125 : vector<128x128xf32>
    %132 = arith.addf %125, %131 : vector<128x128xf32>
    %cst_63 = arith.constant 0.797884583 : f32
    %133 = vector.broadcast %cst_63 : f32 to vector<128x128xf32>
    %134 = arith.mulf %133, %132 : vector<128x128xf32>
    %135 = math.tanh %134 : vector<128x128xf32>
    %cst_64 = arith.constant 1.000000e+00 : f32
    %136 = vector.broadcast %cst_64 : f32 to vector<128x128xf32>
    %137 = arith.addf %136, %135 : vector<128x128xf32>
    %138 = arith.mulf %127, %137 : vector<128x128xf32>
    %139 = arith.truncf %138 : vector<128x128xf32> to vector<128x128xbf16>
    %cst_65 = arith.constant dense<0.000000e+00> : vector<128x32xf32>
    %140 = tpu.matmul %139, %1, %cst_65 {dimension_numbers = #tpu.dot_dimension_numbers<[1], [0], [0], [1], [0, 0, 1, 1], [], []>} : vector<128x128xbf16>, vector<128x32xbf16>, vector<128x32xf32> -> vector<128x32xf32>
    %141 = vector.broadcast %4 : vector<1x32xf32> to vector<128x32xf32>
    %142 = arith.addf %140, %141 : vector<128x32xf32>
    %c0_66 = arith.constant 0 : index
    %c0_67 = arith.constant 0 : index
    %c0_68 = arith.constant 0 : index
    %c0_69 = arith.constant 0 : index
    %143 = vector.load %arg1[%c0_66, %c0_67, %c0_68, %c0_69] : memref<1x16x16x32xf32, #tpu.memory_space<vmem>>, vector<1x8x16x32xf32>
    %144 = vector.shape_cast %143 : vector<1x8x16x32xf32> to vector<8x16x32xf32>
    %145 = vector.shape_cast %144 : vector<8x16x32xf32> to vector<128x32xf32>
    %146 = arith.addf %145, %142 : vector<128x32xf32>
    %147 = vector.shape_cast %146 : vector<128x32xf32> to vector<8x16x32xf32>
    %c0_70 = arith.constant 0 : index
    %c0_71 = arith.constant 0 : index
    %c0_72 = arith.constant 0 : index
    %c0_73 = arith.constant 0 : index
    %148 = vector.load %arg8[%c0_70, %c0_71, %c0_72, %c0_73] : memref<1x16x16x32xf32, #tpu.memory_space<vmem>>, vector<1x8x16x32xf32>
    %149 = vector.shape_cast %148 : vector<1x8x16x32xf32> to vector<8x16x32xf32>
    %150 = vector.shape_cast %147 : vector<8x16x32xf32> to vector<1x8x16x32xf32>
    tpu.vector_store %arg8[%c0_70, %c0_71, %c0_72, %c0_73], %150 {strides = array<i32>} : memref<1x16x16x32xf32, #tpu.memory_space<vmem>>, vector<1x8x16x32xf32>,
    %cst_74 = arith.constant 0.000000e+00 : f32
    %151 = vector.broadcast %cst_74 : f32 to vector<128x128xf32>
    %c8_75 = arith.constant 8 : index
    %c0_76 = arith.constant 0 : index
    %c0_77 = arith.constant 0 : index
    %152 = vector.load %arg9[%c8_75, %c0_76, %c0_77] : memref<18x16x128xf32, #tpu.memory_space<vmem>>, vector<8x16x128xf32>
    %153 = vector.shape_cast %152 : vector<8x16x128xf32> to vector<128x128xf32>
    %c1_i32_78 = arith.constant 1 : i32
    %154 = tpu.dynamic_rotate %153 by %c1_i32_78 dim 0 : vector<128x128xf32>, i32 -> vector<128x128xf32>
    %cst_79 = arith.constant 0.000000e+00 : f32
    %155 = vector.shape_cast %32 : vector<128x1xi1> to vector<128x1xi1>
    %156 = vector.broadcast %155 : vector<128x1xi1> to vector<128x128xi1>
    %157 = vector.broadcast %cst_79 : f32 to vector<128x128xf32>
    %158 = arith.select %156, %154, %157 : vector<128x128xi1>, vector<128x128xf32>
    %c127_i32_80 = arith.constant 127 : i32
    %159 = tpu.dynamic_rotate %153 by %c127_i32_80 dim 0 : vector<128x128xf32>, i32 -> vector<128x128xf32>
    %cst_81 = arith.constant 0.000000e+00 : f32
    %160 = vector.shape_cast %34 : vector<128x1xi1> to vector<128x1xi1>
    %161 = vector.broadcast %160 : vector<128x1xi1> to vector<128x128xi1>
    %162 = vector.broadcast %cst_81 : f32 to vector<128x128xf32>
    %163 = arith.select %161, %159, %162 : vector<128x128xi1>, vector<128x128xf32>
    %164 = vector.broadcast %5 : vector<1x128xf32> to vector<128x128xf32>
    %165 = arith.mulf %158, %164 : vector<128x128xf32>
    %166 = arith.addf %151, %165 : vector<128x128xf32>
    %167 = vector.broadcast %6 : vector<1x128xf32> to vector<128x128xf32>
    %168 = arith.mulf %153, %167 : vector<128x128xf32>
    %169 = arith.addf %166, %168 : vector<128x128xf32>
    %170 = vector.broadcast %7 : vector<1x128xf32> to vector<128x128xf32>
    %171 = arith.mulf %163, %170 : vector<128x128xf32>
    %172 = arith.addf %169, %171 : vector<128x128xf32>
    %c9 = arith.constant 9 : index
    %c0_82 = arith.constant 0 : index
    %c0_83 = arith.constant 0 : index
    %173 = vector.load %arg9[%c9, %c0_82, %c0_83] : memref<18x16x128xf32, #tpu.memory_space<vmem>>, vector<8x16x128xf32>
    %174 = vector.shape_cast %173 : vector<8x16x128xf32> to vector<128x128xf32>
    %c1_i32_84 = arith.constant 1 : i32
    %175 = tpu.dynamic_rotate %174 by %c1_i32_84 dim 0 : vector<128x128xf32>, i32 -> vector<128x128xf32>
    %cst_85 = arith.constant 0.000000e+00 : f32
    %176 = vector.shape_cast %32 : vector<128x1xi1> to vector<128x1xi1>
    %177 = vector.broadcast %176 : vector<128x1xi1> to vector<128x128xi1>
    %178 = vector.broadcast %cst_85 : f32 to vector<128x128xf32>
    %179 = arith.select %177, %175, %178 : vector<128x128xi1>, vector<128x128xf32>
    %c127_i32_86 = arith.constant 127 : i32
    %180 = tpu.dynamic_rotate %174 by %c127_i32_86 dim 0 : vector<128x128xf32>, i32 -> vector<128x128xf32>
    %cst_87 = arith.constant 0.000000e+00 : f32
    %181 = vector.shape_cast %34 : vector<128x1xi1> to vector<128x1xi1>
    %182 = vector.broadcast %181 : vector<128x1xi1> to vector<128x128xi1>
    %183 = vector.broadcast %cst_87 : f32 to vector<128x128xf32>
    %184 = arith.select %182, %180, %183 : vector<128x128xi1>, vector<128x128xf32>
    %185 = vector.broadcast %8 : vector<1x128xf32> to vector<128x128xf32>
    %186 = arith.mulf %179, %185 : vector<128x128xf32>
    %187 = arith.addf %172, %186 : vector<128x128xf32>
    %188 = vector.broadcast %9 : vector<1x128xf32> to vector<128x128xf32>
    %189 = arith.mulf %174, %188 : vector<128x128xf32>
    %190 = arith.addf %187, %189 : vector<128x128xf32>
    %191 = vector.broadcast %10 : vector<1x128xf32> to vector<128x128xf32>
    %192 = arith.mulf %184, %191 : vector<128x128xf32>
    %193 = arith.addf %190, %192 : vector<128x128xf32>
    %c10 = arith.constant 10 : index
    %c0_88 = arith.constant 0 : index
    %c0_89 = arith.constant 0 : index
    %194 = vector.load %arg9[%c10, %c0_88, %c0_89] : memref<18x16x128xf32, #tpu.memory_space<vmem>>, vector<8x16x128xf32>
    %195 = vector.shape_cast %194 : vector<8x16x128xf32> to vector<128x128xf32>
    %c1_i32_90 = arith.constant 1 : i32
    %196 = tpu.dynamic_rotate %195 by %c1_i32_90 dim 0 : vector<128x128xf32>, i32 -> vector<128x128xf32>
    %cst_91 = arith.constant 0.000000e+00 : f32
    %197 = vector.shape_cast %32 : vector<128x1xi1> to vector<128x1xi1>
    %198 = vector.broadcast %197 : vector<128x1xi1> to vector<128x128xi1>
    %199 = vector.broadcast %cst_91 : f32 to vector<128x128xf32>
    %200 = arith.select %198, %196, %199 : vector<128x128xi1>, vector<128x128xf32>
    %c127_i32_92 = arith.constant 127 : i32
    %201 = tpu.dynamic_rotate %195 by %c127_i32_92 dim 0 : vector<128x128xf32>, i32 -> vector<128x128xf32>
    %cst_93 = arith.constant 0.000000e+00 : f32
    %202 = vector.shape_cast %34 : vector<128x1xi1> to vector<128x1xi1>
    %203 = vector.broadcast %202 : vector<128x1xi1> to vector<128x128xi1>
    %204 = vector.broadcast %cst_93 : f32 to vector<128x128xf32>
    %205 = arith.select %203, %201, %204 : vector<128x128xi1>, vector<128x128xf32>
    %206 = vector.broadcast %11 : vector<1x128xf32> to vector<128x128xf32>
    %207 = arith.mulf %200, %206 : vector<128x128xf32>
    %208 = arith.addf %193, %207 : vector<128x128xf32>
    %209 = vector.broadcast %12 : vector<1x128xf32> to vector<128x128xf32>
    %210 = arith.mulf %195, %209 : vector<128x128xf32>
    %211 = arith.addf %208, %210 : vector<128x128xf32>
    %212 = vector.broadcast %13 : vector<1x128xf32> to vector<128x128xf32>
    %213 = arith.mulf %205, %212 : vector<128x128xf32>
    %214 = arith.addf %211, %213 : vector<128x128xf32>
    %215 = vector.broadcast %3 : vector<1x128xf32> to vector<128x128xf32>
    %216 = arith.addf %214, %215 : vector<128x128xf32>
    %cst_94 = arith.constant 5.000000e-01 : f32
    %217 = vector.broadcast %cst_94 : f32 to vector<128x128xf32>
    %218 = arith.mulf %217, %216 : vector<128x128xf32>
    %cst_95 = arith.constant 4.471500e-02 : f32
    %219 = vector.broadcast %cst_95 : f32 to vector<128x128xf32>
    %220 = arith.mulf %219, %216 : vector<128x128xf32>
    %221 = arith.mulf %220, %216 : vector<128x128xf32>
    %222 = arith.mulf %221, %216 : vector<128x128xf32>
    %223 = arith.addf %216, %222 : vector<128x128xf32>
    %cst_96 = arith.constant 0.797884583 : f32
    %224 = vector.broadcast %cst_96 : f32 to vector<128x128xf32>
    %225 = arith.mulf %224, %223 : vector<128x128xf32>
    %226 = math.tanh %225 : vector<128x128xf32>
    %cst_97 = arith.constant 1.000000e+00 : f32
    %227 = vector.broadcast %cst_97 : f32 to vector<128x128xf32>
    %228 = arith.addf %227, %226 : vector<128x128xf32>
    %229 = arith.mulf %218, %228 : vector<128x128xf32>
    %230 = arith.truncf %229 : vector<128x128xf32> to vector<128x128xbf16>
    %cst_98 = arith.constant dense<0.000000e+00> : vector<128x32xf32>
    %231 = tpu.matmul %230, %1, %cst_98 {dimension_numbers = #tpu.dot_dimension_numbers<[1], [0], [0], [1], [0, 0, 1, 1], [], []>} : vector<128x128xbf16>, vector<128x32xbf16>, vector<128x32xf32> -> vector<128x32xf32>
    %232 = vector.broadcast %4 : vector<1x32xf32> to vector<128x32xf32>
    %233 = arith.addf %231, %232 : vector<128x32xf32>
    %c0_99 = arith.constant 0 : index
    %c8_100 = arith.constant 8 : index
    %c0_101 = arith.constant 0 : index
    %c0_102 = arith.constant 0 : index
    %234 = vector.load %arg1[%c0_99, %c8_100, %c0_101, %c0_102] : memref<1x16x16x32xf32, #tpu.memory_space<vmem>>, vector<1x8x16x32xf32>
    %235 = vector.shape_cast %234 : vector<1x8x16x32xf32> to vector<8x16x32xf32>
    %236 = vector.shape_cast %235 : vector<8x16x32xf32> to vector<128x32xf32>
    %237 = arith.addf %236, %233 : vector<128x32xf32>
    %238 = vector.shape_cast %237 : vector<128x32xf32> to vector<8x16x32xf32>
    %c0_103 = arith.constant 0 : index
    %c8_104 = arith.constant 8 : index
    %c0_105 = arith.constant 0 : index
    %c0_106 = arith.constant 0 : index
    %239 = vector.load %arg8[%c0_103, %c8_104, %c0_105, %c0_106] : memref<1x16x16x32xf32, #tpu.memory_space<vmem>>, vector<1x8x16x32xf32>
    %240 = vector.shape_cast %239 : vector<1x8x16x32xf32> to vector<8x16x32xf32>
    %241 = vector.shape_cast %238 : vector<8x16x32xf32> to vector<1x8x16x32xf32>
    tpu.vector_store %arg8[%c0_103, %c8_104, %c0_105, %c0_106], %241 {strides = array<i32>} : memref<1x16x16x32xf32, #tpu.memory_space<vmem>>, vector<1x8x16x32xf32>,
    return
  }
  func.func @transform_0(%arg0: i32) -> (i32, i32, i32, i32) {
    %c0_i32 = arith.constant 0 : i32
    %c0_i32_0 = arith.constant 0 : i32
    %c0_i32_1 = arith.constant 0 : i32
    %c0_i32_2 = arith.constant 0 : i32
    return %arg0, %c0_i32, %c0_i32_0, %c0_i32_1 : i32, i32, i32, i32
  }
  func.func @transform_1(%arg0: i32) -> (i32, i32) {
    %c0_i32 = arith.constant 0 : i32
    %c0_i32_0 = arith.constant 0 : i32
    %c0_i32_1 = arith.constant 0 : i32
    return %c0_i32, %c0_i32_0 : i32, i32
  }
  func.func @transform_2(%arg0: i32) -> (i32, i32) {
    %c0_i32 = arith.constant 0 : i32
    %c0_i32_0 = arith.constant 0 : i32
    %c0_i32_1 = arith.constant 0 : i32
    return %c0_i32, %c0_i32_0 : i32, i32
  }
  func.func @transform_3(%arg0: i32) -> (i32, i32) {
    %c0_i32 = arith.constant 0 : i32
    %c0_i32_0 = arith.constant 0 : i32
    %c0_i32_1 = arith.constant 0 : i32
    return %c0_i32, %c0_i32_0 : i32, i32
  }
  func.func @transform_4(%arg0: i32) -> (i32, i32) {
    %c0_i32 = arith.constant 0 : i32
    %c0_i32_0 = arith.constant 0 : i32
    %c0_i32_1 = arith.constant 0 : i32
    return %c0_i32, %c0_i32_0 : i32, i32
  }
  func.func @transform_5(%arg0: i32) -> (i32, i32) {
    %c0_i32 = arith.constant 0 : i32
    %c0_i32_0 = arith.constant 0 : i32
    %c0_i32_1 = arith.constant 0 : i32
    return %c0_i32, %c0_i32_0 : i32, i32
  }
  func.func @transform_6(%arg0: i32) -> (i32, i32) {
    %c0_i32 = arith.constant 0 : i32
    %c0_i32_0 = arith.constant 0 : i32
    %c0_i32_1 = arith.constant 0 : i32
    return %c0_i32, %c0_i32_0 : i32, i32
  }
  func.func @transform_7(%arg0: i32) -> (i32, i32, i32, i32) {
    %c0_i32 = arith.constant 0 : i32
    %c0_i32_0 = arith.constant 0 : i32
    %c0_i32_1 = arith.constant 0 : i32
    %c0_i32_2 = arith.constant 0 : i32
    return %arg0, %c0_i32, %c0_i32_0, %c0_i32_1 : i32, i32, i32, i32
  }
}

</mosaic_0001>

<llo_original>
// kernel: tpu_custom_call.1
$region0: #{tpu_custom_call.1}
  #allocation0 [shape = 'u32[]', space=smem, size = 0x4, offset = 0x4, fixed_abs, tag = 'smem constant byte address 0x4 - core index']
  #allocation1 [shape = 'u32[144,128]{1,0:T(1,128)}', space=vmem, size = 0x12000, scoped, tag = 'internal scratch']
  #allocation2 [shape = 'f32[18,16,128]{2,1,0:T(8,128)}', space=vmem, size = 0x24000, scoped, tag = 'scratch operand']
  %s0 = inlined_call_operand.hbm [shape: f32[2,16,16,32], index: 0, kind: input, shape index: {}]
  %s1 = inlined_call_operand.vmem [shape: bf16[32,128], index: 1, kind: input, shape index: {}]
  %s2 = inlined_call_operand.vmem [shape: f32[1,128], index: 2, kind: input, shape index: {}]
  %s3 = inlined_call_operand.vmem [shape: f32[9,128], index: 3, kind: input, shape index: {}]
  %s4 = inlined_call_operand.vmem [shape: f32[1,128], index: 4, kind: input, shape index: {}]
  %s5 = inlined_call_operand.vmem [shape: bf16[128,32], index: 5, kind: input, shape index: {}]
  %s6 = inlined_call_operand.vmem [shape: f32[1,32], index: 6, kind: input, shape index: {}]
  %s7 = inlined_call_operand.hbm [shape: f32[2,16,16,32], index: 7, kind: output, shape index: {}]
  %s8 = sld [smem:[#allocation0]]
  $region65: #{tpu_custom_call.1} parent=0
    _
  %s10 = ssub.s32 1, %s8
  %s11 = scalar_select 0, %s10, %s8
  $region1: #{tpu_custom_call.1} parent=0
    #allocation3 [shape = 'u8[262144]{0}', space=vmem, size = 0x40000, scoped, tag = 'input window, operand 0']
    #allocation4 [shape = 's32[2]{0}', space=sflag, size = 0x8, scoped, tag = 'scoped memory for tpu_custom_call.1']
    #allocation5 [shape = 's32[2]{0}', space=sflag, size = 0x8, scoped, tag = 'scoped memory for tpu_custom_call.1']
    #allocation6 [shape = 'u8[262144]{0}', space=vmem, size = 0x40000, scoped, tag = 'output window, operand 0']
    %12 = vsyncpa [#allocation4], 0
    %s13 = scalar_lea.sflag [#allocation4], 1
    %14 = vsyncpa %s13, 0
    %15 = vsyncpa [#allocation5], 0
    %s16 = scalar_lea.sflag [#allocation5], 1
    %17 = vsyncpa %s16, 0
    loop: start=0, step=1, limit=4
    $region2: #{tpu_custom_call.1} parent=1 // loop_pre_header
      _
    $region3: #{tpu_custom_call.1} parent=1 // loop_header
      %s19 = sphi 0, %s23
      %p20 = scmp.ge.s32.totalorder %s19, 4
      %s29 = sphi 0, %s31
      %s32 = sphi 0, %s29
      %s33 = sphi 0, %s32
      %s49 = sphi 0, %s33
      %s53 = sphi 0, %s53
      %s55 = sphi 0, %s53
      %s56 = sphi 0, %s55
      %s70 = sphi 0, %s56
      %s74 = sphi 0, %s74
      %s76 = sphi 0, %s74
      %s77 = sphi 0, %s76
      %s91 = sphi 0, %s77
      %s95 = sphi 0, %s95
      %s97 = sphi 0, %s95
      %s98 = sphi 0, %s97
      %s112 = sphi 0, %s98
      %s116 = sphi 0, %s116
      %s118 = sphi 0, %s116
      %s119 = sphi 0, %s118
      %s133 = sphi 0, %s119
      %s137 = sphi 0, %s137
      %s139 = sphi 0, %s137
      %s140 = sphi 0, %s139
      %s154 = sphi 0, %s140
      %s158 = sphi 0, %s158
      %s160 = sphi 0, %s158
      %s161 = sphi 0, %s160
      %s175 = sphi 0, %s161
      %s181 = sphi 0, %s183
      %s184 = sphi 0, %s181
      %s185 = sphi 0, %s184
      %s201 = sphi 0, %s185
    $region4: #{tpu_custom_call.1} parent=1 // loop_header_branch
      %22 = sbr.rel (%p20) target = $region8
    $region5: #{tpu_custom_call.1} parent=1 // loop_body
      %s24 = ssub.s32 %s19, 1
      %s25 = ssub.s32 %s19, 2
      %s26 = sadd.s32 %s19, 1
      %s27 = ssub.s32 %s19, %s26
      %p28 = scmp.eq.s32.totalorder %s27, 0
      %s30 = sadd.s32 %s29, 1
      %s31 = scalar_select %p28, %s29, %s30
      %p34 = pneg %p28
      %p35 = scmp.eq.s32.totalorder %s19, 1
      %p36 = por %p34, %p35
      %p37 = scmp.ne.s32.totalorder %s29, %s32
      %p38 = scmp.eq.s32.totalorder %s19, 0
      %p39 = por %p37, %p38
      %p40 = scmp.ne.s32.totalorder %s29, %s32
      %p41 = scmp.eq.s32.totalorder %s24, 1
      %p42 = por %p40, %p41
      %p43 = scmp.ne.s32.totalorder %s32, %s33
      %p44 = scmp.eq.s32.totalorder %s24, 0
      %p45 = por %p43, %p44
      %p46 = scmp.ne.s32.totalorder %s32, %s33
      %p47 = scmp.eq.s32.totalorder %s25, 1
      %p48 = por %p46, %p47
      %p50 = scmp.ne.s32.totalorder %s33, %s49
      %p51 = scmp.eq.s32.totalorder %s25, 0
      %p52 = por %p50, %p51
      %s54 = sadd.s32 %s53, 1
      %p57 = scmp.eq.s32.totalorder %s19, 1
      %p58 = scmp.ne.s32.totalorder %s53, %s55
      %p59 = scmp.eq.s32.totalorder %s19, 0
      %p60 = por %p58, %p59
      %p61 = scmp.ne.s32.totalorder %s53, %s55
      %p62 = scmp.eq.s32.totalorder %s24, 1
      %p63 = por %p61, %p62
      %p64 = scmp.ne.s32.totalorder %s55, %s56
      %p65 = scmp.eq.s32.totalorder %s24, 0
      %p66 = por %p64, %p65
      %p67 = scmp.ne.s32.totalorder %s55, %s56
      %p68 = scmp.eq.s32.totalorder %s25, 1
      %p69 = por %p67, %p68
      %p71 = scmp.ne.s32.totalorder %s56, %s70
      %p72 = scmp.eq.s32.totalorder %s25, 0
      %p73 = por %p71, %p72
      %s75 = sadd.s32 %s74, 1
      %p78 = scmp.eq.s32.totalorder %s19, 1
      %p79 = scmp.ne.s32.totalorder %s74, %s76
      %p80 = scmp.eq.s32.totalorder %s19, 0
      %p81 = por %p79, %p80
      %p82 = scmp.ne.s32.totalorder %s74, %s76
      %p83 = scmp.eq.s32.totalorder %s24, 1
      %p84 = por %p82, %p83
      %p85 = scmp.ne.s32.totalorder %s76, %s77
      %p86 = scmp.eq.s32.totalorder %s24, 0
      %p87 = por %p85, %p86
      %p88 = scmp.ne.s32.totalorder %s76, %s77
      %p89 = scmp.eq.s32.totalorder %s25, 1
      %p90 = por %p88, %p89
      %p92 = scmp.ne.s32.totalorder %s77, %s91
      %p93 = scmp.eq.s32.totalorder %s25, 0
      %p94 = por %p92, %p93
      %s96 = sadd.s32 %s95, 1
      %p99 = scmp.eq.s32.totalorder %s19, 1
      %p100 = scmp.ne.s32.totalorder %s95, %s97
      %p101 = scmp.eq.s32.totalorder %s19, 0
      %p102 = por %p100, %p101
      %p103 = scmp.ne.s32.totalorder %s95, %s97
      %p104 = scmp.eq.s32.totalorder %s24, 1
      %p105 = por %p103, %p104
      %p106 = scmp.ne.s32.totalorder %s97, %s98
      %p107 = scmp.eq.s32.totalorder %s24, 0
      %p108 = por %p106, %p107
      %p109 = scmp.ne.s32.totalorder %s97, %s98
      %p110 = scmp.eq.s32.totalorder %s25, 1
      %p111 = por %p109, %p110
      %p113 = scmp.ne.s32.totalorder %s98, %s112
      %p114 = scmp.eq.s32.totalorder %s25, 0
      %p115 = por %p113, %p114
      %s117 = sadd.s32 %s116, 1
      %p120 = scmp.eq.s32.totalorder %s19, 1
      %p121 = scmp.ne.s32.totalorder %s116, %s118
      %p122 = scmp.eq.s32.totalorder %s19, 0
      %p123 = por %p121, %p122
      %p124 = scmp.ne.s32.totalorder %s116, %s118
      %p125 = scmp.eq.s32.totalorder %s24, 1
      %p126 = por %p124, %p125
      %p127 = scmp.ne.s32.totalorder %s118, %s119
      %p128 = scmp.eq.s32.totalorder %s24, 0
      %p129 = por %p127, %p128
      %p130 = scmp.ne.s32.totalorder %s118, %s119
      %p131 = scmp.eq.s32.totalorder %s25, 1
      %p132 = por %p130, %p131
      %p134 = scmp.ne.s32.totalorder %s119, %s133
      %p135 = scmp.eq.s32.totalorder %s25, 0
      %p136 = por %p134, %p135
      %s138 = sadd.s32 %s137, 1
      %p141 = scmp.eq.s32.totalorder %s19, 1
      %p142 = scmp.ne.s32.totalorder %s137, %s139
      %p143 = scmp.eq.s32.totalorder %s19, 0
      %p144 = por %p142, %p143
      %p145 = scmp.ne.s32.totalorder %s137, %s139
      %p146 = scmp.eq.s32.totalorder %s24, 1
      %p147 = por %p145, %p146
      %p148 = scmp.ne.s32.totalorder %s139, %s140
      %p149 = scmp.eq.s32.totalorder %s24, 0
      %p150 = por %p148, %p149
      %p151 = scmp.ne.s32.totalorder %s139, %s140
      %p152 = scmp.eq.s32.totalorder %s25, 1
      %p153 = por %p151, %p152
      %p155 = scmp.ne.s32.totalorder %s140, %s154
      %p156 = scmp.eq.s32.totalorder %s25, 0
      %p157 = por %p155, %p156
      %s159 = sadd.s32 %s158, 1
      %p162 = scmp.eq.s32.totalorder %s19, 1
      %p163 = scmp.ne.s32.totalorder %s158, %s160
      %p164 = scmp.eq.s32.totalorder %s19, 0
      %p165 = por %p163, %p164
      %p166 = scmp.ne.s32.totalorder %s158, %s160
      %p167 = scmp.eq.s32.totalorder %s24, 1
      %p168 = por %p166, %p167
      %p169 = scmp.ne.s32.totalorder %s160, %s161
      %p170 = scmp.eq.s32.totalorder %s24, 0
      %p171 = por %p169, %p170
      %p172 = scmp.ne.s32.totalorder %s160, %s161
      %p173 = scmp.eq.s32.totalorder %s25, 1
      %p174 = por %p172, %p173
      %p176 = scmp.ne.s32.totalorder %s161, %s175
      %p177 = scmp.eq.s32.totalorder %s25, 0
      %p178 = por %p176, %p177
      %s179 = ssub.s32 %s19, %s26
      %p180 = scmp.eq.s32.totalorder %s179, 0
      %s182 = sadd.s32 %s181, 1
      %s183 = scalar_select %p180, %s181, %s182
      %p186 = pneg %p180
      %p187 = scmp.eq.s32.totalorder %s19, 1
      %p188 = por %p186, %p187
      %p189 = scmp.ne.s32.totalorder %s181, %s184
      %p190 = scmp.eq.s32.totalorder %s19, 0
      %p191 = por %p189, %p190
      %p192 = scmp.ne.s32.totalorder %s181, %s184
      %p193 = scmp.eq.s32.totalorder %s24, 1
      %p194 = por %p192, %p193
      %p195 = scmp.ne.s32.totalorder %s184, %s185
      %p196 = scmp.eq.s32.totalorder %s24, 0
      %p197 = por %p195, %p196
      %p198 = scmp.ne.s32.totalorder %s184, %s185
      %p199 = scmp.eq.s32.totalorder %s25, 1
      %p200 = por %p198, %p199
      %p202 = scmp.ne.s32.totalorder %s185, %s201
      %p203 = scmp.eq.s32.totalorder %s25, 0
      %p204 = por %p202, %p203
      %p205 = scmp.le.s32.totalorder 1, %s19
      %p206 = scmp.lt.s32.totalorder %s19, 3
      %p207 = pnand %p205, %p206
      %p208 = pneg %p207
      // Predicated region
      $region9: #{tpu_custom_call.1} parent=5 // pred_check
        _
      $region10: #{tpu_custom_call.1} parent=5 // pred_check_branch
        %210 = sbr.rel (%p207) target = $region12
      $region11: #{tpu_custom_call.1} parent=5 // pred_region
        %s211 = ssub.s32 %s19, 1
        // Predicated region
        $region13: #{tpu_custom_call.1} parent=11 // pred_check
          %p212 = pneg %p66
        $region14: #{tpu_custom_call.1} parent=11 // pred_check_branch
          %214 = sbr.rel (%p212) target = $region16
        $region15: #{tpu_custom_call.1} parent=11 // pred_region
          _
        $region16: #{tpu_custom_call.1} parent=11 // pred_fallthru
          _
        // Predicated region
        $region17: #{tpu_custom_call.1} parent=11 // pred_check
          %p215 = pneg %p87
        $region18: #{tpu_custom_call.1} parent=11 // pred_check_branch
          %217 = sbr.rel (%p215) target = $region20
        $region19: #{tpu_custom_call.1} parent=11 // pred_region
          _
        $region20: #{tpu_custom_call.1} parent=11 // pred_fallthru
          _
        // Predicated region
        $region21: #{tpu_custom_call.1} parent=11 // pred_check
          %p218 = pneg %p108
        $region22: #{tpu_custom_call.1} parent=11 // pred_check_branch
          %220 = sbr.rel (%p218) target = $region24
        $region23: #{tpu_custom_call.1} parent=11 // pred_region
          _
        $region24: #{tpu_custom_call.1} parent=11 // pred_fallthru
          _
        // Predicated region
        $region25: #{tpu_custom_call.1} parent=11 // pred_check
          %p221 = pneg %p129
        $region26: #{tpu_custom_call.1} parent=11 // pred_check_branch
          %223 = sbr.rel (%p221) target = $region28
        $region27: #{tpu_custom_call.1} parent=11 // pred_region
          _
        $region28: #{tpu_custom_call.1} parent=11 // pred_fallthru
          _
        // Predicated region
        $region29: #{tpu_custom_call.1} parent=11 // pred_check
          %p224 = pneg %p150
        $region30: #{tpu_custom_call.1} parent=11 // pred_check_branch
          %226 = sbr.rel (%p224) target = $region32
        $region31: #{tpu_custom_call.1} parent=11 // pred_region
          _
        $region32: #{tpu_custom_call.1} parent=11 // pred_fallthru
          _
        // Predicated region
        $region33: #{tpu_custom_call.1} parent=11 // pred_check
          %p227 = pneg %p171
        $region34: #{tpu_custom_call.1} parent=11 // pred_check_branch
          %229 = sbr.rel (%p227) target = $region36
        $region35: #{tpu_custom_call.1} parent=11 // pred_region
          _
        $region36: #{tpu_custom_call.1} parent=11 // pred_fallthru
          _
      $region12: #{tpu_custom_call.1} parent=5 // pred_fallthru
        _
      %p230 = scmp.lt.s32.totalorder %s19, 2
      // Predicated region
      $region37: #{tpu_custom_call.1} parent=5 // pred_check
        %p231 = pneg %p230
      $region38: #{tpu_custom_call.1} parent=5 // pred_check_branch
        %233 = sbr.rel (%p231) target = $region40
      $region39: #{tpu_custom_call.1} parent=5 // pred_region
        // Predicated region
        $region41: #{tpu_custom_call.1} parent=39 // pred_check
          %p234 = pneg %p39
        $region42: #{tpu_custom_call.1} parent=39 // pred_check_branch
          %236 = sbr.rel (%p234) target = $region44
        $region43: #{tpu_custom_call.1} parent=39 // pred_region
          %s237 = sand.u32 %s29, 1
          %s238 = scalar_lea.sflag [#allocation4], %s237
          %s239 = sand.u32 %s29, 1
          %s240 = smul.addr %s239, 256
          %s241 = scalar_lea.vmem [#allocation3], %s240
          %s243 = ssub.s32 4096, 4096
          %244 = vsyncadd %s238, %s243
          %s245 = smul.addr %s19, 32
          %s246 = smul.addr %s245, 128
          %s247 = scalar_lea.hbm %s0, %s246
          %s248 = sshll.u32 %s241, 4
          %s249 = int_to_ptr.vmem [resolvable:$true] %s248
          %254 = dma.hbm_to_vmem [thread:$0]  %s247, 4096, %s249, %s238, 128, 128, 8
        $region44: #{tpu_custom_call.1} parent=39 // pred_fallthru
          _
      $region40: #{tpu_custom_call.1} parent=5 // pred_fallthru
        _
      %p255 = scmp.le.s32.totalorder 1, %s19
      %p256 = scmp.lt.s32.totalorder %s19, 3
      %p257 = pnand %p255, %p256
      %p258 = pneg %p257
      // Predicated region
      $region45: #{tpu_custom_call.1} parent=5 // pred_check
        _
      $region46: #{tpu_custom_call.1} parent=5 // pred_check_branch
        %260 = sbr.rel (%p257) target = $region48
      $region47: #{tpu_custom_call.1} parent=5 // pred_region
        %s261 = ssub.s32 %s19, 1
        %s262 = sand.u32 %s32, 1
        %s263 = scalar_lea.sflag [#allocation4], %s262
        %s264 = sand.u32 %s32, 1
        %s265 = smul.addr %s264, 256
        %s266 = scalar_lea.vmem [#allocation3], %s265
        // Predicated region
        $region49: #{tpu_custom_call.1} parent=47 // pred_check
          %p267 = pneg %p45
        $region50: #{tpu_custom_call.1} parent=47 // pred_check_branch
          %269 = sbr.rel (%p267) target = $region52
        $region51: #{tpu_custom_call.1} parent=47 // pred_region
          %270 = dma.done %s263, 4096
        $region52: #{tpu_custom_call.1} parent=47 // pred_fallthru
          _
        %s271 = sand.u32 %s32, 1
        %s272 = scalar_lea.sflag [#allocation4], %s271
        %s273 = sand.u32 %s32, 1
        %s274 = smul.addr %s273, 256
        %s275 = scalar_lea.vmem [#allocation3], %s274
        %p276 = pneg %p45
        %p277 = pneg %p42
        %p278 = pneg %p66
        %p279 = pneg %p63
        %p280 = pneg %p87
        %p281 = pneg %p84
        %p282 = pneg %p108
        %p283 = pneg %p105
        %p284 = pneg %p129
        %p285 = pneg %p126
        %p286 = pneg %p150
        %p287 = pneg %p147
        %p288 = pneg %p171
        %p289 = pneg %p168
        %p290 = pneg %p197
        %p291 = pneg %p194
        %s292 = sand.u32 %s184, 1
        %s293 = scalar_lea.sflag [#allocation5], %s292
        %s294 = sand.u32 %s184, 1
        %s295 = smul.addr %s294, 256
        %s296 = scalar_lea.vmem [#allocation6], %s295
        %v298 = vld [vmem:[%s1] sm:$0xf]
        %v299 = vld [vmem:[%s1 + $0x4] sm:$0xf]
        %v300 = vld [vmem:[%s1 + $0x8] sm:$0xf]
        %v301 = vld [vmem:[%s1 + $0xc] sm:$0xf]
        %v302 = vld [vmem:[%s5] sm:$0xf]
        %v303 = vld [vmem:[%s5 + $0x4] sm:$0xf]
        %v304 = vld [vmem:[%s5 + $0x8] sm:$0xf]
        %v305 = vld [vmem:[%s5 + $0xc] sm:$0xf]
        %v306 = vld [vmem:[%s5 + $0x10] sm:$0xf]
        %v307 = vld [vmem:[%s5 + $0x14] sm:$0xf]
        %v308 = vld [vmem:[%s5 + $0x18] sm:$0xf]
        %v309 = vld [vmem:[%s5 + $0x1c] sm:$0xf]
        %v310 = vld [vmem:[%s5 + $0x20] sm:$0xf]
        %v311 = vld [vmem:[%s5 + $0x24] sm:$0xf]
        %v312 = vld [vmem:[%s5 + $0x28] sm:$0xf]
        %v313 = vld [vmem:[%s5 + $0x2c] sm:$0xf]
        %v314 = vld [vmem:[%s5 + $0x30] sm:$0xf]
        %v315 = vld [vmem:[%s5 + $0x34] sm:$0xf]
        %v316 = vld [vmem:[%s5 + $0x38] sm:$0xf]
        %v317 = vld [vmem:[%s5 + $0x3c] sm:$0xf]
        %v318 = vld [vmem:[%s2] sm:$0x1]
        %v319 = vld [vmem:[%s4] sm:$0x1]
        %v320 = vld [vmem:[%s6] sm:$0x1]
        %v321 = vld [vmem:[%s3] sm:$0x1]
        %v322 = vld [vmem:[%s3 + $0x1] sm:$0x1]
        %v323 = vld [vmem:[%s3 + $0x2] sm:$0x1]
        %v324 = vld [vmem:[%s3 + $0x3] sm:$0x1]
        %v325 = vld [vmem:[%s3 + $0x4] sm:$0x1]
        %v326 = vld [vmem:[%s3 + $0x5] sm:$0x1]
        %v327 = vld [vmem:[%s3 + $0x6] sm:$0x1]
        %v328 = vld [vmem:[%s3 + $0x7] sm:$0x1]
        %v329 = vld [vmem:[%s3 + $0x8] sm:$0x1]
        %v330 = vlaneseq
        %v331 = vshrl.u32 %v330, 7
        %v332 = vadd.s32 %v331, 8
        %v333 = vadd.s32 %v331, 16
        %v334 = vadd.s32 %v331, 24
        %v335 = vadd.s32 %v331, 32
        %v336 = vadd.s32 %v331, 40
        %v337 = vadd.s32 %v331, 48
        %v338 = vadd.s32 %v331, 56
        %v339 = vadd.s32 %v331, 64
        %v340 = vadd.s32 %v331, 72
        %v341 = vadd.s32 %v331, 80
        %v342 = vadd.s32 %v331, 88
        %v343 = vadd.s32 %v331, 96
        %v344 = vadd.s32 %v331, 104
        %v345 = vadd.s32 %v331, 112
        %v346 = vadd.s32 %v331, 120
        %vm347 = vcmp.lt.s32.totalorder %v331, 0
        %v348 = vsub.s32 0, %v331
        %v349 = vsel %vm347, %v348, %v331
        %v350 = vshrl.u32 %v349, 4
        %v351 = vand.u32 %v349, 15
        %v352 = vsub.s32 0, %v351
        %v353 = vsel %vm347, %v352, %v351
        %vm354 = vcmp.lt.s32.totalorder %v332, 0
        %v355 = vsub.s32 0, %v332
        %v356 = vsel %vm354, %v355, %v332
        %v357 = vshrl.u32 %v356, 4
        %v358 = vand.u32 %v356, 15
        %v359 = vsub.s32 0, %v358
        %v360 = vsel %vm354, %v359, %v358
        %vm361 = vcmp.lt.s32.totalorder %v333, 0
        %v362 = vsub.s32 0, %v333
        %v363 = vsel %vm361, %v362, %v333
        %v364 = vshrl.u32 %v363, 4
        %v365 = vand.u32 %v363, 15
        %v366 = vsub.s32 0, %v365
        %v367 = vsel %vm361, %v366, %v365
        %vm368 = vcmp.lt.s32.totalorder %v334, 0
        %v369 = vsub.s32 0, %v334
        %v370 = vsel %vm368, %v369, %v334
        %v371 = vshrl.u32 %v370, 4
        %v372 = vand.u32 %v370, 15
        %v373 = vsub.s32 0, %v372
        %v374 = vsel %vm368, %v373, %v372
        %vm375 = vcmp.lt.s32.totalorder %v335, 0
        %v376 = vsub.s32 0, %v335
        %v377 = vsel %vm375, %v376, %v335
        %v378 = vshrl.u32 %v377, 4
        %v379 = vand.u32 %v377, 15
        %v380 = vsub.s32 0, %v379
        %v381 = vsel %vm375, %v380, %v379
        %vm382 = vcmp.lt.s32.totalorder %v336, 0
        %v383 = vsub.s32 0, %v336
        %v384 = vsel %vm382, %v383, %v336
        %v385 = vshrl.u32 %v384, 4
        %v386 = vand.u32 %v384, 15
        %v387 = vsub.s32 0, %v386
        %v388 = vsel %vm382, %v387, %v386
        %vm389 = vcmp.lt.s32.totalorder %v337, 0
        %v390 = vsub.s32 0, %v337
        %v391 = vsel %vm389, %v390, %v337
        %v392 = vshrl.u32 %v391, 4
        %v393 = vand.u32 %v391, 15
        %v394 = vsub.s32 0, %v393
        %v395 = vsel %vm389, %v394, %v393
        %vm396 = vcmp.lt.s32.totalorder %v338, 0
        %v397 = vsub.s32 0, %v338
        %v398 = vsel %vm396, %v397, %v338
        %v399 = vshrl.u32 %v398, 4
        %v400 = vand.u32 %v398, 15
        %v401 = vsub.s32 0, %v400
        %v402 = vsel %vm396, %v401, %v400
        %vm403 = vcmp.lt.s32.totalorder %v339, 0
        %v404 = vsub.s32 0, %v339
        %v405 = vsel %vm403, %v404, %v339
        %v406 = vshrl.u32 %v405, 4
        %v407 = vand.u32 %v405, 15
        %v408 = vsub.s32 0, %v407
        %v409 = vsel %vm403, %v408, %v407
        %vm410 = vcmp.lt.s32.totalorder %v340, 0
        %v411 = vsub.s32 0, %v340
        %v412 = vsel %vm410, %v411, %v340
        %v413 = vshrl.u32 %v412, 4
        %v414 = vand.u32 %v412, 15
        %v415 = vsub.s32 0, %v414
        %v416 = vsel %vm410, %v415, %v414
        %vm417 = vcmp.lt.s32.totalorder %v341, 0
        %v418 = vsub.s32 0, %v341
        %v419 = vsel %vm417, %v418, %v341
        %v420 = vshrl.u32 %v419, 4
        %v421 = vand.u32 %v419, 15
        %v422 = vsub.s32 0, %v421
        %v423 = vsel %vm417, %v422, %v421
        %vm424 = vcmp.lt.s32.totalorder %v342, 0
        %v425 = vsub.s32 0, %v342
        %v426 = vsel %vm424, %v425, %v342
        %v427 = vshrl.u32 %v426, 4
        %v428 = vand.u32 %v426, 15
        %v429 = vsub.s32 0, %v428
        %v430 = vsel %vm424, %v429, %v428
        %vm431 = vcmp.lt.s32.totalorder %v343, 0
        %v432 = vsub.s32 0, %v343
        %v433 = vsel %vm431, %v432, %v343
        %v434 = vshrl.u32 %v433, 4
        %v435 = vand.u32 %v433, 15
        %v436 = vsub.s32 0, %v435
        %v437 = vsel %vm431, %v436, %v435
        %vm438 = vcmp.lt.s32.totalorder %v344, 0
        %v439 = vsub.s32 0, %v344
        %v440 = vsel %vm438, %v439, %v344
        %v441 = vshrl.u32 %v440, 4
        %v442 = vand.u32 %v440, 15
        %v443 = vsub.s32 0, %v442
        %v444 = vsel %vm438, %v443, %v442
        %vm445 = vcmp.lt.s32.totalorder %v345, 0
        %v446 = vsub.s32 0, %v345
        %v447 = vsel %vm445, %v446, %v345
        %v448 = vshrl.u32 %v447, 4
        %v449 = vand.u32 %v447, 15
        %v450 = vsub.s32 0, %v449
        %v451 = vsel %vm445, %v450, %v449
        %vm452 = vcmp.lt.s32.totalorder %v346, 0
        %v453 = vsub.s32 0, %v346
        %v454 = vsel %vm452, %v453, %v346
        %v455 = vshrl.u32 %v454, 4
        %v456 = vand.u32 %v454, 15
        %v457 = vsub.s32 0, %v456
        %v458 = vsel %vm452, %v457, %v456
        %vm459 = vcmp.ne.s32.totalorder %v353, 0
        %vm460 = vcmp.ne.s32.totalorder %v360, 0
        %vm461 = vcmp.ne.s32.totalorder %v367, 0
        %vm462 = vcmp.ne.s32.totalorder %v374, 0
        %vm463 = vcmp.ne.s32.totalorder %v381, 0
        %vm464 = vcmp.ne.s32.totalorder %v388, 0
        %vm465 = vcmp.ne.s32.totalorder %v395, 0
        %vm466 = vcmp.ne.s32.totalorder %v402, 0
        %vm467 = vcmp.ne.s32.totalorder %v409, 0
        %vm468 = vcmp.ne.s32.totalorder %v416, 0
        %vm469 = vcmp.ne.s32.totalorder %v423, 0
        %vm470 = vcmp.ne.s32.totalorder %v430, 0
        %vm471 = vcmp.ne.s32.totalorder %v437, 0
        %vm472 = vcmp.ne.s32.totalorder %v444, 0
        %vm473 = vcmp.ne.s32.totalorder %v451, 0
        %vm474 = vcmp.ne.s32.totalorder %v458, 0
        %vm475 = vcmp.lt.s32.totalorder %v353, 0
        %vm476 = vcmp.lt.s32.totalorder %v360, 0
        %vm477 = vcmp.lt.s32.totalorder %v367, 0
        %vm478 = vcmp.lt.s32.totalorder %v374, 0
        %vm479 = vcmp.lt.s32.totalorder %v381, 0
        %vm480 = vcmp.lt.s32.totalorder %v388, 0
        %vm481 = vcmp.lt.s32.totalorder %v395, 0
        %vm482 = vcmp.lt.s32.totalorder %v402, 0
        %vm483 = vcmp.lt.s32.totalorder %v409, 0
        %vm484 = vcmp.lt.s32.totalorder %v416, 0
        %vm485 = vcmp.lt.s32.totalorder %v423, 0
        %vm486 = vcmp.lt.s32.totalorder %v430, 0
        %vm487 = vcmp.lt.s32.totalorder %v437, 0
        %vm488 = vcmp.lt.s32.totalorder %v444, 0
        %vm489 = vcmp.lt.s32.totalorder %v451, 0
        %vm490 = vcmp.lt.s32.totalorder %v458, 0
        %vm491 = vmand %vm475, %vm459
        %vm492 = vmand %vm476, %vm460
        %vm493 = vmand %vm477, %vm461
        %vm494 = vmand %vm478, %vm462
        %vm495 = vmand %vm479, %vm463
        %vm496 = vmand %vm480, %vm464
        %vm497 = vmand %vm481, %vm465
        %vm498 = vmand %vm482, %vm466
        %vm499 = vmand %vm483, %vm467
        %vm500 = vmand %vm484, %vm468
        %vm501 = vmand %vm485, %vm469
        %vm502 = vmand %vm486, %vm470
        %vm503 = vmand %vm487, %vm471
        %vm504 = vmand %vm488, %vm472
        %vm505 = vmand %vm489, %vm473
        %vm506 = vmand %vm490, %vm474
        %v507 = vadd.s32 %v353, 16
        %v508 = vadd.s32 %v360, 16
        %v509 = vadd.s32 %v367, 16
        %v510 = vadd.s32 %v374, 16
        %v511 = vadd.s32 %v381, 16
        %v512 = vadd.s32 %v388, 16
        %v513 = vadd.s32 %v395, 16
        %v514 = vadd.s32 %v402, 16
        %v515 = vadd.s32 %v409, 16
        %v516 = vadd.s32 %v416, 16
        %v517 = vadd.s32 %v423, 16
        %v518 = vadd.s32 %v430, 16
        %v519 = vadd.s32 %v437, 16
        %v520 = vadd.s32 %v444, 16
        %v521 = vadd.s32 %v451, 16
        %v522 = vadd.s32 %v458, 16
        %v523 = vsel %vm491, %v507, %v353
        %v524 = vsel %vm492, %v508, %v360
        %v525 = vsel %vm493, %v509, %v367
        %v526 = vsel %vm494, %v510, %v374
        %v527 = vsel %vm495, %v511, %v381
        %v528 = vsel %vm496, %v512, %v388
        %v529 = vsel %vm497, %v513, %v395
        %v530 = vsel %vm498, %v514, %v402
        %v531 = vsel %vm499, %v515, %v409
        %v532 = vsel %vm500, %v516, %v416
        %v533 = vsel %vm501, %v517, %v423
        %v534 = vsel %vm502, %v518, %v430
        %v535 = vsel %vm503, %v519, %v437
        %v536 = vsel %vm504, %v520, %v444
        %v537 = vsel %vm505, %v521, %v451
        %v538 = vsel %vm506, %v522, %v458
        %vm539 = vcmp.gt.s32.totalorder %v523, 0
        %vm540 = vcmp.gt.s32.totalorder %v524, 0
        %vm541 = vcmp.gt.s32.totalorder %v525, 0
        %vm542 = vcmp.gt.s32.totalorder %v526, 0
        %vm543 = vcmp.gt.s32.totalorder %v527, 0
        %vm544 = vcmp.gt.s32.totalorder %v528, 0
        %vm545 = vcmp.gt.s32.totalorder %v529, 0
        %vm546 = vcmp.gt.s32.totalorder %v530, 0
        %vm547 = vcmp.gt.s32.totalorder %v531, 0
        %vm548 = vcmp.gt.s32.totalorder %v532, 0
        %vm549 = vcmp.gt.s32.totalorder %v533, 0
        %vm550 = vcmp.gt.s32.totalorder %v534, 0
        %vm551 = vcmp.gt.s32.totalorder %v535, 0
        %vm552 = vcmp.gt.s32.totalorder %v536, 0
        %vm553 = vcmp.gt.s32.totalorder %v537, 0
        %vm554 = vcmp.gt.s32.totalorder %v538, 0
        %vm555 = vcmp.lt.s32.totalorder %v523, 15
        %vm556 = vcmp.lt.s32.totalorder %v524, 15
        %vm557 = vcmp.lt.s32.totalorder %v525, 15
        %vm558 = vcmp.lt.s32.totalorder %v526, 15
        %vm559 = vcmp.lt.s32.totalorder %v527, 15
        %vm560 = vcmp.lt.s32.totalorder %v528, 15
        %vm561 = vcmp.lt.s32.totalorder %v529, 15
        %vm562 = vcmp.lt.s32.totalorder %v530, 15
        %vm563 = vcmp.lt.s32.totalorder %v531, 15
        %vm564 = vcmp.lt.s32.totalorder %v532, 15
        %vm565 = vcmp.lt.s32.totalorder %v533, 15
        %vm566 = vcmp.lt.s32.totalorder %v534, 15
        %vm567 = vcmp.lt.s32.totalorder %v535, 15
        %vm568 = vcmp.lt.s32.totalorder %v536, 15
        %vm569 = vcmp.lt.s32.totalorder %v537, 15
        %vm570 = vcmp.lt.s32.totalorder %v538, 15
        %571 = vst [vmem:[#allocation2] sm:$0xff] 0.0
        %572 = vst [vmem:[#allocation2 + $0x8] sm:$0xff] 0.0
        %s573 = scalar_lea.vmem [#allocation2], 272
        %574 = vst [vmem:[%s573] sm:$0xff] 0.0
        %575 = vst [vmem:[%s573 + $0x8] sm:$0xff] 0.0
        %v576 = vld [vmem:[%s266] sm:$0xff]
        %v577 = vld [vmem:[%s266 + $0x8] sm:$0xff]
        %v578 = vld [vmem:[%s266 + $0x10] sm:$0xff]
        %v579 = vld [vmem:[%s266 + $0x18] sm:$0xff]
        %v580 = vld [vmem:[%s266 + $0x20] sm:$0xff]
        %v581 = vld [vmem:[%s266 + $0x28] sm:$0xff]
        %v582 = vld [vmem:[%s266 + $0x30] sm:$0xff]
        %v583 = vld [vmem:[%s266 + $0x38] sm:$0xff]
        %v584 = vld [vmem:[%s266 + $0x40] sm:$0xff]
        %v585 = vld [vmem:[%s266 + $0x48] sm:$0xff]
        %v586 = vld [vmem:[%s266 + $0x50] sm:$0xff]
        %v587 = vld [vmem:[%s266 + $0x58] sm:$0xff]
        %v588 = vld [vmem:[%s266 + $0x60] sm:$0xff]
        %v589 = vld [vmem:[%s266 + $0x68] sm:$0xff]
        %v590 = vld [vmem:[%s266 + $0x70] sm:$0xff]
        %v591 = vld [vmem:[%s266 + $0x78] sm:$0xff]
        %v592 = vld [vmem:[%s266 + $0x80] sm:$0xff]
        %v593 = vld [vmem:[%s266 + $0x88] sm:$0xff]
        %v594 = vld [vmem:[%s266 + $0x90] sm:$0xff]
        %v595 = vld [vmem:[%s266 + $0x98] sm:$0xff]
        %v596 = vld [vmem:[%s266 + $0xa0] sm:$0xff]
        %v597 = vld [vmem:[%s266 + $0xa8] sm:$0xff]
        %v598 = vld [vmem:[%s266 + $0xb0] sm:$0xff]
        %v599 = vld [vmem:[%s266 + $0xb8] sm:$0xff]
        %v600 = vld [vmem:[%s266 + $0xc0] sm:$0xff]
        %v601 = vld [vmem:[%s266 + $0xc8] sm:$0xff]
        %v602 = vld [vmem:[%s266 + $0xd0] sm:$0xff]
        %v603 = vld [vmem:[%s266 + $0xd8] sm:$0xff]
        %v604 = vld [vmem:[%s266 + $0xe0] sm:$0xff]
        %v605 = vld [vmem:[%s266 + $0xe8] sm:$0xff]
        %v606 = vld [vmem:[%s266 + $0xf0] sm:$0xff]
        %v607 = vld [vmem:[%s266 + $0xf8] sm:$0xff]
        %v608 = vpack.c.bf16 %v577, %v576
        %v609 = vpack.c.bf16 %v579, %v578
        %v610 = vpack.c.bf16 %v581, %v580
        %v611 = vpack.c.bf16 %v583, %v582
        %v612 = vpack.c.bf16 %v585, %v584
        %v613 = vpack.c.bf16 %v587, %v586
        %v614 = vpack.c.bf16 %v589, %v588
        %v615 = vpack.c.bf16 %v591, %v590
        %v616 = vpack.c.bf16 %v593, %v592
        %v617 = vpack.c.bf16 %v595, %v594
        %v618 = vpack.c.bf16 %v597, %v596
        %v619 = vpack.c.bf16 %v599, %v598
        %v620 = vpack.c.bf16 %v601, %v600
        %v621 = vpack.c.bf16 %v603, %v602
        %v622 = vpack.c.bf16 %v605, %v604
        %v623 = vpack.c.bf16 %v607, %v606
        %v625 = vlaneseq
        %v626 = vshrl.u32 %v625, 7
        %v627 = vsub.s32 0, %v626
        %v628 = vrot.slane %v318, %v627
        %v634 = vunpack.c.l.b16 %v298
        %v635 = vunpack.c.l.b16 %v299
        %v636 = vunpack.c.l.b16 %v300
        %v637 = vunpack.c.l.b16 %v301
        %v638 = vpack.c.b16 %v635, %v634
        %v639 = vpack.c.b16 %v637, %v636
        %vm642 = vcmask 261120
        %v644 = vsel %vm642, %v608, 0
        %v647 = vsel %vm642, %v609, 0
        %v650 = vsel %vm642, %v610, 0
        %v653 = vsel %vm642, %v611, 0
        %v656 = vsel %vm642, %v612, 0
        %v659 = vsel %vm642, %v613, 0
        %v662 = vsel %vm642, %v614, 0
        %v665 = vsel %vm642, %v615, 0
        %v668 = vsel %vm642, %v616, 0
        %v671 = vsel %vm642, %v617, 0
        %v674 = vsel %vm642, %v618, 0
        %v677 = vsel %vm642, %v619, 0
        %v680 = vsel %vm642, %v620, 0
        %v683 = vsel %vm642, %v621, 0
        %v686 = vsel %vm642, %v622, 0
        %v689 = vsel %vm642, %v623, 0
        %691 = vmatprep.subr.bf16.mxu0 0
        %692 = vmatpush1.bf16.msra.mxu0 %v638
        %693 = vmatprep.subr.bf16.mxu0 0
        %694 = vmatpush1.bf16.msra.mxu0 %v639
        %695 = vmatprep.subr.bf16.mxu0 0
        %696 = vmatpush1.bf16.msra.mxu0 0
        %697 = vmatprep.subr.bf16.mxu0 0
        %698 = vmatpush1.bf16.msra.mxu0 0
        %699 = vmatprep.subr.bf16.mxu0 0
        %700 = vmatpush1.bf16.msra.mxu0 0
        %701 = vmatprep.subr.bf16.mxu0 0
        %702 = vmatpush1.bf16.msra.mxu0 0
        %703 = vmatprep.subr.bf16.mxu0 0
        %704 = vmatpush1.bf16.msra.mxu0 0
        %705 = vmatprep.subr.bf16.mxu0 0
        %706 = vmatpush1.bf16.msra.mxu0 0
        %707 = vmatprep.subr.bf16.mxu0 0
        %708 = vmatpush1.bf16.msra.mxu0 0
        %709 = vmatprep.subr.bf16.mxu0 0
        %710 = vmatpush1.bf16.msra.mxu0 0
        %711 = vmatprep.subr.bf16.mxu0 0
        %712 = vmatpush1.bf16.msra.mxu0 0
        %713 = vmatprep.subr.bf16.mxu0 0
        %714 = vmatpush1.bf16.msra.mxu0 0
        %715 = vmatprep.subr.bf16.mxu0 0
        %716 = vmatpush1.bf16.msra.mxu0 0
        %717 = vmatprep.subr.bf16.mxu0 0
        %718 = vmatpush1.bf16.msra.mxu0 0
        %719 = vmatprep.subr.bf16.mxu0 0
        %720 = vmatpush1.bf16.msra.mxu0 0
        %721 = vmatprep.subr.bf16.mxu0 0
        %722 = vmatpush1.bf16.msra.mxu0 0
        %723 = vmatprep.mubr.bf16.mxu0 0
        %724 = vmatmul.mubr.bf16.gmra.mrb[0].mxu0 %v644
        %v725 = vpop.f32.mrb[0].mxu0
        %v726 = vadd.f32 %v628, %v725
        %v727 = vpop.f32.mrb[0].mxu0
        %v728 = vpop.f32.mrb[0].mxu0
        %v729 = vadd.f32 %v628, %v728
        %v730 = vpop.f32.mrb[0].mxu0
        %731 = vmatprep.mubr.bf16.mxu0 0
        %732 = vmatmul.mubr.bf16.gmra.mrb[0].mxu0 %v647
        %v733 = vpop.f32.mrb[0].mxu0
        %v734 = vadd.f32 %v628, %v733
        %v735 = vpop.f32.mrb[0].mxu0
        %v736 = vpop.f32.mrb[0].mxu0
        %v737 = vadd.f32 %v628, %v736
        %v738 = vpop.f32.mrb[0].mxu0
        %739 = vmatprep.mubr.bf16.mxu0 0
        %740 = vmatmul.mubr.bf16.gmra.mrb[0].mxu0 %v650
        %v741 = vpop.f32.mrb[0].mxu0
        %v742 = vadd.f32 %v628, %v741
        %v743 = vpop.f32.mrb[0].mxu0
        %v744 = vpop.f32.mrb[0].mxu0
        %v745 = vadd.f32 %v628, %v744
        %v746 = vpop.f32.mrb[0].mxu0
        %747 = vmatprep.mubr.bf16.mxu0 0
        %748 = vmatmul.mubr.bf16.gmra.mrb[0].mxu0 %v653
        %v749 = vpop.f32.mrb[0].mxu0
        %v750 = vadd.f32 %v628, %v749
        %v751 = vpop.f32.mrb[0].mxu0
        %v752 = vpop.f32.mrb[0].mxu0
        %v753 = vadd.f32 %v628, %v752
        %v754 = vpop.f32.mrb[0].mxu0
        %755 = vmatprep.mubr.bf16.mxu0 0
        %756 = vmatmul.mubr.bf16.gmra.mrb[0].mxu0 %v656
        %v757 = vpop.f32.mrb[0].mxu0
        %v758 = vadd.f32 %v628, %v757
        %v759 = vpop.f32.mrb[0].mxu0
        %v760 = vpop.f32.mrb[0].mxu0
        %v761 = vadd.f32 %v628, %v760
        %v762 = vpop.f32.mrb[0].mxu0
        %763 = vmatprep.mubr.bf16.mxu0 0
        %764 = vmatmul.mubr.bf16.gmra.mrb[0].mxu0 %v659
        %v765 = vpop.f32.mrb[0].mxu0
        %v766 = vadd.f32 %v628, %v765
        %v767 = vpop.f32.mrb[0].mxu0
        %v768 = vpop.f32.mrb[0].mxu0
        %v769 = vadd.f32 %v628, %v768
        %v770 = vpop.f32.mrb[0].mxu0
        %771 = vmatprep.mubr.bf16.mxu0 0
        %772 = vmatmul.mubr.bf16.gmra.mrb[0].mxu0 %v662
        %v773 = vpop.f32.mrb[0].mxu0
        %v774 = vadd.f32 %v628, %v773
        %v775 = vpop.f32.mrb[0].mxu0
        %v776 = vpop.f32.mrb[0].mxu0
        %v777 = vadd.f32 %v628, %v776
        %v778 = vpop.f32.mrb[0].mxu0
        %779 = vmatprep.mubr.bf16.mxu0 0
        %780 = vmatmul.mubr.bf16.gmra.mrb[0].mxu0 %v665
        %v781 = vpop.f32.mrb[0].mxu0
        %v782 = vadd.f32 %v628, %v781
        %v783 = vpop.f32.mrb[0].mxu0
        %v784 = vpop.f32.mrb[0].mxu0
        %v785 = vadd.f32 %v628, %v784
        %v786 = vpop.f32.mrb[0].mxu0
        %787 = vmatprep.mubr.bf16.mxu0 0
        %788 = vmatmul.mubr.bf16.gmra.mrb[0].mxu0 %v668
        %v789 = vpop.f32.mrb[0].mxu0
        %v790 = vadd.f32 %v628, %v789
        %v791 = vpop.f32.mrb[0].mxu0
        %v792 = vpop.f32.mrb[0].mxu0
        %v793 = vadd.f32 %v628, %v792
        %v794 = vpop.f32.mrb[0].mxu0
        %795 = vmatprep.mubr.bf16.mxu0 0
        %796 = vmatmul.mubr.bf16.gmra.mrb[0].mxu0 %v671
        %v797 = vpop.f32.mrb[0].mxu0
        %v798 = vadd.f32 %v628, %v797
        %v799 = vpop.f32.mrb[0].mxu0
        %v800 = vpop.f32.mrb[0].mxu0
        %v801 = vadd.f32 %v628, %v800
        %v802 = vpop.f32.mrb[0].mxu0
        %803 = vmatprep.mubr.bf16.mxu0 0
        %804 = vmatmul.mubr.bf16.gmra.mrb[0].mxu0 %v674
        %v805 = vpop.f32.mrb[0].mxu0
        %v806 = vadd.f32 %v628, %v805
        %v807 = vpop.f32.mrb[0].mxu0
        %v808 = vpop.f32.mrb[0].mxu0
        %v809 = vadd.f32 %v628, %v808
        %v810 = vpop.f32.mrb[0].mxu0
        %811 = vmatprep.mubr.bf16.mxu0 0
        %812 = vmatmul.mubr.bf16.gmra.mrb[0].mxu0 %v677
        %v813 = vpop.f32.mrb[0].mxu0
        %v814 = vadd.f32 %v628, %v813
        %v815 = vpop.f32.mrb[0].mxu0
        %v816 = vpop.f32.mrb[0].mxu0
        %v817 = vadd.f32 %v628, %v816
        %v818 = vpop.f32.mrb[0].mxu0
        %819 = vmatprep.mubr.bf16.mxu0 0
        %820 = vmatmul.mubr.bf16.gmra.mrb[0].mxu0 %v680
        %v821 = vpop.f32.mrb[0].mxu0
        %v822 = vadd.f32 %v628, %v821
        %v823 = vpop.f32.mrb[0].mxu0
        %v824 = vpop.f32.mrb[0].mxu0
        %v825 = vadd.f32 %v628, %v824
        %v826 = vpop.f32.mrb[0].mxu0
        %827 = vmatprep.mubr.bf16.mxu0 0
        %828 = vmatmul.mubr.bf16.gmra.mrb[0].mxu0 %v683
        %v829 = vpop.f32.mrb[0].mxu0
        %v830 = vadd.f32 %v628, %v829
        %v831 = vpop.f32.mrb[0].mxu0
        %v832 = vpop.f32.mrb[0].mxu0
        %v833 = vadd.f32 %v628, %v832
        %v834 = vpop.f32.mrb[0].mxu0
        %835 = vmatprep.mubr.bf16.mxu0 0
        %836 = vmatmul.mubr.bf16.gmra.mrb[0].mxu0 %v686
        %v837 = vpop.f32.mrb[0].mxu0
        %v838 = vadd.f32 %v628, %v837
        %v839 = vpop.f32.mrb[0].mxu0
        %v840 = vpop.f32.mrb[0].mxu0
        %v841 = vadd.f32 %v628, %v840
        %v842 = vpop.f32.mrb[0].mxu0
        %843 = vmatprep.mubr.bf16.mxu0 0
        %844 = vmatmul.mubr.bf16.gmra.mrb[0].mxu0 %v689
        %v845 = vpop.f32.mrb[0].mxu0
        %v846 = vadd.f32 %v628, %v845
        %v847 = vpop.f32.mrb[0].mxu0
        %v848 = vpop.f32.mrb[0].mxu0
        %v849 = vadd.f32 %v628, %v848
        %v850 = vpop.f32.mrb[0].mxu0
        %851 = vdwg.mxu0
        %v852 = vmul.f32 %v726, 0.5
        %v853 = vmul.f32 %v729, 0.5
        %v854 = vmul.f32 %v734, 0.5
        %v855 = vmul.f32 %v737, 0.5
        %v856 = vmul.f32 %v742, 0.5
        %v857 = vmul.f32 %v745, 0.5
        %v858 = vmul.f32 %v750, 0.5
        %v859 = vmul.f32 %v753, 0.5
        %v860 = vmul.f32 %v758, 0.5
        %v861 = vmul.f32 %v761, 0.5
        %v862 = vmul.f32 %v766, 0.5
        %v863 = vmul.f32 %v769, 0.5
        %v864 = vmul.f32 %v774, 0.5
        %v865 = vmul.f32 %v777, 0.5
        %v866 = vmul.f32 %v782, 0.5
        %v867 = vmul.f32 %v785, 0.5
        %v868 = vmul.f32 %v790, 0.5
        %v869 = vmul.f32 %v793, 0.5
        %v870 = vmul.f32 %v798, 0.5
        %v871 = vmul.f32 %v801, 0.5
        %v872 = vmul.f32 %v806, 0.5
        %v873 = vmul.f32 %v809, 0.5
        %v874 = vmul.f32 %v814, 0.5
        %v875 = vmul.f32 %v817, 0.5
        %v876 = vmul.f32 %v822, 0.5
        %v877 = vmul.f32 %v825, 0.5
        %v878 = vmul.f32 %v830, 0.5
        %v879 = vmul.f32 %v833, 0.5
        %v880 = vmul.f32 %v838, 0.5
        %v881 = vmul.f32 %v841, 0.5
        %v882 = vmul.f32 %v846, 0.5
        %v883 = vmul.f32 %v849, 0.5
        %v884 = vmul.f32 %v726, 0.044715
        %v885 = vmul.f32 %v729, 0.044715
        %v886 = vmul.f32 %v734, 0.044715
        %v887 = vmul.f32 %v737, 0.044715
        %v888 = vmul.f32 %v742, 0.044715
        %v889 = vmul.f32 %v745, 0.044715
        %v890 = vmul.f32 %v750, 0.044715
        %v891 = vmul.f32 %v753, 0.044715
        %v892 = vmul.f32 %v758, 0.044715
        %v893 = vmul.f32 %v761, 0.044715
        %v894 = vmul.f32 %v766, 0.044715
        %v895 = vmul.f32 %v769, 0.044715
        %v896 = vmul.f32 %v774, 0.044715
        %v897 = vmul.f32 %v777, 0.044715
        %v898 = vmul.f32 %v782, 0.044715
        %v899 = vmul.f32 %v785, 0.044715
        %v900 = vmul.f32 %v790, 0.044715
        %v901 = vmul.f32 %v793, 0.044715
        %v902 = vmul.f32 %v798, 0.044715
        %v903 = vmul.f32 %v801, 0.044715
        %v904 = vmul.f32 %v806, 0.044715
        %v905 = vmul.f32 %v809, 0.044715
        %v906 = vmul.f32 %v814, 0.044715
        %v907 = vmul.f32 %v817, 0.044715
        %v908 = vmul.f32 %v822, 0.044715
        %v909 = vmul.f32 %v825, 0.044715
        %v910 = vmul.f32 %v830, 0.044715
        %v911 = vmul.f32 %v833, 0.044715
        %v912 = vmul.f32 %v838, 0.044715
        %v913 = vmul.f32 %v841, 0.044715
        %v914 = vmul.f32 %v846, 0.044715
        %v915 = vmul.f32 %v849, 0.044715
        %v916 = vmul.f32 %v884, %v726
        %v917 = vmul.f32 %v885, %v729
        %v918 = vmul.f32 %v886, %v734
        %v919 = vmul.f32 %v887, %v737
        %v920 = vmul.f32 %v888, %v742
        %v921 = vmul.f32 %v889, %v745
        %v922 = vmul.f32 %v890, %v750
        %v923 = vmul.f32 %v891, %v753
        %v924 = vmul.f32 %v892, %v758
        %v925 = vmul.f32 %v893, %v761
        %v926 = vmul.f32 %v894, %v766
        %v927 = vmul.f32 %v895, %v769
        %v928 = vmul.f32 %v896, %v774
        %v929 = vmul.f32 %v897, %v777
        %v930 = vmul.f32 %v898, %v782
        %v931 = vmul.f32 %v899, %v785
        %v932 = vmul.f32 %v900, %v790
        %v933 = vmul.f32 %v901, %v793
        %v934 = vmul.f32 %v902, %v798
        %v935 = vmul.f32 %v903, %v801
        %v936 = vmul.f32 %v904, %v806
        %v937 = vmul.f32 %v905, %v809
        %v938 = vmul.f32 %v906, %v814
        %v939 = vmul.f32 %v907, %v817
        %v940 = vmul.f32 %v908, %v822
        %v941 = vmul.f32 %v909, %v825
        %v942 = vmul.f32 %v910, %v830
        %v943 = vmul.f32 %v911, %v833
        %v944 = vmul.f32 %v912, %v838
        %v945 = vmul.f32 %v913, %v841
        %v946 = vmul.f32 %v914, %v846
        %v947 = vmul.f32 %v915, %v849
        %v948 = vmul.f32 %v916, %v726
        %v949 = vmul.f32 %v917, %v729
        %v950 = vmul.f32 %v918, %v734
        %v951 = vmul.f32 %v919, %v737
        %v952 = vmul.f32 %v920, %v742
        %v953 = vmul.f32 %v921, %v745
        %v954 = vmul.f32 %v922, %v750
        %v955 = vmul.f32 %v923, %v753
        %v956 = vmul.f32 %v924, %v758
        %v957 = vmul.f32 %v925, %v761
        %v958 = vmul.f32 %v926, %v766
        %v959 = vmul.f32 %v927, %v769
        %v960 = vmul.f32 %v928, %v774
        %v961 = vmul.f32 %v929, %v777
        %v962 = vmul.f32 %v930, %v782
        %v963 = vmul.f32 %v931, %v785
        %v964 = vmul.f32 %v932, %v790
        %v965 = vmul.f32 %v933, %v793
        %v966 = vmul.f32 %v934, %v798
        %v967 = vmul.f32 %v935, %v801
        %v968 = vmul.f32 %v936, %v806
        %v969 = vmul.f32 %v937, %v809
        %v970 = vmul.f32 %v938, %v814
        %v971 = vmul.f32 %v939, %v817
        %v972 = vmul.f32 %v940, %v822
        %v973 = vmul.f32 %v941, %v825
        %v974 = vmul.f32 %v942, %v830
        %v975 = vmul.f32 %v943, %v833
        %v976 = vmul.f32 %v944, %v838
        %v977 = vmul.f32 %v945, %v841
        %v978 = vmul.f32 %v946, %v846
        %v979 = vmul.f32 %v947, %v849
        %v980 = vadd.f32 %v726, %v948
        %v981 = vadd.f32 %v729, %v949
        %v982 = vadd.f32 %v734, %v950
        %v983 = vadd.f32 %v737, %v951
        %v984 = vadd.f32 %v742, %v952
        %v985 = vadd.f32 %v745, %v953
        %v986 = vadd.f32 %v750, %v954
        %v987 = vadd.f32 %v753, %v955
        %v988 = vadd.f32 %v758, %v956
        %v989 = vadd.f32 %v761, %v957
        %v990 = vadd.f32 %v766, %v958
        %v991 = vadd.f32 %v769, %v959
        %v992 = vadd.f32 %v774, %v960
        %v993 = vadd.f32 %v777, %v961
        %v994 = vadd.f32 %v782, %v962
        %v995 = vadd.f32 %v785, %v963
        %v996 = vadd.f32 %v790, %v964
        %v997 = vadd.f32 %v793, %v965
        %v998 = vadd.f32 %v798, %v966
        %v999 = vadd.f32 %v801, %v967
        %v1000 = vadd.f32 %v806, %v968
        %v1001 = vadd.f32 %v809, %v969
        %v1002 = vadd.f32 %v814, %v970
        %v1003 = vadd.f32 %v817, %v971
        %v1004 = vadd.f32 %v822, %v972
        %v1005 = vadd.f32 %v825, %v973
        %v1006 = vadd.f32 %v830, %v974
        %v1007 = vadd.f32 %v833, %v975
        %v1008 = vadd.f32 %v838, %v976
        %v1009 = vadd.f32 %v841, %v977
        %v1010 = vadd.f32 %v846, %v978
        %v1011 = vadd.f32 %v849, %v979
        %v1012 = vmul.f32 %v980, 0.7978846
        %v1013 = vmul.f32 %v981, 0.7978846
        %v1014 = vmul.f32 %v982, 0.7978846
        %v1015 = vmul.f32 %v983, 0.7978846
        %v1016 = vmul.f32 %v984, 0.7978846
        %v1017 = vmul.f32 %v985, 0.7978846
        %v1018 = vmul.f32 %v986, 0.7978846
        %v1019 = vmul.f32 %v987, 0.7978846
        %v1020 = vmul.f32 %v988, 0.7978846
        %v1021 = vmul.f32 %v989, 0.7978846
        %v1022 = vmul.f32 %v990, 0.7978846
        %v1023 = vmul.f32 %v991, 0.7978846
        %v1024 = vmul.f32 %v992, 0.7978846
        %v1025 = vmul.f32 %v993, 0.7978846
        %v1026 = vmul.f32 %v994, 0.7978846
        %v1027 = vmul.f32 %v995, 0.7978846
        %v1028 = vmul.f32 %v996, 0.7978846
        %v1029 = vmul.f32 %v997, 0.7978846
        %v1030 = vmul.f32 %v998, 0.7978846
        %v1031 = vmul.f32 %v999, 0.7978846
        %v1032 = vmul.f32 %v1000, 0.7978846
        %v1033 = vmul.f32 %v1001, 0.7978846
        %v1034 = vmul.f32 %v1002, 0.7978846
        %v1035 = vmul.f32 %v1003, 0.7978846
        %v1036 = vmul.f32 %v1004, 0.7978846
        %v1037 = vmul.f32 %v1005, 0.7978846
        %v1038 = vmul.f32 %v1006, 0.7978846
        %v1039 = vmul.f32 %v1007, 0.7978846
        %v1040 = vmul.f32 %v1008, 0.7978846
        %v1041 = vmul.f32 %v1009, 0.7978846
        %v1042 = vmul.f32 %v1010, 0.7978846
        %v1043 = vmul.f32 %v1011, 0.7978846
        %v1044 = vtanh.pop %v1012
        %v1045 = vtanh.pop %v1013
        %v1046 = vtanh.pop %v1014
        %v1047 = vtanh.pop %v1015
        %v1048 = vtanh.pop %v1016
        %v1049 = vtanh.pop %v1017
        %v1050 = vtanh.pop %v1018
        %v1051 = vtanh.pop %v1019
        %v1052 = vtanh.pop %v1020
        %v1053 = vtanh.pop %v1021
        %v1054 = vtanh.pop %v1022
        %v1055 = vtanh.pop %v1023
        %v1056 = vtanh.pop %v1024
        %v1057 = vtanh.pop %v1025
        %v1058 = vtanh.pop %v1026
        %v1059 = vtanh.pop %v1027
        %v1060 = vtanh.pop %v1028
        %v1061 = vtanh.pop %v1029
        %v1062 = vtanh.pop %v1030
        %v1063 = vtanh.pop %v1031
        %v1064 = vtanh.pop %v1032
        %v1065 = vtanh.pop %v1033
        %v1066 = vtanh.pop %v1034
        %v1067 = vtanh.pop %v1035
        %v1068 = vtanh.pop %v1036
        %v1069 = vtanh.pop %v1037
        %v1070 = vtanh.pop %v1038
        %v1071 = vtanh.pop %v1039
        %v1072 = vtanh.pop %v1040
        %v1073 = vtanh.pop %v1041
        %v1074 = vtanh.pop %v1042
        %v1075 = vtanh.pop %v1043
        %v1076 = vadd.f32 %v1044, 1.0
        %v1077 = vadd.f32 %v1045, 1.0
        %v1078 = vadd.f32 %v1046, 1.0
        %v1079 = vadd.f32 %v1047, 1.0
        %v1080 = vadd.f32 %v1048, 1.0
        %v1081 = vadd.f32 %v1049, 1.0
        %v1082 = vadd.f32 %v1050, 1.0
        %v1083 = vadd.f32 %v1051, 1.0
        %v1084 = vadd.f32 %v1052, 1.0
        %v1085 = vadd.f32 %v1053, 1.0
        %v1086 = vadd.f32 %v1054, 1.0
        %v1087 = vadd.f32 %v1055, 1.0
        %v1088 = vadd.f32 %v1056, 1.0
        %v1089 = vadd.f32 %v1057, 1.0
        %v1090 = vadd.f32 %v1058, 1.0
        %v1091 = vadd.f32 %v1059, 1.0
        %v1092 = vadd.f32 %v1060, 1.0
        %v1093 = vadd.f32 %v1061, 1.0
        %v1094 = vadd.f32 %v1062, 1.0
        %v1095 = vadd.f32 %v1063, 1.0
        %v1096 = vadd.f32 %v1064, 1.0
        %v1097 = vadd.f32 %v1065, 1.0
        %v1098 = vadd.f32 %v1066, 1.0
        %v1099 = vadd.f32 %v1067, 1.0
        %v1100 = vadd.f32 %v1068, 1.0
        %v1101 = vadd.f32 %v1069, 1.0
        %v1102 = vadd.f32 %v1070, 1.0
        %v1103 = vadd.f32 %v1071, 1.0
        %v1104 = vadd.f32 %v1072, 1.0
        %v1105 = vadd.f32 %v1073, 1.0
        %v1106 = vadd.f32 %v1074, 1.0
        %v1107 = vadd.f32 %v1075, 1.0
        %v1108 = vmul.f32 %v852, %v1076
        %v1109 = vmul.f32 %v853, %v1077
        %v1110 = vmul.f32 %v854, %v1078
        %v1111 = vmul.f32 %v855, %v1079
        %v1112 = vmul.f32 %v856, %v1080
        %v1113 = vmul.f32 %v857, %v1081
        %v1114 = vmul.f32 %v858, %v1082
        %v1115 = vmul.f32 %v859, %v1083
        %v1116 = vmul.f32 %v860, %v1084
        %v1117 = vmul.f32 %v861, %v1085
        %v1118 = vmul.f32 %v862, %v1086
        %v1119 = vmul.f32 %v863, %v1087
        %v1120 = vmul.f32 %v864, %v1088
        %v1121 = vmul.f32 %v865, %v1089
        %v1122 = vmul.f32 %v866, %v1090
        %v1123 = vmul.f32 %v867, %v1091
        %v1124 = vmul.f32 %v868, %v1092
        %v1125 = vmul.f32 %v869, %v1093
        %v1126 = vmul.f32 %v870, %v1094
        %v1127 = vmul.f32 %v871, %v1095
        %v1128 = vmul.f32 %v872, %v1096
        %v1129 = vmul.f32 %v873, %v1097
        %v1130 = vmul.f32 %v874, %v1098
        %v1131 = vmul.f32 %v875, %v1099
        %v1132 = vmul.f32 %v876, %v1100
        %v1133 = vmul.f32 %v877, %v1101
        %v1134 = vmul.f32 %v878, %v1102
        %v1135 = vmul.f32 %v879, %v1103
        %v1136 = vmul.f32 %v880, %v1104
        %v1137 = vmul.f32 %v881, %v1105
        %v1138 = vmul.f32 %v882, %v1106
        %v1139 = vmul.f32 %v883, %v1107
        %s1140 = scalar_lea.vmem [#allocation2], 16
        %1141 = vst [vmem:[%s1140] sm:$0xff] %v1108
        %1142 = vst [vmem:[%s1140 + $0x8] sm:$0xff] %v1109
        %1143 = vst [vmem:[%s1140 + $0x10] sm:$0xff] %v1110
        %1144 = vst [vmem:[%s1140 + $0x18] sm:$0xff] %v1111
        %1145 = vst [vmem:[%s1140 + $0x20] sm:$0xff] %v1112
        %1146 = vst [vmem:[%s1140 + $0x28] sm:$0xff] %v1113
        %1147 = vst [vmem:[%s1140 + $0x30] sm:$0xff] %v1114
        %1148 = vst [vmem:[%s1140 + $0x38] sm:$0xff] %v1115
        %1149 = vst [vmem:[%s1140 + $0x40] sm:$0xff] %v1116
        %1150 = vst [vmem:[%s1140 + $0x48] sm:$0xff] %v1117
        %1151 = vst [vmem:[%s1140 + $0x50] sm:$0xff] %v1118
        %1152 = vst [vmem:[%s1140 + $0x58] sm:$0xff] %v1119
        %1153 = vst [vmem:[%s1140 + $0x60] sm:$0xff] %v1120
        %1154 = vst [vmem:[%s1140 + $0x68] sm:$0xff] %v1121
        %1155 = vst [vmem:[%s1140 + $0x70] sm:$0xff] %v1122
        %1156 = vst [vmem:[%s1140 + $0x78] sm:$0xff] %v1123
        %1157 = vst [vmem:[%s1140 + $0x80] sm:$0xff] %v1124
        %1158 = vst [vmem:[%s1140 + $0x88] sm:$0xff] %v1125
        %1159 = vst [vmem:[%s1140 + $0x90] sm:$0xff] %v1126
        %1160 = vst [vmem:[%s1140 + $0x98] sm:$0xff] %v1127
        %1161 = vst [vmem:[%s1140 + $0xa0] sm:$0xff] %v1128
        %1162 = vst [vmem:[%s1140 + $0xa8] sm:$0xff] %v1129
        %1163 = vst [vmem:[%s1140 + $0xb0] sm:$0xff] %v1130
        %1164 = vst [vmem:[%s1140 + $0xb8] sm:$0xff] %v1131
        %1165 = vst [vmem:[%s1140 + $0xc0] sm:$0xff] %v1132
        %1166 = vst [vmem:[%s1140 + $0xc8] sm:$0xff] %v1133
        %1167 = vst [vmem:[%s1140 + $0xd0] sm:$0xff] %v1134
        %1168 = vst [vmem:[%s1140 + $0xd8] sm:$0xff] %v1135
        %1169 = vst [vmem:[%s1140 + $0xe0] sm:$0xff] %v1136
        %1170 = vst [vmem:[%s1140 + $0xe8] sm:$0xff] %v1137
        %1171 = vst [vmem:[%s1140 + $0xf0] sm:$0xff] %v1138
        %1172 = vst [vmem:[%s1140 + $0xf8] sm:$0xff] %v1139
        %v1173 = vld [vmem:[#allocation2] sm:$0xff]
        %v1174 = vld [vmem:[#allocation2 + $0x8] sm:$0xff]
        %v1175 = vld [vmem:[#allocation2 + $0x10] sm:$0xff]
        %v1176 = vld [vmem:[#allocation2 + $0x18] sm:$0xff]
        %v1177 = vld [vmem:[#allocation2 + $0x20] sm:$0xff]
        %v1178 = vld [vmem:[#allocation2 + $0x28] sm:$0xff]
        %v1179 = vld [vmem:[#allocation2 + $0x30] sm:$0xff]
        %v1180 = vld [vmem:[#allocation2 + $0x38] sm:$0xff]
        %v1181 = vld [vmem:[#allocation2 + $0x40] sm:$0xff]
        %v1182 = vld [vmem:[#allocation2 + $0x48] sm:$0xff]
        %v1183 = vld [vmem:[#allocation2 + $0x50] sm:$0xff]
        %v1184 = vld [vmem:[#allocation2 + $0x58] sm:$0xff]
        %v1185 = vld [vmem:[#allocation2 + $0x60] sm:$0xff]
        %v1186 = vld [vmem:[#allocation2 + $0x68] sm:$0xff]
        %v1187 = vld [vmem:[#allocation2 + $0x70] sm:$0xff]
        %v1188 = vld [vmem:[#allocation2 + $0x78] sm:$0xff]
        %v1189 = vrot.slane %v1173, 7
        %v1190 = vrot.slane %v1174, 7
        %v1191 = vrot.slane %v1175, 7
        %v1192 = vrot.slane %v1176, 7
        %v1193 = vrot.slane %v1177, 7
        %v1194 = vrot.slane %v1178, 7
        %v1195 = vrot.slane %v1179, 7
        %v1196 = vrot.slane %v1180, 7
        %v1197 = vrot.slane %v1181, 7
        %v1198 = vrot.slane %v1182, 7
        %v1199 = vrot.slane %v1183, 7
        %v1200 = vrot.slane %v1184, 7
        %v1201 = vrot.slane %v1185, 7
        %v1202 = vrot.slane %v1186, 7
        %v1203 = vrot.slane %v1187, 7
        %v1204 = vrot.slane %v1188, 7
        %vm1205 = vcmp.lt.s32.totalorder %v331, 1
        %v1206 = vsel %vm1205, %v1203, %v1204
        %v1207 = vsel %vm1205, %v1202, %v1203
        %v1208 = vsel %vm1205, %v1201, %v1202
        %v1209 = vsel %vm1205, %v1200, %v1201
        %v1210 = vsel %vm1205, %v1199, %v1200
        %v1211 = vsel %vm1205, %v1198, %v1199
        %v1212 = vsel %vm1205, %v1197, %v1198
        %v1213 = vsel %vm1205, %v1196, %v1197
        %v1214 = vsel %vm1205, %v1195, %v1196
        %v1215 = vsel %vm1205, %v1194, %v1195
        %v1216 = vsel %vm1205, %v1193, %v1194
        %v1217 = vsel %vm1205, %v1192, %v1193
        %v1218 = vsel %vm1205, %v1191, %v1192
        %v1219 = vsel %vm1205, %v1190, %v1191
        %v1220 = vsel %vm1205, %v1189, %v1190
        %v1221 = vsel %vm1205, %v1204, %v1189
        %v1222 = vsel %vm539, 1, 0
        %v1223 = vsel %vm540, 1, 0
        %v1224 = vsel %vm541, 1, 0
        %v1225 = vsel %vm542, 1, 0
        %v1226 = vsel %vm543, 1, 0
        %v1227 = vsel %vm544, 1, 0
        %v1228 = vsel %vm545, 1, 0
        %v1229 = vsel %vm546, 1, 0
        %v1230 = vsel %vm547, 1, 0
        %v1231 = vsel %vm548, 1, 0
        %v1232 = vsel %vm549, 1, 0
        %v1233 = vsel %vm550, 1, 0
        %v1234 = vsel %vm551, 1, 0
        %v1235 = vsel %vm552, 1, 0
        %v1236 = vsel %vm553, 1, 0
        %v1237 = vsel %vm554, 1, 0
        %vm1238 = vcmp.eq.s32.totalorder %v1222, 1
        %vm1239 = vcmp.eq.s32.totalorder %v1223, 1
        %vm1240 = vcmp.eq.s32.totalorder %v1224, 1
        %vm1241 = vcmp.eq.s32.totalorder %v1225, 1
        %vm1242 = vcmp.eq.s32.totalorder %v1226, 1
        %vm1243 = vcmp.eq.s32.totalorder %v1227, 1
        %vm1244 = vcmp.eq.s32.totalorder %v1228, 1
        %vm1245 = vcmp.eq.s32.totalorder %v1229, 1
        %vm1246 = vcmp.eq.s32.totalorder %v1230, 1
        %vm1247 = vcmp.eq.s32.totalorder %v1231, 1
        %vm1248 = vcmp.eq.s32.totalorder %v1232, 1
        %vm1249 = vcmp.eq.s32.totalorder %v1233, 1
        %vm1250 = vcmp.eq.s32.totalorder %v1234, 1
        %vm1251 = vcmp.eq.s32.totalorder %v1235, 1
        %vm1252 = vcmp.eq.s32.totalorder %v1236, 1
        %vm1253 = vcmp.eq.s32.totalorder %v1237, 1
        %v1254 = vsel %vm1238, %v1221, 0.0
        %v1255 = vsel %vm1239, %v1220, 0.0
        %v1256 = vsel %vm1240, %v1219, 0.0
        %v1257 = vsel %vm1241, %v1218, 0.0
        %v1258 = vsel %vm1242, %v1217, 0.0
        %v1259 = vsel %vm1243, %v1216, 0.0
        %v1260 = vsel %vm1244, %v1215, 0.0
        %v1261 = vsel %vm1245, %v1214, 0.0
        %v1262 = vsel %vm1246, %v1213, 0.0
        %v1263 = vsel %vm1247, %v1212, 0.0
        %v1264 = vsel %vm1248, %v1211, 0.0
        %v1265 = vsel %vm1249, %v1210, 0.0
        %v1266 = vsel %vm1250, %v1209, 0.0
        %v1267 = vsel %vm1251, %v1208, 0.0
        %v1268 = vsel %vm1252, %v1207, 0.0
        %v1269 = vsel %vm1253, %v1206, 0.0
        %v1270 = vrot.slane %v1173, 1
        %v1271 = vrot.slane %v1174, 1
        %v1272 = vrot.slane %v1175, 1
        %v1273 = vrot.slane %v1176, 1
        %v1274 = vrot.slane %v1177, 1
        %v1275 = vrot.slane %v1178, 1
        %v1276 = vrot.slane %v1179, 1
        %v1277 = vrot.slane %v1180, 1
        %v1278 = vrot.slane %v1181, 1
        %v1279 = vrot.slane %v1182, 1
        %v1280 = vrot.slane %v1183, 1
        %v1281 = vrot.slane %v1184, 1
        %v1282 = vrot.slane %v1185, 1
        %v1283 = vrot.slane %v1186, 1
        %v1284 = vrot.slane %v1187, 1
        %v1285 = vrot.slane %v1188, 1
        %vm1286 = vcmp.lt.s32.totalorder %v331, 7
        %v1287 = vsel %vm1286, %v1284, %v1285
        %v1288 = vsel %vm1286, %v1283, %v1284
        %v1289 = vsel %vm1286, %v1282, %v1283
        %v1290 = vsel %vm1286, %v1281, %v1282
        %v1291 = vsel %vm1286, %v1280, %v1281
        %v1292 = vsel %vm1286, %v1279, %v1280
        %v1293 = vsel %vm1286, %v1278, %v1279
        %v1294 = vsel %vm1286, %v1277, %v1278
        %v1295 = vsel %vm1286, %v1276, %v1277
        %v1296 = vsel %vm1286, %v1275, %v1276
        %v1297 = vsel %vm1286, %v1274, %v1275
        %v1298 = vsel %vm1286, %v1273, %v1274
        %v1299 = vsel %vm1286, %v1272, %v1273
        %v1300 = vsel %vm1286, %v1271, %v1272
        %v1301 = vsel %vm1286, %v1270, %v1271
        %v1302 = vsel %vm1286, %v1285, %v1270
        %v1303 = vsel %vm555, 1, 0
        %v1304 = vsel %vm556, 1, 0
        %v1305 = vsel %vm557, 1, 0
        %v1306 = vsel %vm558, 1, 0
        %v1307 = vsel %vm559, 1, 0
        %v1308 = vsel %vm560, 1, 0
        %v1309 = vsel %vm561, 1, 0
        %v1310 = vsel %vm562, 1, 0
        %v1311 = vsel %vm563, 1, 0
        %v1312 = vsel %vm564, 1, 0
        %v1313 = vsel %vm565, 1, 0
        %v1314 = vsel %vm566, 1, 0
        %v1315 = vsel %vm567, 1, 0
        %v1316 = vsel %vm568, 1, 0
        %v1317 = vsel %vm569, 1, 0
        %v1318 = vsel %vm570, 1, 0
        %vm1319 = vcmp.eq.s32.totalorder %v1303, 1
        %vm1320 = vcmp.eq.s32.totalorder %v1304, 1
        %vm1321 = vcmp.eq.s32.totalorder %v1305, 1
        %vm1322 = vcmp.eq.s32.totalorder %v1306, 1
        %vm1323 = vcmp.eq.s32.totalorder %v1307, 1
        %vm1324 = vcmp.eq.s32.totalorder %v1308, 1
        %vm1325 = vcmp.eq.s32.totalorder %v1309, 1
        %vm1326 = vcmp.eq.s32.totalorder %v1310, 1
        %vm1327 = vcmp.eq.s32.totalorder %v1311, 1
        %vm1328 = vcmp.eq.s32.totalorder %v1312, 1
        %vm1329 = vcmp.eq.s32.totalorder %v1313, 1
        %vm1330 = vcmp.eq.s32.totalorder %v1314, 1
        %vm1331 = vcmp.eq.s32.totalorder %v1315, 1
        %vm1332 = vcmp.eq.s32.totalorder %v1316, 1
        %vm1333 = vcmp.eq.s32.totalorder %v1317, 1
        %vm1334 = vcmp.eq.s32.totalorder %v1318, 1
        %v1335 = vsel %vm1319, %v1301, 0.0
        %v1336 = vsel %vm1320, %v1300, 0.0
        %v1337 = vsel %vm1321, %v1299, 0.0
        %v1338 = vsel %vm1322, %v1298, 0.0
        %v1339 = vsel %vm1323, %v1297, 0.0
        %v1340 = vsel %vm1324, %v1296, 0.0
        %v1341 = vsel %vm1325, %v1295, 0.0
        %v1342 = vsel %vm1326, %v1294, 0.0
        %v1343 = vsel %vm1327, %v1293, 0.0
        %v1344 = vsel %vm1328, %v1292, 0.0
        %v1345 = vsel %vm1329, %v1291, 0.0
        %v1346 = vsel %vm1330, %v1290, 0.0
        %v1347 = vsel %vm1331, %v1289, 0.0
        %v1348 = vsel %vm1332, %v1288, 0.0
        %v1349 = vsel %vm1333, %v1287, 0.0
        %v1350 = vsel %vm1334, %v1302, 0.0
        %v1351 = vlaneseq
        %v1352 = vshrl.u32 %v1351, 7
        %v1353 = vsub.s32 0, %v1352
        %v1354 = vrot.slane %v321, %v1353
        %v1355 = vmul.f32 %v1254, %v1354
        %v1356 = vmul.f32 %v1255, %v1354
        %v1357 = vmul.f32 %v1256, %v1354
        %v1358 = vmul.f32 %v1257, %v1354
        %v1359 = vmul.f32 %v1258, %v1354
        %v1360 = vmul.f32 %v1259, %v1354
        %v1361 = vmul.f32 %v1260, %v1354
        %v1362 = vmul.f32 %v1261, %v1354
        %v1363 = vmul.f32 %v1262, %v1354
        %v1364 = vmul.f32 %v1263, %v1354
        %v1365 = vmul.f32 %v1264, %v1354
        %v1366 = vmul.f32 %v1265, %v1354
        %v1367 = vmul.f32 %v1266, %v1354
        %v1368 = vmul.f32 %v1267, %v1354
        %v1369 = vmul.f32 %v1268, %v1354
        %v1370 = vmul.f32 %v1269, %v1354
        %v1371 = vadd.f32 %v1355, 0.0
        %v1372 = vadd.f32 %v1356, 0.0
        %v1373 = vadd.f32 %v1357, 0.0
        %v1374 = vadd.f32 %v1358, 0.0
        %v1375 = vadd.f32 %v1359, 0.0
        %v1376 = vadd.f32 %v1360, 0.0
        %v1377 = vadd.f32 %v1361, 0.0
        %v1378 = vadd.f32 %v1362, 0.0
        %v1379 = vadd.f32 %v1363, 0.0
        %v1380 = vadd.f32 %v1364, 0.0
        %v1381 = vadd.f32 %v1365, 0.0
        %v1382 = vadd.f32 %v1366, 0.0
        %v1383 = vadd.f32 %v1367, 0.0
        %v1384 = vadd.f32 %v1368, 0.0
        %v1385 = vadd.f32 %v1369, 0.0
        %v1386 = vadd.f32 %v1370, 0.0
        %v1387 = vlaneseq
        %v1388 = vshrl.u32 %v1387, 7
        %v1389 = vsub.s32 0, %v1388
        %v1390 = vrot.slane %v322, %v1389
        %v1391 = vmul.f32 %v1173, %v1390
        %v1392 = vmul.f32 %v1174, %v1390
        %v1393 = vmul.f32 %v1175, %v1390
        %v1394 = vmul.f32 %v1176, %v1390
        %v1395 = vmul.f32 %v1177, %v1390
        %v1396 = vmul.f32 %v1178, %v1390
        %v1397 = vmul.f32 %v1179, %v1390
        %v1398 = vmul.f32 %v1180, %v1390
        %v1399 = vmul.f32 %v1181, %v1390
        %v1400 = vmul.f32 %v1182, %v1390
        %v1401 = vmul.f32 %v1183, %v1390
        %v1402 = vmul.f32 %v1184, %v1390
        %v1403 = vmul.f32 %v1185, %v1390
        %v1404 = vmul.f32 %v1186, %v1390
        %v1405 = vmul.f32 %v1187, %v1390
        %v1406 = vmul.f32 %v1188, %v1390
        %v1407 = vadd.f32 %v1371, %v1391
        %v1408 = vadd.f32 %v1372, %v1392
        %v1409 = vadd.f32 %v1373, %v1393
        %v1410 = vadd.f32 %v1374, %v1394
        %v1411 = vadd.f32 %v1375, %v1395
        %v1412 = vadd.f32 %v1376, %v1396
        %v1413 = vadd.f32 %v1377, %v1397
        %v1414 = vadd.f32 %v1378, %v1398
        %v1415 = vadd.f32 %v1379, %v1399
        %v1416 = vadd.f32 %v1380, %v1400
        %v1417 = vadd.f32 %v1381, %v1401
        %v1418 = vadd.f32 %v1382, %v1402
        %v1419 = vadd.f32 %v1383, %v1403
        %v1420 = vadd.f32 %v1384, %v1404
        %v1421 = vadd.f32 %v1385, %v1405
        %v1422 = vadd.f32 %v1386, %v1406
        %v1423 = vlaneseq
        %v1424 = vshrl.u32 %v1423, 7
        %v1425 = vsub.s32 0, %v1424
        %v1426 = vrot.slane %v323, %v1425
        %v1427 = vmul.f32 %v1335, %v1426
        %v1428 = vmul.f32 %v1336, %v1426
        %v1429 = vmul.f32 %v1337, %v1426
        %v1430 = vmul.f32 %v1338, %v1426
        %v1431 = vmul.f32 %v1339, %v1426
        %v1432 = vmul.f32 %v1340, %v1426
        %v1433 = vmul.f32 %v1341, %v1426
        %v1434 = vmul.f32 %v1342, %v1426
        %v1435 = vmul.f32 %v1343, %v1426
        %v1436 = vmul.f32 %v1344, %v1426
        %v1437 = vmul.f32 %v1345, %v1426
        %v1438 = vmul.f32 %v1346, %v1426
        %v1439 = vmul.f32 %v1347, %v1426
        %v1440 = vmul.f32 %v1348, %v1426
        %v1441 = vmul.f32 %v1349, %v1426
        %v1442 = vmul.f32 %v1350, %v1426
        %v1443 = vadd.f32 %v1407, %v1427
        %v1444 = vadd.f32 %v1408, %v1428
        %v1445 = vadd.f32 %v1409, %v1429
        %v1446 = vadd.f32 %v1410, %v1430
        %v1447 = vadd.f32 %v1411, %v1431
        %v1448 = vadd.f32 %v1412, %v1432
        %v1449 = vadd.f32 %v1413, %v1433
        %v1450 = vadd.f32 %v1414, %v1434
        %v1451 = vadd.f32 %v1415, %v1435
        %v1452 = vadd.f32 %v1416, %v1436
        %v1453 = vadd.f32 %v1417, %v1437
        %v1454 = vadd.f32 %v1418, %v1438
        %v1455 = vadd.f32 %v1419, %v1439
        %v1456 = vadd.f32 %v1420, %v1440
        %v1457 = vadd.f32 %v1421, %v1441
        %v1458 = vadd.f32 %v1422, %v1442
        %v1459 = vld [vmem:[%s1140] sm:$0xff]
        %v1460 = vld [vmem:[%s1140 + $0x8] sm:$0xff]
        %v1461 = vld [vmem:[%s1140 + $0x10] sm:$0xff]
        %v1462 = vld [vmem:[%s1140 + $0x18] sm:$0xff]
        %v1463 = vld [vmem:[%s1140 + $0x20] sm:$0xff]
        %v1464 = vld [vmem:[%s1140 + $0x28] sm:$0xff]
        %v1465 = vld [vmem:[%s1140 + $0x30] sm:$0xff]
        %v1466 = vld [vmem:[%s1140 + $0x38] sm:$0xff]
        %v1467 = vld [vmem:[%s1140 + $0x40] sm:$0xff]
        %v1468 = vld [vmem:[%s1140 + $0x48] sm:$0xff]
        %v1469 = vld [vmem:[%s1140 + $0x50] sm:$0xff]
        %v1470 = vld [vmem:[%s1140 + $0x58] sm:$0xff]
        %v1471 = vld [vmem:[%s1140 + $0x60] sm:$0xff]
        %v1472 = vld [vmem:[%s1140 + $0x68] sm:$0xff]
        %v1473 = vld [vmem:[%s1140 + $0x70] sm:$0xff]
        %v1474 = vld [vmem:[%s1140 + $0x78] sm:$0xff]
        %v1475 = vrot.slane %v1459, 7
        %v1476 = vrot.slane %v1460, 7
        %v1477 = vrot.slane %v1461, 7
        %v1478 = vrot.slane %v1462, 7
        %v1479 = vrot.slane %v1463, 7
        %v1480 = vrot.slane %v1464, 7
        %v1481 = vrot.slane %v1465, 7
        %v1482 = vrot.slane %v1466, 7
        %v1483 = vrot.slane %v1467, 7
        %v1484 = vrot.slane %v1468, 7
        %v1485 = vrot.slane %v1469, 7
        %v1486 = vrot.slane %v1470, 7
        %v1487 = vrot.slane %v1471, 7
        %v1488 = vrot.slane %v1472, 7
        %v1489 = vrot.slane %v1473, 7
        %v1490 = vrot.slane %v1474, 7
        %v1491 = vsel %vm1205, %v1489, %v1490
        %v1492 = vsel %vm1205, %v1488, %v1489
        %v1493 = vsel %vm1205, %v1487, %v1488
        %v1494 = vsel %vm1205, %v1486, %v1487
        %v1495 = vsel %vm1205, %v1485, %v1486
        %v1496 = vsel %vm1205, %v1484, %v1485
        %v1497 = vsel %vm1205, %v1483, %v1484
        %v1498 = vsel %vm1205, %v1482, %v1483
        %v1499 = vsel %vm1205, %v1481, %v1482
        %v1500 = vsel %vm1205, %v1480, %v1481
        %v1501 = vsel %vm1205, %v1479, %v1480
        %v1502 = vsel %vm1205, %v1478, %v1479
        %v1503 = vsel %vm1205, %v1477, %v1478
        %v1504 = vsel %vm1205, %v1476, %v1477
        %v1505 = vsel %vm1205, %v1475, %v1476
        %v1506 = vsel %vm1205, %v1490, %v1475
        %v1507 = vsel %vm1238, %v1506, 0.0
        %v1508 = vsel %vm1239, %v1505, 0.0
        %v1509 = vsel %vm1240, %v1504, 0.0
        %v1510 = vsel %vm1241, %v1503, 0.0
        %v1511 = vsel %vm1242, %v1502, 0.0
        %v1512 = vsel %vm1243, %v1501, 0.0
        %v1513 = vsel %vm1244, %v1500, 0.0
        %v1514 = vsel %vm1245, %v1499, 0.0
        %v1515 = vsel %vm1246, %v1498, 0.0
        %v1516 = vsel %vm1247, %v1497, 0.0
        %v1517 = vsel %vm1248, %v1496, 0.0
        %v1518 = vsel %vm1249, %v1495, 0.0
        %v1519 = vsel %vm1250, %v1494, 0.0
        %v1520 = vsel %vm1251, %v1493, 0.0
        %v1521 = vsel %vm1252, %v1492, 0.0
        %v1522 = vsel %vm1253, %v1491, 0.0
        %v1523 = vrot.slane %v1459, 1
        %v1524 = vrot.slane %v1460, 1
        %v1525 = vrot.slane %v1461, 1
        %v1526 = vrot.slane %v1462, 1
        %v1527 = vrot.slane %v1463, 1
        %v1528 = vrot.slane %v1464, 1
        %v1529 = vrot.slane %v1465, 1
        %v1530 = vrot.slane %v1466, 1
        %v1531 = vrot.slane %v1467, 1
        %v1532 = vrot.slane %v1468, 1
        %v1533 = vrot.slane %v1469, 1
        %v1534 = vrot.slane %v1470, 1
        %v1535 = vrot.slane %v1471, 1
        %v1536 = vrot.slane %v1472, 1
        %v1537 = vrot.slane %v1473, 1
        %v1538 = vrot.slane %v1474, 1
        %v1539 = vsel %vm1286, %v1537, %v1538
        %v1540 = vsel %vm1286, %v1536, %v1537
        %v1541 = vsel %vm1286, %v1535, %v1536
        %v1542 = vsel %vm1286, %v1534, %v1535
        %v1543 = vsel %vm1286, %v1533, %v1534
        %v1544 = vsel %vm1286, %v1532, %v1533
        %v1545 = vsel %vm1286, %v1531, %v1532
        %v1546 = vsel %vm1286, %v1530, %v1531
        %v1547 = vsel %vm1286, %v1529, %v1530
        %v1548 = vsel %vm1286, %v1528, %v1529
        %v1549 = vsel %vm1286, %v1527, %v1528
        %v1550 = vsel %vm1286, %v1526, %v1527
        %v1551 = vsel %vm1286, %v1525, %v1526
        %v1552 = vsel %vm1286, %v1524, %v1525
        %v1553 = vsel %vm1286, %v1523, %v1524
        %v1554 = vsel %vm1286, %v1538, %v1523
        %v1555 = vsel %vm1319, %v1553, 0.0
        %v1556 = vsel %vm1320, %v1552, 0.0
        %v1557 = vsel %vm1321, %v1551, 0.0
        %v1558 = vsel %vm1322, %v1550, 0.0
        %v1559 = vsel %vm1323, %v1549, 0.0
        %v1560 = vsel %vm1324, %v1548, 0.0
        %v1561 = vsel %vm1325, %v1547, 0.0
        %v1562 = vsel %vm1326, %v1546, 0.0
        %v1563 = vsel %vm1327, %v1545, 0.0
        %v1564 = vsel %vm1328, %v1544, 0.0
        %v1565 = vsel %vm1329, %v1543, 0.0
        %v1566 = vsel %vm1330, %v1542, 0.0
        %v1567 = vsel %vm1331, %v1541, 0.0
        %v1568 = vsel %vm1332, %v1540, 0.0
        %v1569 = vsel %vm1333, %v1539, 0.0
        %v1570 = vsel %vm1334, %v1554, 0.0
        %v1571 = vlaneseq
        %v1572 = vshrl.u32 %v1571, 7
        %v1573 = vsub.s32 0, %v1572
        %v1574 = vrot.slane %v324, %v1573
        %v1575 = vmul.f32 %v1507, %v1574
        %v1576 = vmul.f32 %v1508, %v1574
        %v1577 = vmul.f32 %v1509, %v1574
        %v1578 = vmul.f32 %v1510, %v1574
        %v1579 = vmul.f32 %v1511, %v1574
        %v1580 = vmul.f32 %v1512, %v1574
        %v1581 = vmul.f32 %v1513, %v1574
        %v1582 = vmul.f32 %v1514, %v1574
        %v1583 = vmul.f32 %v1515, %v1574
        %v1584 = vmul.f32 %v1516, %v1574
        %v1585 = vmul.f32 %v1517, %v1574
        %v1586 = vmul.f32 %v1518, %v1574
        %v1587 = vmul.f32 %v1519, %v1574
        %v1588 = vmul.f32 %v1520, %v1574
        %v1589 = vmul.f32 %v1521, %v1574
        %v1590 = vmul.f32 %v1522, %v1574
        %v1591 = vadd.f32 %v1443, %v1575
        %v1592 = vadd.f32 %v1444, %v1576
        %v1593 = vadd.f32 %v1445, %v1577
        %v1594 = vadd.f32 %v1446, %v1578
        %v1595 = vadd.f32 %v1447, %v1579
        %v1596 = vadd.f32 %v1448, %v1580
        %v1597 = vadd.f32 %v1449, %v1581
        %v1598 = vadd.f32 %v1450, %v1582
        %v1599 = vadd.f32 %v1451, %v1583
        %v1600 = vadd.f32 %v1452, %v1584
        %v1601 = vadd.f32 %v1453, %v1585
        %v1602 = vadd.f32 %v1454, %v1586
        %v1603 = vadd.f32 %v1455, %v1587
        %v1604 = vadd.f32 %v1456, %v1588
        %v1605 = vadd.f32 %v1457, %v1589
        %v1606 = vadd.f32 %v1458, %v1590
        %v1607 = vlaneseq
        %v1608 = vshrl.u32 %v1607, 7
        %v1609 = vsub.s32 0, %v1608
        %v1610 = vrot.slane %v325, %v1609
        %v1611 = vmul.f32 %v1459, %v1610
        %v1612 = vmul.f32 %v1460, %v1610
        %v1613 = vmul.f32 %v1461, %v1610
        %v1614 = vmul.f32 %v1462, %v1610
        %v1615 = vmul.f32 %v1463, %v1610
        %v1616 = vmul.f32 %v1464, %v1610
        %v1617 = vmul.f32 %v1465, %v1610
        %v1618 = vmul.f32 %v1466, %v1610
        %v1619 = vmul.f32 %v1467, %v1610
        %v1620 = vmul.f32 %v1468, %v1610
        %v1621 = vmul.f32 %v1469, %v1610
        %v1622 = vmul.f32 %v1470, %v1610
        %v1623 = vmul.f32 %v1471, %v1610
        %v1624 = vmul.f32 %v1472, %v1610
        %v1625 = vmul.f32 %v1473, %v1610
        %v1626 = vmul.f32 %v1474, %v1610
        %v1627 = vadd.f32 %v1591, %v1611
        %v1628 = vadd.f32 %v1592, %v1612
        %v1629 = vadd.f32 %v1593, %v1613
        %v1630 = vadd.f32 %v1594, %v1614
        %v1631 = vadd.f32 %v1595, %v1615
        %v1632 = vadd.f32 %v1596, %v1616
        %v1633 = vadd.f32 %v1597, %v1617
        %v1634 = vadd.f32 %v1598, %v1618
        %v1635 = vadd.f32 %v1599, %v1619
        %v1636 = vadd.f32 %v1600, %v1620
        %v1637 = vadd.f32 %v1601, %v1621
        %v1638 = vadd.f32 %v1602, %v1622
        %v1639 = vadd.f32 %v1603, %v1623
        %v1640 = vadd.f32 %v1604, %v1624
        %v1641 = vadd.f32 %v1605, %v1625
        %v1642 = vadd.f32 %v1606, %v1626
        %v1643 = vlaneseq
        %v1644 = vshrl.u32 %v1643, 7
        %v1645 = vsub.s32 0, %v1644
        %v1646 = vrot.slane %v326, %v1645
        %v1647 = vmul.f32 %v1555, %v1646
        %v1648 = vmul.f32 %v1556, %v1646
        %v1649 = vmul.f32 %v1557, %v1646
        %v1650 = vmul.f32 %v1558, %v1646
        %v1651 = vmul.f32 %v1559, %v1646
        %v1652 = vmul.f32 %v1560, %v1646
        %v1653 = vmul.f32 %v1561, %v1646
        %v1654 = vmul.f32 %v1562, %v1646
        %v1655 = vmul.f32 %v1563, %v1646
        %v1656 = vmul.f32 %v1564, %v1646
        %v1657 = vmul.f32 %v1565, %v1646
        %v1658 = vmul.f32 %v1566, %v1646
        %v1659 = vmul.f32 %v1567, %v1646
        %v1660 = vmul.f32 %v1568, %v1646
        %v1661 = vmul.f32 %v1569, %v1646
        %v1662 = vmul.f32 %v1570, %v1646
        %v1663 = vadd.f32 %v1627, %v1647
        %v1664 = vadd.f32 %v1628, %v1648
        %v1665 = vadd.f32 %v1629, %v1649
        %v1666 = vadd.f32 %v1630, %v1650
        %v1667 = vadd.f32 %v1631, %v1651
        %v1668 = vadd.f32 %v1632, %v1652
        %v1669 = vadd.f32 %v1633, %v1653
        %v1670 = vadd.f32 %v1634, %v1654
        %v1671 = vadd.f32 %v1635, %v1655
        %v1672 = vadd.f32 %v1636, %v1656
        %v1673 = vadd.f32 %v1637, %v1657
        %v1674 = vadd.f32 %v1638, %v1658
        %v1675 = vadd.f32 %v1639, %v1659
        %v1676 = vadd.f32 %v1640, %v1660
        %v1677 = vadd.f32 %v1641, %v1661
        %v1678 = vadd.f32 %v1642, %v1662
        %s1679 = scalar_lea.vmem [#allocation2], 32
        %v1680 = vld [vmem:[%s1679] sm:$0xff]
        %v1681 = vld [vmem:[%s1679 + $0x8] sm:$0xff]
        %v1682 = vld [vmem:[%s1679 + $0x10] sm:$0xff]
        %v1683 = vld [vmem:[%s1679 + $0x18] sm:$0xff]
        %v1684 = vld [vmem:[%s1679 + $0x20] sm:$0xff]
        %v1685 = vld [vmem:[%s1679 + $0x28] sm:$0xff]
        %v1686 = vld [vmem:[%s1679 + $0x30] sm:$0xff]
        %v1687 = vld [vmem:[%s1679 + $0x38] sm:$0xff]
        %v1688 = vld [vmem:[%s1679 + $0x40] sm:$0xff]
        %v1689 = vld [vmem:[%s1679 + $0x48] sm:$0xff]
        %v1690 = vld [vmem:[%s1679 + $0x50] sm:$0xff]
        %v1691 = vld [vmem:[%s1679 + $0x58] sm:$0xff]
        %v1692 = vld [vmem:[%s1679 + $0x60] sm:$0xff]
        %v1693 = vld [vmem:[%s1679 + $0x68] sm:$0xff]
        %v1694 = vld [vmem:[%s1679 + $0x70] sm:$0xff]
        %v1695 = vld [vmem:[%s1679 + $0x78] sm:$0xff]
        %v1696 = vrot.slane %v1680, 7
        %v1697 = vrot.slane %v1681, 7
        %v1698 = vrot.slane %v1682, 7
        %v1699 = vrot.slane %v1683, 7
        %v1700 = vrot.slane %v1684, 7
        %v1701 = vrot.slane %v1685, 7
        %v1702 = vrot.slane %v1686, 7
        %v1703 = vrot.slane %v1687, 7
        %v1704 = vrot.slane %v1688, 7
        %v1705 = vrot.slane %v1689, 7
        %v1706 = vrot.slane %v1690, 7
        %v1707 = vrot.slane %v1691, 7
        %v1708 = vrot.slane %v1692, 7
        %v1709 = vrot.slane %v1693, 7
        %v1710 = vrot.slane %v1694, 7
        %v1711 = vrot.slane %v1695, 7
        %v1712 = vsel %vm1205, %v1710, %v1711
        %v1713 = vsel %vm1205, %v1709, %v1710
        %v1714 = vsel %vm1205, %v1708, %v1709
        %v1715 = vsel %vm1205, %v1707, %v1708
        %v1716 = vsel %vm1205, %v1706, %v1707
        %v1717 = vsel %vm1205, %v1705, %v1706
        %v1718 = vsel %vm1205, %v1704, %v1705
        %v1719 = vsel %vm1205, %v1703, %v1704
        %v1720 = vsel %vm1205, %v1702, %v1703
        %v1721 = vsel %vm1205, %v1701, %v1702
        %v1722 = vsel %vm1205, %v1700, %v1701
        %v1723 = vsel %vm1205, %v1699, %v1700
        %v1724 = vsel %vm1205, %v1698, %v1699
        %v1725 = vsel %vm1205, %v1697, %v1698
        %v1726 = vsel %vm1205, %v1696, %v1697
        %v1727 = vsel %vm1205, %v1711, %v1696
        %v1728 = vsel %vm1238, %v1727, 0.0
        %v1729 = vsel %vm1239, %v1726, 0.0
        %v1730 = vsel %vm1240, %v1725, 0.0
        %v1731 = vsel %vm1241, %v1724, 0.0
        %v1732 = vsel %vm1242, %v1723, 0.0
        %v1733 = vsel %vm1243, %v1722, 0.0
        %v1734 = vsel %vm1244, %v1721, 0.0
        %v1735 = vsel %vm1245, %v1720, 0.0
        %v1736 = vsel %vm1246, %v1719, 0.0
        %v1737 = vsel %vm1247, %v1718, 0.0
        %v1738 = vsel %vm1248, %v1717, 0.0
        %v1739 = vsel %vm1249, %v1716, 0.0
        %v1740 = vsel %vm1250, %v1715, 0.0
        %v1741 = vsel %vm1251, %v1714, 0.0
        %v1742 = vsel %vm1252, %v1713, 0.0
        %v1743 = vsel %vm1253, %v1712, 0.0
        %v1744 = vrot.slane %v1680, 1
        %v1745 = vrot.slane %v1681, 1
        %v1746 = vrot.slane %v1682, 1
        %v1747 = vrot.slane %v1683, 1
        %v1748 = vrot.slane %v1684, 1
        %v1749 = vrot.slane %v1685, 1
        %v1750 = vrot.slane %v1686, 1
        %v1751 = vrot.slane %v1687, 1
        %v1752 = vrot.slane %v1688, 1
        %v1753 = vrot.slane %v1689, 1
        %v1754 = vrot.slane %v1690, 1
        %v1755 = vrot.slane %v1691, 1
        %v1756 = vrot.slane %v1692, 1
        %v1757 = vrot.slane %v1693, 1
        %v1758 = vrot.slane %v1694, 1
        %v1759 = vrot.slane %v1695, 1
        %v1760 = vsel %vm1286, %v1758, %v1759
        %v1761 = vsel %vm1286, %v1757, %v1758
        %v1762 = vsel %vm1286, %v1756, %v1757
        %v1763 = vsel %vm1286, %v1755, %v1756
        %v1764 = vsel %vm1286, %v1754, %v1755
        %v1765 = vsel %vm1286, %v1753, %v1754
        %v1766 = vsel %vm1286, %v1752, %v1753
        %v1767 = vsel %vm1286, %v1751, %v1752
        %v1768 = vsel %vm1286, %v1750, %v1751
        %v1769 = vsel %vm1286, %v1749, %v1750
        %v1770 = vsel %vm1286, %v1748, %v1749
        %v1771 = vsel %vm1286, %v1747, %v1748
        %v1772 = vsel %vm1286, %v1746, %v1747
        %v1773 = vsel %vm1286, %v1745, %v1746
        %v1774 = vsel %vm1286, %v1744, %v1745
        %v1775 = vsel %vm1286, %v1759, %v1744
        %v1776 = vsel %vm1319, %v1774, 0.0
        %v1777 = vsel %vm1320, %v1773, 0.0
        %v1778 = vsel %vm1321, %v1772, 0.0
        %v1779 = vsel %vm1322, %v1771, 0.0
        %v1780 = vsel %vm1323, %v1770, 0.0
        %v1781 = vsel %vm1324, %v1769, 0.0
        %v1782 = vsel %vm1325, %v1768, 0.0
        %v1783 = vsel %vm1326, %v1767, 0.0
        %v1784 = vsel %vm1327, %v1766, 0.0
        %v1785 = vsel %vm1328, %v1765, 0.0
        %v1786 = vsel %vm1329, %v1764, 0.0
        %v1787 = vsel %vm1330, %v1763, 0.0
        %v1788 = vsel %vm1331, %v1762, 0.0
        %v1789 = vsel %vm1332, %v1761, 0.0
        %v1790 = vsel %vm1333, %v1760, 0.0
        %v1791 = vsel %vm1334, %v1775, 0.0
        %v1792 = vlaneseq
        %v1793 = vshrl.u32 %v1792, 7
        %v1794 = vsub.s32 0, %v1793
        %v1795 = vrot.slane %v327, %v1794
        %v1796 = vmul.f32 %v1728, %v1795
        %v1797 = vmul.f32 %v1729, %v1795
        %v1798 = vmul.f32 %v1730, %v1795
        %v1799 = vmul.f32 %v1731, %v1795
        %v1800 = vmul.f32 %v1732, %v1795
        %v1801 = vmul.f32 %v1733, %v1795
        %v1802 = vmul.f32 %v1734, %v1795
        %v1803 = vmul.f32 %v1735, %v1795
        %v1804 = vmul.f32 %v1736, %v1795
        %v1805 = vmul.f32 %v1737, %v1795
        %v1806 = vmul.f32 %v1738, %v1795
        %v1807 = vmul.f32 %v1739, %v1795
        %v1808 = vmul.f32 %v1740, %v1795
        %v1809 = vmul.f32 %v1741, %v1795
        %v1810 = vmul.f32 %v1742, %v1795
        %v1811 = vmul.f32 %v1743, %v1795
        %v1812 = vadd.f32 %v1663, %v1796
        %v1813 = vadd.f32 %v1664, %v1797
        %v1814 = vadd.f32 %v1665, %v1798
        %v1815 = vadd.f32 %v1666, %v1799
        %v1816 = vadd.f32 %v1667, %v1800
        %v1817 = vadd.f32 %v1668, %v1801
        %v1818 = vadd.f32 %v1669, %v1802
        %v1819 = vadd.f32 %v1670, %v1803
        %v1820 = vadd.f32 %v1671, %v1804
        %v1821 = vadd.f32 %v1672, %v1805
        %v1822 = vadd.f32 %v1673, %v1806
        %v1823 = vadd.f32 %v1674, %v1807
        %v1824 = vadd.f32 %v1675, %v1808
        %v1825 = vadd.f32 %v1676, %v1809
        %v1826 = vadd.f32 %v1677, %v1810
        %v1827 = vadd.f32 %v1678, %v1811
        %v1828 = vlaneseq
        %v1829 = vshrl.u32 %v1828, 7
        %v1830 = vsub.s32 0, %v1829
        %v1831 = vrot.slane %v328, %v1830
        %v1832 = vmul.f32 %v1680, %v1831
        %v1833 = vmul.f32 %v1681, %v1831
        %v1834 = vmul.f32 %v1682, %v1831
        %v1835 = vmul.f32 %v1683, %v1831
        %v1836 = vmul.f32 %v1684, %v1831
        %v1837 = vmul.f32 %v1685, %v1831
        %v1838 = vmul.f32 %v1686, %v1831
        %v1839 = vmul.f32 %v1687, %v1831
        %v1840 = vmul.f32 %v1688, %v1831
        %v1841 = vmul.f32 %v1689, %v1831
        %v1842 = vmul.f32 %v1690, %v1831
        %v1843 = vmul.f32 %v1691, %v1831
        %v1844 = vmul.f32 %v1692, %v1831
        %v1845 = vmul.f32 %v1693, %v1831
        %v1846 = vmul.f32 %v1694, %v1831
        %v1847 = vmul.f32 %v1695, %v1831
        %v1848 = vadd.f32 %v1812, %v1832
        %v1849 = vadd.f32 %v1813, %v1833
        %v1850 = vadd.f32 %v1814, %v1834
        %v1851 = vadd.f32 %v1815, %v1835
        %v1852 = vadd.f32 %v1816, %v1836
        %v1853 = vadd.f32 %v1817, %v1837
        %v1854 = vadd.f32 %v1818, %v1838
        %v1855 = vadd.f32 %v1819, %v1839
        %v1856 = vadd.f32 %v1820, %v1840
        %v1857 = vadd.f32 %v1821, %v1841
        %v1858 = vadd.f32 %v1822, %v1842
        %v1859 = vadd.f32 %v1823, %v1843
        %v1860 = vadd.f32 %v1824, %v1844
        %v1861 = vadd.f32 %v1825, %v1845
        %v1862 = vadd.f32 %v1826, %v1846
        %v1863 = vadd.f32 %v1827, %v1847
        %v1864 = vlaneseq
        %v1865 = vshrl.u32 %v1864, 7
        %v1866 = vsub.s32 0, %v1865
        %v1867 = vrot.slane %v329, %v1866
        %v1868 = vmul.f32 %v1776, %v1867
        %v1869 = vmul.f32 %v1777, %v1867
        %v1870 = vmul.f32 %v1778, %v1867
        %v1871 = vmul.f32 %v1779, %v1867
        %v1872 = vmul.f32 %v1780, %v1867
        %v1873 = vmul.f32 %v1781, %v1867
        %v1874 = vmul.f32 %v1782, %v1867
        %v1875 = vmul.f32 %v1783, %v1867
        %v1876 = vmul.f32 %v1784, %v1867
        %v1877 = vmul.f32 %v1785, %v1867
        %v1878 = vmul.f32 %v1786, %v1867
        %v1879 = vmul.f32 %v1787, %v1867
        %v1880 = vmul.f32 %v1788, %v1867
        %v1881 = vmul.f32 %v1789, %v1867
        %v1882 = vmul.f32 %v1790, %v1867
        %v1883 = vmul.f32 %v1791, %v1867
        %v1884 = vadd.f32 %v1848, %v1868
        %v1885 = vadd.f32 %v1849, %v1869
        %v1886 = vadd.f32 %v1850, %v1870
        %v1887 = vadd.f32 %v1851, %v1871
        %v1888 = vadd.f32 %v1852, %v1872
        %v1889 = vadd.f32 %v1853, %v1873
        %v1890 = vadd.f32 %v1854, %v1874
        %v1891 = vadd.f32 %v1855, %v1875
        %v1892 = vadd.f32 %v1856, %v1876
        %v1893 = vadd.f32 %v1857, %v1877
        %v1894 = vadd.f32 %v1858, %v1878
        %v1895 = vadd.f32 %v1859, %v1879
        %v1896 = vadd.f32 %v1860, %v1880
        %v1897 = vadd.f32 %v1861, %v1881
        %v1898 = vadd.f32 %v1862, %v1882
        %v1899 = vadd.f32 %v1863, %v1883
        %v1901 = vlaneseq
        %v1902 = vshrl.u32 %v1901, 7
        %v1903 = vsub.s32 0, %v1902
        %v1904 = vrot.slane %v319, %v1903
        %v1906 = vadd.f32 %v1884, %v1904
        %v1907 = vadd.f32 %v1885, %v1904
        %v1908 = vadd.f32 %v1886, %v1904
        %v1909 = vadd.f32 %v1887, %v1904
        %v1910 = vadd.f32 %v1888, %v1904
        %v1911 = vadd.f32 %v1889, %v1904
        %v1912 = vadd.f32 %v1890, %v1904
        %v1913 = vadd.f32 %v1891, %v1904
        %v1914 = vadd.f32 %v1892, %v1904
        %v1915 = vadd.f32 %v1893, %v1904
        %v1916 = vadd.f32 %v1894, %v1904
        %v1917 = vadd.f32 %v1895, %v1904
        %v1918 = vadd.f32 %v1896, %v1904
        %v1919 = vadd.f32 %v1897, %v1904
        %v1920 = vadd.f32 %v1898, %v1904
        %v1921 = vadd.f32 %v1899, %v1904
        %v1922 = vmul.f32 %v1906, 0.5
        %v1923 = vmul.f32 %v1907, 0.5
        %v1924 = vmul.f32 %v1908, 0.5
        %v1925 = vmul.f32 %v1909, 0.5
        %v1926 = vmul.f32 %v1910, 0.5
        %v1927 = vmul.f32 %v1911, 0.5
        %v1928 = vmul.f32 %v1912, 0.5
        %v1929 = vmul.f32 %v1913, 0.5
        %v1930 = vmul.f32 %v1914, 0.5
        %v1931 = vmul.f32 %v1915, 0.5
        %v1932 = vmul.f32 %v1916, 0.5
        %v1933 = vmul.f32 %v1917, 0.5
        %v1934 = vmul.f32 %v1918, 0.5
        %v1935 = vmul.f32 %v1919, 0.5
        %v1936 = vmul.f32 %v1920, 0.5
        %v1937 = vmul.f32 %v1921, 0.5
        %v1938 = vmul.f32 %v1906, 0.044715
        %v1939 = vmul.f32 %v1907, 0.044715
        %v1940 = vmul.f32 %v1908, 0.044715
        %v1941 = vmul.f32 %v1909, 0.044715
        %v1942 = vmul.f32 %v1910, 0.044715
        %v1943 = vmul.f32 %v1911, 0.044715
        %v1944 = vmul.f32 %v1912, 0.044715
        %v1945 = vmul.f32 %v1913, 0.044715
        %v1946 = vmul.f32 %v1914, 0.044715
        %v1947 = vmul.f32 %v1915, 0.044715
        %v1948 = vmul.f32 %v1916, 0.044715
        %v1949 = vmul.f32 %v1917, 0.044715
        %v1950 = vmul.f32 %v1918, 0.044715
        %v1951 = vmul.f32 %v1919, 0.044715
        %v1952 = vmul.f32 %v1920, 0.044715
        %v1953 = vmul.f32 %v1921, 0.044715
        %v1954 = vmul.f32 %v1938, %v1906
        %v1955 = vmul.f32 %v1939, %v1907
        %v1956 = vmul.f32 %v1940, %v1908
        %v1957 = vmul.f32 %v1941, %v1909
        %v1958 = vmul.f32 %v1942, %v1910
        %v1959 = vmul.f32 %v1943, %v1911
        %v1960 = vmul.f32 %v1944, %v1912
        %v1961 = vmul.f32 %v1945, %v1913
        %v1962 = vmul.f32 %v1946, %v1914
        %v1963 = vmul.f32 %v1947, %v1915
        %v1964 = vmul.f32 %v1948, %v1916
        %v1965 = vmul.f32 %v1949, %v1917
        %v1966 = vmul.f32 %v1950, %v1918
        %v1967 = vmul.f32 %v1951, %v1919
        %v1968 = vmul.f32 %v1952, %v1920
        %v1969 = vmul.f32 %v1953, %v1921
        %v1970 = vmul.f32 %v1954, %v1906
        %v1971 = vmul.f32 %v1955, %v1907
        %v1972 = vmul.f32 %v1956, %v1908
        %v1973 = vmul.f32 %v1957, %v1909
        %v1974 = vmul.f32 %v1958, %v1910
        %v1975 = vmul.f32 %v1959, %v1911
        %v1976 = vmul.f32 %v1960, %v1912
        %v1977 = vmul.f32 %v1961, %v1913
        %v1978 = vmul.f32 %v1962, %v1914
        %v1979 = vmul.f32 %v1963, %v1915
        %v1980 = vmul.f32 %v1964, %v1916
        %v1981 = vmul.f32 %v1965, %v1917
        %v1982 = vmul.f32 %v1966, %v1918
        %v1983 = vmul.f32 %v1967, %v1919
        %v1984 = vmul.f32 %v1968, %v1920
        %v1985 = vmul.f32 %v1969, %v1921
        %v1986 = vadd.f32 %v1906, %v1970
        %v1987 = vadd.f32 %v1907, %v1971
        %v1988 = vadd.f32 %v1908, %v1972
        %v1989 = vadd.f32 %v1909, %v1973
        %v1990 = vadd.f32 %v1910, %v1974
        %v1991 = vadd.f32 %v1911, %v1975
        %v1992 = vadd.f32 %v1912, %v1976
        %v1993 = vadd.f32 %v1913, %v1977
        %v1994 = vadd.f32 %v1914, %v1978
        %v1995 = vadd.f32 %v1915, %v1979
        %v1996 = vadd.f32 %v1916, %v1980
        %v1997 = vadd.f32 %v1917, %v1981
        %v1998 = vadd.f32 %v1918, %v1982
        %v1999 = vadd.f32 %v1919, %v1983
        %v2000 = vadd.f32 %v1920, %v1984
        %v2001 = vadd.f32 %v1921, %v1985
        %v2002 = vmul.f32 %v1986, 0.7978846
        %v2003 = vmul.f32 %v1987, 0.7978846
        %v2004 = vmul.f32 %v1988, 0.7978846
        %v2005 = vmul.f32 %v1989, 0.7978846
        %v2006 = vmul.f32 %v1990, 0.7978846
        %v2007 = vmul.f32 %v1991, 0.7978846
        %v2008 = vmul.f32 %v1992, 0.7978846
        %v2009 = vmul.f32 %v1993, 0.7978846
        %v2010 = vmul.f32 %v1994, 0.7978846
        %v2011 = vmul.f32 %v1995, 0.7978846
        %v2012 = vmul.f32 %v1996, 0.7978846
        %v2013 = vmul.f32 %v1997, 0.7978846
        %v2014 = vmul.f32 %v1998, 0.7978846
        %v2015 = vmul.f32 %v1999, 0.7978846
        %v2016 = vmul.f32 %v2000, 0.7978846
        %v2017 = vmul.f32 %v2001, 0.7978846
        %v2018 = vtanh.pop %v2002
        %v2019 = vtanh.pop %v2003
        %v2020 = vtanh.pop %v2004
        %v2021 = vtanh.pop %v2005
        %v2022 = vtanh.pop %v2006
        %v2023 = vtanh.pop %v2007
        %v2024 = vtanh.pop %v2008
        %v2025 = vtanh.pop %v2009
        %v2026 = vtanh.pop %v2010
        %v2027 = vtanh.pop %v2011
        %v2028 = vtanh.pop %v2012
        %v2029 = vtanh.pop %v2013
        %v2030 = vtanh.pop %v2014
        %v2031 = vtanh.pop %v2015
        %v2032 = vtanh.pop %v2016
        %v2033 = vtanh.pop %v2017
        %v2034 = vadd.f32 %v2018, 1.0
        %v2035 = vadd.f32 %v2019, 1.0
        %v2036 = vadd.f32 %v2020, 1.0
        %v2037 = vadd.f32 %v2021, 1.0
        %v2038 = vadd.f32 %v2022, 1.0
        %v2039 = vadd.f32 %v2023, 1.0
        %v2040 = vadd.f32 %v2024, 1.0
        %v2041 = vadd.f32 %v2025, 1.0
        %v2042 = vadd.f32 %v2026, 1.0
        %v2043 = vadd.f32 %v2027, 1.0
        %v2044 = vadd.f32 %v2028, 1.0
        %v2045 = vadd.f32 %v2029, 1.0
        %v2046 = vadd.f32 %v2030, 1.0
        %v2047 = vadd.f32 %v2031, 1.0
        %v2048 = vadd.f32 %v2032, 1.0
        %v2049 = vadd.f32 %v2033, 1.0
        %v2050 = vmul.f32 %v1922, %v2034
        %v2051 = vmul.f32 %v1923, %v2035
        %v2052 = vmul.f32 %v1924, %v2036
        %v2053 = vmul.f32 %v1925, %v2037
        %v2054 = vmul.f32 %v1926, %v2038
        %v2055 = vmul.f32 %v1927, %v2039
        %v2056 = vmul.f32 %v1928, %v2040
        %v2057 = vmul.f32 %v1929, %v2041
        %v2058 = vmul.f32 %v1930, %v2042
        %v2059 = vmul.f32 %v1931, %v2043
        %v2060 = vmul.f32 %v1932, %v2044
        %v2061 = vmul.f32 %v1933, %v2045
        %v2062 = vmul.f32 %v1934, %v2046
        %v2063 = vmul.f32 %v1935, %v2047
        %v2064 = vmul.f32 %v1936, %v2048
        %v2065 = vmul.f32 %v1937, %v2049
        %v2066 = vpack.c.bf16 %v2051, %v2050
        %v2067 = vpack.c.bf16 %v2053, %v2052
        %v2068 = vpack.c.bf16 %v2055, %v2054
        %v2069 = vpack.c.bf16 %v2057, %v2056
        %v2070 = vpack.c.bf16 %v2059, %v2058
        %v2071 = vpack.c.bf16 %v2061, %v2060
        %v2072 = vpack.c.bf16 %v2063, %v2062
        %v2073 = vpack.c.bf16 %v2065, %v2064
        %v2075 = vlaneseq
        %v2076 = vshrl.u32 %v2075, 7
        %v2077 = vsub.s32 0, %v2076
        %v2078 = vrot.slane %v320, %v2077
        %v2096 = vunpack.c.l.b16 %v302
        %v2097 = vunpack.c.l.b16 %v303
        %v2098 = vunpack.c.l.b16 %v304
        %v2099 = vunpack.c.l.b16 %v305
        %v2100 = vunpack.c.l.b16 %v306
        %v2101 = vunpack.c.l.b16 %v307
        %v2102 = vunpack.c.l.b16 %v308
        %v2103 = vunpack.c.l.b16 %v309
        %v2104 = vunpack.c.l.b16 %v310
        %v2105 = vunpack.c.l.b16 %v311
        %v2106 = vunpack.c.l.b16 %v312
        %v2107 = vunpack.c.l.b16 %v313
        %v2108 = vunpack.c.l.b16 %v314
        %v2109 = vunpack.c.l.b16 %v315
        %v2110 = vunpack.c.l.b16 %v316
        %v2111 = vunpack.c.l.b16 %v317
        %v2112 = vpack.c.b16 %v2097, %v2096
        %v2113 = vpack.c.b16 %v2099, %v2098
        %v2114 = vpack.c.b16 %v2101, %v2100
        %v2115 = vpack.c.b16 %v2103, %v2102
        %v2116 = vpack.c.b16 %v2105, %v2104
        %v2117 = vpack.c.b16 %v2107, %v2106
        %v2118 = vpack.c.b16 %v2109, %v2108
        %v2119 = vpack.c.b16 %v2111, %v2110
        %2128 = vmatprep.subr.bf16.mxu0 0
        %2129 = vmatpush1.bf16.msra.mxu0 %v2112
        %2130 = vmatprep.subr.bf16.mxu0 0
        %2131 = vmatpush1.bf16.msra.mxu0 %v2113
        %2132 = vmatprep.subr.bf16.mxu0 0
        %2133 = vmatpush1.bf16.msra.mxu0 %v2114
        %2134 = vmatprep.subr.bf16.mxu0 0
        %2135 = vmatpush1.bf16.msra.mxu0 %v2115
        %2136 = vmatprep.subr.bf16.mxu0 0
        %2137 = vmatpush1.bf16.msra.mxu0 %v2116
        %2138 = vmatprep.subr.bf16.mxu0 0
        %2139 = vmatpush1.bf16.msra.mxu0 %v2117
        %2140 = vmatprep.subr.bf16.mxu0 0
        %2141 = vmatpush1.bf16.msra.mxu0 %v2118
        %2142 = vmatprep.subr.bf16.mxu0 0
        %2143 = vmatpush1.bf16.msra.mxu0 %v2119
        %2144 = vmatprep.subr.bf16.mxu0 0
        %2145 = vmatpush1.bf16.msra.mxu0 0
        %2146 = vmatprep.subr.bf16.mxu0 0
        %2147 = vmatpush1.bf16.msra.mxu0 0
        %2148 = vmatprep.subr.bf16.mxu0 0
        %2149 = vmatpush1.bf16.msra.mxu0 0
        %2150 = vmatprep.subr.bf16.mxu0 0
        %2151 = vmatpush1.bf16.msra.mxu0 0
        %2152 = vmatprep.subr.bf16.mxu0 0
        %2153 = vmatpush1.bf16.msra.mxu0 0
        %2154 = vmatprep.subr.bf16.mxu0 0
        %2155 = vmatpush1.bf16.msra.mxu0 0
        %2156 = vmatprep.subr.bf16.mxu0 0
        %2157 = vmatpush1.bf16.msra.mxu0 0
        %2158 = vmatprep.subr.bf16.mxu0 0
        %2159 = vmatpush1.bf16.msra.mxu0 0
        %2160 = vmatprep.mubr.bf16.mxu0 0
        %2161 = vmatmul.mubr.bf16.gmra.mrb[0].mxu0 %v2066
        %v2162 = vpop.f32.mrb[0].mxu0
        %v2163 = vadd.f32 %v2078, %v2162
        %v2164 = vpop.f32.mrb[0].mxu0
        %v2165 = vpop.f32.mrb[0].mxu0
        %v2166 = vadd.f32 %v2078, %v2165
        %v2167 = vpop.f32.mrb[0].mxu0
        %2168 = vmatprep.mubr.bf16.mxu0 0
        %2169 = vmatmul.mubr.bf16.gmra.mrb[0].mxu0 %v2067
        %v2170 = vpop.f32.mrb[0].mxu0
        %v2171 = vadd.f32 %v2078, %v2170
        %v2172 = vpop.f32.mrb[0].mxu0
        %v2173 = vpop.f32.mrb[0].mxu0
        %v2174 = vadd.f32 %v2078, %v2173
        %v2175 = vpop.f32.mrb[0].mxu0
        %2176 = vmatprep.mubr.bf16.mxu0 0
        %2177 = vmatmul.mubr.bf16.gmra.mrb[0].mxu0 %v2068
        %v2178 = vpop.f32.mrb[0].mxu0
        %v2179 = vadd.f32 %v2078, %v2178
        %v2180 = vpop.f32.mrb[0].mxu0
        %v2181 = vpop.f32.mrb[0].mxu0
        %v2182 = vadd.f32 %v2078, %v2181
        %v2183 = vpop.f32.mrb[0].mxu0
        %2184 = vmatprep.mubr.bf16.mxu0 0
        %2185 = vmatmul.mubr.bf16.gmra.mrb[0].mxu0 %v2069
        %v2186 = vpop.f32.mrb[0].mxu0
        %v2187 = vadd.f32 %v2078, %v2186
        %v2188 = vpop.f32.mrb[0].mxu0
        %v2189 = vpop.f32.mrb[0].mxu0
        %v2190 = vadd.f32 %v2078, %v2189
        %v2191 = vpop.f32.mrb[0].mxu0
        %2192 = vmatprep.mubr.bf16.mxu0 0
        %2193 = vmatmul.mubr.bf16.gmra.mrb[0].mxu0 %v2070
        %v2194 = vpop.f32.mrb[0].mxu0
        %v2195 = vadd.f32 %v2078, %v2194
        %v2196 = vpop.f32.mrb[0].mxu0
        %v2197 = vpop.f32.mrb[0].mxu0
        %v2198 = vadd.f32 %v2078, %v2197
        %v2199 = vpop.f32.mrb[0].mxu0
        %2200 = vmatprep.mubr.bf16.mxu0 0
        %2201 = vmatmul.mubr.bf16.gmra.mrb[0].mxu0 %v2071
        %v2202 = vpop.f32.mrb[0].mxu0
        %v2203 = vadd.f32 %v2078, %v2202
        %v2204 = vpop.f32.mrb[0].mxu0
        %v2205 = vpop.f32.mrb[0].mxu0
        %v2206 = vadd.f32 %v2078, %v2205
        %v2207 = vpop.f32.mrb[0].mxu0
        %2208 = vmatprep.mubr.bf16.mxu0 0
        %2209 = vmatmul.mubr.bf16.gmra.mrb[0].mxu0 %v2072
        %v2210 = vpop.f32.mrb[0].mxu0
        %v2211 = vadd.f32 %v2078, %v2210
        %v2212 = vpop.f32.mrb[0].mxu0
        %v2213 = vpop.f32.mrb[0].mxu0
        %v2214 = vadd.f32 %v2078, %v2213
        %v2215 = vpop.f32.mrb[0].mxu0
        %2216 = vmatprep.mubr.bf16.mxu0 0
        %2217 = vmatmul.mubr.bf16.gmra.mrb[0].mxu0 %v2073
        %v2218 = vpop.f32.mrb[0].mxu0
        %v2219 = vadd.f32 %v2078, %v2218
        %v2220 = vpop.f32.mrb[0].mxu0
        %v2221 = vpop.f32.mrb[0].mxu0
        %v2222 = vadd.f32 %v2078, %v2221
        %v2223 = vpop.f32.mrb[0].mxu0
        %2224 = vdwg.mxu0
        %v2225 = vld [vmem:[%s266] sm:$0xff]
        %v2226 = vld [vmem:[%s266 + $0x8] sm:$0xff]
        %v2227 = vld [vmem:[%s266 + $0x10] sm:$0xff]
        %v2228 = vld [vmem:[%s266 + $0x18] sm:$0xff]
        %v2229 = vld [vmem:[%s266 + $0x20] sm:$0xff]
        %v2230 = vld [vmem:[%s266 + $0x28] sm:$0xff]
        %v2231 = vld [vmem:[%s266 + $0x30] sm:$0xff]
        %v2232 = vld [vmem:[%s266 + $0x38] sm:$0xff]
        %v2233 = vld [vmem:[%s266 + $0x40] sm:$0xff]
        %v2234 = vld [vmem:[%s266 + $0x48] sm:$0xff]
        %v2235 = vld [vmem:[%s266 + $0x50] sm:$0xff]
        %v2236 = vld [vmem:[%s266 + $0x58] sm:$0xff]
        %v2237 = vld [vmem:[%s266 + $0x60] sm:$0xff]
        %v2238 = vld [vmem:[%s266 + $0x68] sm:$0xff]
        %v2239 = vld [vmem:[%s266 + $0x70] sm:$0xff]
        %v2240 = vld [vmem:[%s266 + $0x78] sm:$0xff]
        %v2241 = vadd.f32 %v2225, %v2163
        %v2242 = vadd.f32 %v2226, %v2166
        %v2243 = vadd.f32 %v2227, %v2171
        %v2244 = vadd.f32 %v2228, %v2174
        %v2245 = vadd.f32 %v2229, %v2179
        %v2246 = vadd.f32 %v2230, %v2182
        %v2247 = vadd.f32 %v2231, %v2187
        %v2248 = vadd.f32 %v2232, %v2190
        %v2249 = vadd.f32 %v2233, %v2195
        %v2250 = vadd.f32 %v2234, %v2198
        %v2251 = vadd.f32 %v2235, %v2203
        %v2252 = vadd.f32 %v2236, %v2206
        %v2253 = vadd.f32 %v2237, %v2211
        %v2254 = vadd.f32 %v2238, %v2214
        %v2255 = vadd.f32 %v2239, %v2219
        %v2256 = vadd.f32 %v2240, %v2222
        %2257 = vst.msk [vmem:[%s296] sm:$0xff] %vm642, %v2241
        %2258 = vst.msk [vmem:[%s296 + $0x8] sm:$0xff] %vm642, %v2242
        %2259 = vst.msk [vmem:[%s296 + $0x10] sm:$0xff] %vm642, %v2243
        %2260 = vst.msk [vmem:[%s296 + $0x18] sm:$0xff] %vm642, %v2244
        %2261 = vst.msk [vmem:[%s296 + $0x20] sm:$0xff] %vm642, %v2245
        %2262 = vst.msk [vmem:[%s296 + $0x28] sm:$0xff] %vm642, %v2246
        %2263 = vst.msk [vmem:[%s296 + $0x30] sm:$0xff] %vm642, %v2247
        %2264 = vst.msk [vmem:[%s296 + $0x38] sm:$0xff] %vm642, %v2248
        %2265 = vst.msk [vmem:[%s296 + $0x40] sm:$0xff] %vm642, %v2249
        %2266 = vst.msk [vmem:[%s296 + $0x48] sm:$0xff] %vm642, %v2250
        %2267 = vst.msk [vmem:[%s296 + $0x50] sm:$0xff] %vm642, %v2251
        %2268 = vst.msk [vmem:[%s296 + $0x58] sm:$0xff] %vm642, %v2252
        %2269 = vst.msk [vmem:[%s296 + $0x60] sm:$0xff] %vm642, %v2253
        %2270 = vst.msk [vmem:[%s296 + $0x68] sm:$0xff] %vm642, %v2254
        %2271 = vst.msk [vmem:[%s296 + $0x70] sm:$0xff] %vm642, %v2255
        %2272 = vst.msk [vmem:[%s296 + $0x78] sm:$0xff] %vm642, %v2256
        %s2273 = scalar_lea.vmem [#allocation2], 128
        %v2274 = vld [vmem:[%s2273] sm:$0xff]
        %v2275 = vld [vmem:[%s2273 + $0x8] sm:$0xff]
        %v2276 = vld [vmem:[%s2273 + $0x10] sm:$0xff]
        %v2277 = vld [vmem:[%s2273 + $0x18] sm:$0xff]
        %v2278 = vld [vmem:[%s2273 + $0x20] sm:$0xff]
        %v2279 = vld [vmem:[%s2273 + $0x28] sm:$0xff]
        %v2280 = vld [vmem:[%s2273 + $0x30] sm:$0xff]
        %v2281 = vld [vmem:[%s2273 + $0x38] sm:$0xff]
        %v2282 = vld [vmem:[%s2273 + $0x40] sm:$0xff]
        %v2283 = vld [vmem:[%s2273 + $0x48] sm:$0xff]
        %v2284 = vld [vmem:[%s2273 + $0x50] sm:$0xff]
        %v2285 = vld [vmem:[%s2273 + $0x58] sm:$0xff]
        %v2286 = vld [vmem:[%s2273 + $0x60] sm:$0xff]
        %v2287 = vld [vmem:[%s2273 + $0x68] sm:$0xff]
        %v2288 = vld [vmem:[%s2273 + $0x70] sm:$0xff]
        %v2289 = vld [vmem:[%s2273 + $0x78] sm:$0xff]
        %v2290 = vrot.slane %v2274, 7
        %v2291 = vrot.slane %v2275, 7
        %v2292 = vrot.slane %v2276, 7
        %v2293 = vrot.slane %v2277, 7
        %v2294 = vrot.slane %v2278, 7
        %v2295 = vrot.slane %v2279, 7
        %v2296 = vrot.slane %v2280, 7
        %v2297 = vrot.slane %v2281, 7
        %v2298 = vrot.slane %v2282, 7
        %v2299 = vrot.slane %v2283, 7
        %v2300 = vrot.slane %v2284, 7
        %v2301 = vrot.slane %v2285, 7
        %v2302 = vrot.slane %v2286, 7
        %v2303 = vrot.slane %v2287, 7
        %v2304 = vrot.slane %v2288, 7
        %v2305 = vrot.slane %v2289, 7
        %v2306 = vsel %vm1205, %v2304, %v2305
        %v2307 = vsel %vm1205, %v2303, %v2304
        %v2308 = vsel %vm1205, %v2302, %v2303
        %v2309 = vsel %vm1205, %v2301, %v2302
        %v2310 = vsel %vm1205, %v2300, %v2301
        %v2311 = vsel %vm1205, %v2299, %v2300
        %v2312 = vsel %vm1205, %v2298, %v2299
        %v2313 = vsel %vm1205, %v2297, %v2298
        %v2314 = vsel %vm1205, %v2296, %v2297
        %v2315 = vsel %vm1205, %v2295, %v2296
        %v2316 = vsel %vm1205, %v2294, %v2295
        %v2317 = vsel %vm1205, %v2293, %v2294
        %v2318 = vsel %vm1205, %v2292, %v2293
        %v2319 = vsel %vm1205, %v2291, %v2292
        %v2320 = vsel %vm1205, %v2290, %v2291
        %v2321 = vsel %vm1205, %v2305, %v2290
        %v2322 = vsel %vm1238, %v2321, 0.0
        %v2323 = vsel %vm1239, %v2320, 0.0
        %v2324 = vsel %vm1240, %v2319, 0.0
        %v2325 = vsel %vm1241, %v2318, 0.0
        %v2326 = vsel %vm1242, %v2317, 0.0
        %v2327 = vsel %vm1243, %v2316, 0.0
        %v2328 = vsel %vm1244, %v2315, 0.0
        %v2329 = vsel %vm1245, %v2314, 0.0
        %v2330 = vsel %vm1246, %v2313, 0.0
        %v2331 = vsel %vm1247, %v2312, 0.0
        %v2332 = vsel %vm1248, %v2311, 0.0
        %v2333 = vsel %vm1249, %v2310, 0.0
        %v2334 = vsel %vm1250, %v2309, 0.0
        %v2335 = vsel %vm1251, %v2308, 0.0
        %v2336 = vsel %vm1252, %v2307, 0.0
        %v2337 = vsel %vm1253, %v2306, 0.0
        %v2338 = vrot.slane %v2274, 1
        %v2339 = vrot.slane %v2275, 1
        %v2340 = vrot.slane %v2276, 1
        %v2341 = vrot.slane %v2277, 1
        %v2342 = vrot.slane %v2278, 1
        %v2343 = vrot.slane %v2279, 1
        %v2344 = vrot.slane %v2280, 1
        %v2345 = vrot.slane %v2281, 1
        %v2346 = vrot.slane %v2282, 1
        %v2347 = vrot.slane %v2283, 1
        %v2348 = vrot.slane %v2284, 1
        %v2349 = vrot.slane %v2285, 1
        %v2350 = vrot.slane %v2286, 1
        %v2351 = vrot.slane %v2287, 1
        %v2352 = vrot.slane %v2288, 1
        %v2353 = vrot.slane %v2289, 1
        %v2354 = vsel %vm1286, %v2352, %v2353
        %v2355 = vsel %vm1286, %v2351, %v2352
        %v2356 = vsel %vm1286, %v2350, %v2351
        %v2357 = vsel %vm1286, %v2349, %v2350
        %v2358 = vsel %vm1286, %v2348, %v2349
        %v2359 = vsel %vm1286, %v2347, %v2348
        %v2360 = vsel %vm1286, %v2346, %v2347
        %v2361 = vsel %vm1286, %v2345, %v2346
        %v2362 = vsel %vm1286, %v2344, %v2345
        %v2363 = vsel %vm1286, %v2343, %v2344
        %v2364 = vsel %vm1286, %v2342, %v2343
        %v2365 = vsel %vm1286, %v2341, %v2342
        %v2366 = vsel %vm1286, %v2340, %v2341
        %v2367 = vsel %vm1286, %v2339, %v2340
        %v2368 = vsel %vm1286, %v2338, %v2339
        %v2369 = vsel %vm1286, %v2353, %v2338
        %v2370 = vsel %vm1319, %v2368, 0.0
        %v2371 = vsel %vm1320, %v2367, 0.0
        %v2372 = vsel %vm1321, %v2366, 0.0
        %v2373 = vsel %vm1322, %v2365, 0.0
        %v2374 = vsel %vm1323, %v2364, 0.0
        %v2375 = vsel %vm1324, %v2363, 0.0
        %v2376 = vsel %vm1325, %v2362, 0.0
        %v2377 = vsel %vm1326, %v2361, 0.0
        %v2378 = vsel %vm1327, %v2360, 0.0
        %v2379 = vsel %vm1328, %v2359, 0.0
        %v2380 = vsel %vm1329, %v2358, 0.0
        %v2381 = vsel %vm1330, %v2357, 0.0
        %v2382 = vsel %vm1331, %v2356, 0.0
        %v2383 = vsel %vm1332, %v2355, 0.0
        %v2384 = vsel %vm1333, %v2354, 0.0
        %v2385 = vsel %vm1334, %v2369, 0.0
        %v2386 = vmul.f32 %v2322, %v1354
        %v2387 = vmul.f32 %v2323, %v1354
        %v2388 = vmul.f32 %v2324, %v1354
        %v2389 = vmul.f32 %v2325, %v1354
        %v2390 = vmul.f32 %v2326, %v1354
        %v2391 = vmul.f32 %v2327, %v1354
        %v2392 = vmul.f32 %v2328, %v1354
        %v2393 = vmul.f32 %v2329, %v1354
        %v2394 = vmul.f32 %v2330, %v1354
        %v2395 = vmul.f32 %v2331, %v1354
        %v2396 = vmul.f32 %v2332, %v1354
        %v2397 = vmul.f32 %v2333, %v1354
        %v2398 = vmul.f32 %v2334, %v1354
        %v2399 = vmul.f32 %v2335, %v1354
        %v2400 = vmul.f32 %v2336, %v1354
        %v2401 = vmul.f32 %v2337, %v1354
        %v2402 = vadd.f32 %v2386, 0.0
        %v2403 = vadd.f32 %v2387, 0.0
        %v2404 = vadd.f32 %v2388, 0.0
        %v2405 = vadd.f32 %v2389, 0.0
        %v2406 = vadd.f32 %v2390, 0.0
        %v2407 = vadd.f32 %v2391, 0.0
        %v2408 = vadd.f32 %v2392, 0.0
        %v2409 = vadd.f32 %v2393, 0.0
        %v2410 = vadd.f32 %v2394, 0.0
        %v2411 = vadd.f32 %v2395, 0.0
        %v2412 = vadd.f32 %v2396, 0.0
        %v2413 = vadd.f32 %v2397, 0.0
        %v2414 = vadd.f32 %v2398, 0.0
        %v2415 = vadd.f32 %v2399, 0.0
        %v2416 = vadd.f32 %v2400, 0.0
        %v2417 = vadd.f32 %v2401, 0.0
        %v2418 = vmul.f32 %v2274, %v1390
        %v2419 = vmul.f32 %v2275, %v1390
        %v2420 = vmul.f32 %v2276, %v1390
        %v2421 = vmul.f32 %v2277, %v1390
        %v2422 = vmul.f32 %v2278, %v1390
        %v2423 = vmul.f32 %v2279, %v1390
        %v2424 = vmul.f32 %v2280, %v1390
        %v2425 = vmul.f32 %v2281, %v1390
        %v2426 = vmul.f32 %v2282, %v1390
        %v2427 = vmul.f32 %v2283, %v1390
        %v2428 = vmul.f32 %v2284, %v1390
        %v2429 = vmul.f32 %v2285, %v1390
        %v2430 = vmul.f32 %v2286, %v1390
        %v2431 = vmul.f32 %v2287, %v1390
        %v2432 = vmul.f32 %v2288, %v1390
        %v2433 = vmul.f32 %v2289, %v1390
        %v2434 = vadd.f32 %v2402, %v2418
        %v2435 = vadd.f32 %v2403, %v2419
        %v2436 = vadd.f32 %v2404, %v2420
        %v2437 = vadd.f32 %v2405, %v2421
        %v2438 = vadd.f32 %v2406, %v2422
        %v2439 = vadd.f32 %v2407, %v2423
        %v2440 = vadd.f32 %v2408, %v2424
        %v2441 = vadd.f32 %v2409, %v2425
        %v2442 = vadd.f32 %v2410, %v2426
        %v2443 = vadd.f32 %v2411, %v2427
        %v2444 = vadd.f32 %v2412, %v2428
        %v2445 = vadd.f32 %v2413, %v2429
        %v2446 = vadd.f32 %v2414, %v2430
        %v2447 = vadd.f32 %v2415, %v2431
        %v2448 = vadd.f32 %v2416, %v2432
        %v2449 = vadd.f32 %v2417, %v2433
        %v2450 = vmul.f32 %v2370, %v1426
        %v2451 = vmul.f32 %v2371, %v1426
        %v2452 = vmul.f32 %v2372, %v1426
        %v2453 = vmul.f32 %v2373, %v1426
        %v2454 = vmul.f32 %v2374, %v1426
        %v2455 = vmul.f32 %v2375, %v1426
        %v2456 = vmul.f32 %v2376, %v1426
        %v2457 = vmul.f32 %v2377, %v1426
        %v2458 = vmul.f32 %v2378, %v1426
        %v2459 = vmul.f32 %v2379, %v1426
        %v2460 = vmul.f32 %v2380, %v1426
        %v2461 = vmul.f32 %v2381, %v1426
        %v2462 = vmul.f32 %v2382, %v1426
        %v2463 = vmul.f32 %v2383, %v1426
        %v2464 = vmul.f32 %v2384, %v1426
        %v2465 = vmul.f32 %v2385, %v1426
        %v2466 = vadd.f32 %v2434, %v2450
        %v2467 = vadd.f32 %v2435, %v2451
        %v2468 = vadd.f32 %v2436, %v2452
        %v2469 = vadd.f32 %v2437, %v2453
        %v2470 = vadd.f32 %v2438, %v2454
        %v2471 = vadd.f32 %v2439, %v2455
        %v2472 = vadd.f32 %v2440, %v2456
        %v2473 = vadd.f32 %v2441, %v2457
        %v2474 = vadd.f32 %v2442, %v2458
        %v2475 = vadd.f32 %v2443, %v2459
        %v2476 = vadd.f32 %v2444, %v2460
        %v2477 = vadd.f32 %v2445, %v2461
        %v2478 = vadd.f32 %v2446, %v2462
        %v2479 = vadd.f32 %v2447, %v2463
        %v2480 = vadd.f32 %v2448, %v2464
        %v2481 = vadd.f32 %v2449, %v2465
        %s2482 = scalar_lea.vmem [#allocation2], 144
        %v2483 = vld [vmem:[%s2482] sm:$0xff]
        %v2484 = vld [vmem:[%s2482 + $0x8] sm:$0xff]
        %v2485 = vld [vmem:[%s2482 + $0x10] sm:$0xff]
        %v2486 = vld [vmem:[%s2482 + $0x18] sm:$0xff]
        %v2487 = vld [vmem:[%s2482 + $0x20] sm:$0xff]
        %v2488 = vld [vmem:[%s2482 + $0x28] sm:$0xff]
        %v2489 = vld [vmem:[%s2482 + $0x30] sm:$0xff]
        %v2490 = vld [vmem:[%s2482 + $0x38] sm:$0xff]
        %v2491 = vld [vmem:[%s2482 + $0x40] sm:$0xff]
        %v2492 = vld [vmem:[%s2482 + $0x48] sm:$0xff]
        %v2493 = vld [vmem:[%s2482 + $0x50] sm:$0xff]
        %v2494 = vld [vmem:[%s2482 + $0x58] sm:$0xff]
        %v2495 = vld [vmem:[%s2482 + $0x60] sm:$0xff]
        %v2496 = vld [vmem:[%s2482 + $0x68] sm:$0xff]
        %v2497 = vld [vmem:[%s2482 + $0x70] sm:$0xff]
        %v2498 = vld [vmem:[%s2482 + $0x78] sm:$0xff]
        %v2499 = vrot.slane %v2483, 7
        %v2500 = vrot.slane %v2484, 7
        %v2501 = vrot.slane %v2485, 7
        %v2502 = vrot.slane %v2486, 7
        %v2503 = vrot.slane %v2487, 7
        %v2504 = vrot.slane %v2488, 7
        %v2505 = vrot.slane %v2489, 7
        %v2506 = vrot.slane %v2490, 7
        %v2507 = vrot.slane %v2491, 7
        %v2508 = vrot.slane %v2492, 7
        %v2509 = vrot.slane %v2493, 7
        %v2510 = vrot.slane %v2494, 7
        %v2511 = vrot.slane %v2495, 7
        %v2512 = vrot.slane %v2496, 7
        %v2513 = vrot.slane %v2497, 7
        %v2514 = vrot.slane %v2498, 7
        %v2515 = vsel %vm1205, %v2513, %v2514
        %v2516 = vsel %vm1205, %v2512, %v2513
        %v2517 = vsel %vm1205, %v2511, %v2512
        %v2518 = vsel %vm1205, %v2510, %v2511
        %v2519 = vsel %vm1205, %v2509, %v2510
        %v2520 = vsel %vm1205, %v2508, %v2509
        %v2521 = vsel %vm1205, %v2507, %v2508
        %v2522 = vsel %vm1205, %v2506, %v2507
        %v2523 = vsel %vm1205, %v2505, %v2506
        %v2524 = vsel %vm1205, %v2504, %v2505
        %v2525 = vsel %vm1205, %v2503, %v2504
        %v2526 = vsel %vm1205, %v2502, %v2503
        %v2527 = vsel %vm1205, %v2501, %v2502
        %v2528 = vsel %vm1205, %v2500, %v2501
        %v2529 = vsel %vm1205, %v2499, %v2500
        %v2530 = vsel %vm1205, %v2514, %v2499
        %v2531 = vsel %vm1238, %v2530, 0.0
        %v2532 = vsel %vm1239, %v2529, 0.0
        %v2533 = vsel %vm1240, %v2528, 0.0
        %v2534 = vsel %vm1241, %v2527, 0.0
        %v2535 = vsel %vm1242, %v2526, 0.0
        %v2536 = vsel %vm1243, %v2525, 0.0
        %v2537 = vsel %vm1244, %v2524, 0.0
        %v2538 = vsel %vm1245, %v2523, 0.0
        %v2539 = vsel %vm1246, %v2522, 0.0
        %v2540 = vsel %vm1247, %v2521, 0.0
        %v2541 = vsel %vm1248, %v2520, 0.0
        %v2542 = vsel %vm1249, %v2519, 0.0
        %v2543 = vsel %vm1250, %v2518, 0.0
        %v2544 = vsel %vm1251, %v2517, 0.0
        %v2545 = vsel %vm1252, %v2516, 0.0
        %v2546 = vsel %vm1253, %v2515, 0.0
        %v2547 = vrot.slane %v2483, 1
        %v2548 = vrot.slane %v2484, 1
        %v2549 = vrot.slane %v2485, 1
        %v2550 = vrot.slane %v2486, 1
        %v2551 = vrot.slane %v2487, 1
        %v2552 = vrot.slane %v2488, 1
        %v2553 = vrot.slane %v2489, 1
        %v2554 = vrot.slane %v2490, 1
        %v2555 = vrot.slane %v2491, 1
        %v2556 = vrot.slane %v2492, 1
        %v2557 = vrot.slane %v2493, 1
        %v2558 = vrot.slane %v2494, 1
        %v2559 = vrot.slane %v2495, 1
        %v2560 = vrot.slane %v2496, 1
        %v2561 = vrot.slane %v2497, 1
        %v2562 = vrot.slane %v2498, 1
        %v2563 = vsel %vm1286, %v2561, %v2562
        %v2564 = vsel %vm1286, %v2560, %v2561
        %v2565 = vsel %vm1286, %v2559, %v2560
        %v2566 = vsel %vm1286, %v2558, %v2559
        %v2567 = vsel %vm1286, %v2557, %v2558
        %v2568 = vsel %vm1286, %v2556, %v2557
        %v2569 = vsel %vm1286, %v2555, %v2556
        %v2570 = vsel %vm1286, %v2554, %v2555
        %v2571 = vsel %vm1286, %v2553, %v2554
        %v2572 = vsel %vm1286, %v2552, %v2553
        %v2573 = vsel %vm1286, %v2551, %v2552
        %v2574 = vsel %vm1286, %v2550, %v2551
        %v2575 = vsel %vm1286, %v2549, %v2550
        %v2576 = vsel %vm1286, %v2548, %v2549
        %v2577 = vsel %vm1286, %v2547, %v2548
        %v2578 = vsel %vm1286, %v2562, %v2547
        %v2579 = vsel %vm1319, %v2577, 0.0
        %v2580 = vsel %vm1320, %v2576, 0.0
        %v2581 = vsel %vm1321, %v2575, 0.0
        %v2582 = vsel %vm1322, %v2574, 0.0
        %v2583 = vsel %vm1323, %v2573, 0.0
        %v2584 = vsel %vm1324, %v2572, 0.0
        %v2585 = vsel %vm1325, %v2571, 0.0
        %v2586 = vsel %vm1326, %v2570, 0.0
        %v2587 = vsel %vm1327, %v2569, 0.0
        %v2588 = vsel %vm1328, %v2568, 0.0
        %v2589 = vsel %vm1329, %v2567, 0.0
        %v2590 = vsel %vm1330, %v2566, 0.0
        %v2591 = vsel %vm1331, %v2565, 0.0
        %v2592 = vsel %vm1332, %v2564, 0.0
        %v2593 = vsel %vm1333, %v2563, 0.0
        %v2594 = vsel %vm1334, %v2578, 0.0
        %v2595 = vmul.f32 %v2531, %v1574
        %v2596 = vmul.f32 %v2532, %v1574
        %v2597 = vmul.f32 %v2533, %v1574
        %v2598 = vmul.f32 %v2534, %v1574
        %v2599 = vmul.f32 %v2535, %v1574
        %v2600 = vmul.f32 %v2536, %v1574
        %v2601 = vmul.f32 %v2537, %v1574
        %v2602 = vmul.f32 %v2538, %v1574
        %v2603 = vmul.f32 %v2539, %v1574
        %v2604 = vmul.f32 %v2540, %v1574
        %v2605 = vmul.f32 %v2541, %v1574
        %v2606 = vmul.f32 %v2542, %v1574
        %v2607 = vmul.f32 %v2543, %v1574
        %v2608 = vmul.f32 %v2544, %v1574
        %v2609 = vmul.f32 %v2545, %v1574
        %v2610 = vmul.f32 %v2546, %v1574
        %v2611 = vadd.f32 %v2466, %v2595
        %v2612 = vadd.f32 %v2467, %v2596
        %v2613 = vadd.f32 %v2468, %v2597
        %v2614 = vadd.f32 %v2469, %v2598
        %v2615 = vadd.f32 %v2470, %v2599
        %v2616 = vadd.f32 %v2471, %v2600
        %v2617 = vadd.f32 %v2472, %v2601
        %v2618 = vadd.f32 %v2473, %v2602
        %v2619 = vadd.f32 %v2474, %v2603
        %v2620 = vadd.f32 %v2475, %v2604
        %v2621 = vadd.f32 %v2476, %v2605
        %v2622 = vadd.f32 %v2477, %v2606
        %v2623 = vadd.f32 %v2478, %v2607
        %v2624 = vadd.f32 %v2479, %v2608
        %v2625 = vadd.f32 %v2480, %v2609
        %v2626 = vadd.f32 %v2481, %v2610
        %v2627 = vmul.f32 %v2483, %v1610
        %v2628 = vmul.f32 %v2484, %v1610
        %v2629 = vmul.f32 %v2485, %v1610
        %v2630 = vmul.f32 %v2486, %v1610
        %v2631 = vmul.f32 %v2487, %v1610
        %v2632 = vmul.f32 %v2488, %v1610
        %v2633 = vmul.f32 %v2489, %v1610
        %v2634 = vmul.f32 %v2490, %v1610
        %v2635 = vmul.f32 %v2491, %v1610
        %v2636 = vmul.f32 %v2492, %v1610
        %v2637 = vmul.f32 %v2493, %v1610
        %v2638 = vmul.f32 %v2494, %v1610
        %v2639 = vmul.f32 %v2495, %v1610
        %v2640 = vmul.f32 %v2496, %v1610
        %v2641 = vmul.f32 %v2497, %v1610
        %v2642 = vmul.f32 %v2498, %v1610
        %v2643 = vadd.f32 %v2611, %v2627
        %v2644 = vadd.f32 %v2612, %v2628
        %v2645 = vadd.f32 %v2613, %v2629
        %v2646 = vadd.f32 %v2614, %v2630
        %v2647 = vadd.f32 %v2615, %v2631
        %v2648 = vadd.f32 %v2616, %v2632
        %v2649 = vadd.f32 %v2617, %v2633
        %v2650 = vadd.f32 %v2618, %v2634
        %v2651 = vadd.f32 %v2619, %v2635
        %v2652 = vadd.f32 %v2620, %v2636
        %v2653 = vadd.f32 %v2621, %v2637
        %v2654 = vadd.f32 %v2622, %v2638
        %v2655 = vadd.f32 %v2623, %v2639
        %v2656 = vadd.f32 %v2624, %v2640
        %v2657 = vadd.f32 %v2625, %v2641
        %v2658 = vadd.f32 %v2626, %v2642
        %v2659 = vmul.f32 %v2579, %v1646
        %v2660 = vmul.f32 %v2580, %v1646
        %v2661 = vmul.f32 %v2581, %v1646
        %v2662 = vmul.f32 %v2582, %v1646
        %v2663 = vmul.f32 %v2583, %v1646
        %v2664 = vmul.f32 %v2584, %v1646
        %v2665 = vmul.f32 %v2585, %v1646
        %v2666 = vmul.f32 %v2586, %v1646
        %v2667 = vmul.f32 %v2587, %v1646
        %v2668 = vmul.f32 %v2588, %v1646
        %v2669 = vmul.f32 %v2589, %v1646
        %v2670 = vmul.f32 %v2590, %v1646
        %v2671 = vmul.f32 %v2591, %v1646
        %v2672 = vmul.f32 %v2592, %v1646
        %v2673 = vmul.f32 %v2593, %v1646
        %v2674 = vmul.f32 %v2594, %v1646
        %v2675 = vadd.f32 %v2643, %v2659
        %v2676 = vadd.f32 %v2644, %v2660
        %v2677 = vadd.f32 %v2645, %v2661
        %v2678 = vadd.f32 %v2646, %v2662
        %v2679 = vadd.f32 %v2647, %v2663
        %v2680 = vadd.f32 %v2648, %v2664
        %v2681 = vadd.f32 %v2649, %v2665
        %v2682 = vadd.f32 %v2650, %v2666
        %v2683 = vadd.f32 %v2651, %v2667
        %v2684 = vadd.f32 %v2652, %v2668
        %v2685 = vadd.f32 %v2653, %v2669
        %v2686 = vadd.f32 %v2654, %v2670
        %v2687 = vadd.f32 %v2655, %v2671
        %v2688 = vadd.f32 %v2656, %v2672
        %v2689 = vadd.f32 %v2657, %v2673
        %v2690 = vadd.f32 %v2658, %v2674
        %s2691 = scalar_lea.vmem [#allocation2], 160
        %v2692 = vld [vmem:[%s2691] sm:$0xff]
        %v2693 = vld [vmem:[%s2691 + $0x8] sm:$0xff]
        %v2694 = vld [vmem:[%s2691 + $0x10] sm:$0xff]
        %v2695 = vld [vmem:[%s2691 + $0x18] sm:$0xff]
        %v2696 = vld [vmem:[%s2691 + $0x20] sm:$0xff]
        %v2697 = vld [vmem:[%s2691 + $0x28] sm:$0xff]
        %v2698 = vld [vmem:[%s2691 + $0x30] sm:$0xff]
        %v2699 = vld [vmem:[%s2691 + $0x38] sm:$0xff]
        %v2700 = vld [vmem:[%s2691 + $0x40] sm:$0xff]
        %v2701 = vld [vmem:[%s2691 + $0x48] sm:$0xff]
        %v2702 = vld [vmem:[%s2691 + $0x50] sm:$0xff]
        %v2703 = vld [vmem:[%s2691 + $0x58] sm:$0xff]
        %v2704 = vld [vmem:[%s2691 + $0x60] sm:$0xff]
        %v2705 = vld [vmem:[%s2691 + $0x68] sm:$0xff]
        %v2706 = vld [vmem:[%s2691 + $0x70] sm:$0xff]
        %v2707 = vld [vmem:[%s2691 + $0x78] sm:$0xff]
        %v2708 = vrot.slane %v2692, 7
        %v2709 = vrot.slane %v2693, 7
        %v2710 = vrot.slane %v2694, 7
        %v2711 = vrot.slane %v2695, 7
        %v2712 = vrot.slane %v2696, 7
        %v2713 = vrot.slane %v2697, 7
        %v2714 = vrot.slane %v2698, 7
        %v2715 = vrot.slane %v2699, 7
        %v2716 = vrot.slane %v2700, 7
        %v2717 = vrot.slane %v2701, 7
        %v2718 = vrot.slane %v2702, 7
        %v2719 = vrot.slane %v2703, 7
        %v2720 = vrot.slane %v2704, 7
        %v2721 = vrot.slane %v2705, 7
        %v2722 = vrot.slane %v2706, 7
        %v2723 = vrot.slane %v2707, 7
        %v2724 = vsel %vm1205, %v2722, %v2723
        %v2725 = vsel %vm1205, %v2721, %v2722
        %v2726 = vsel %vm1205, %v2720, %v2721
        %v2727 = vsel %vm1205, %v2719, %v2720
        %v2728 = vsel %vm1205, %v2718, %v2719
        %v2729 = vsel %vm1205, %v2717, %v2718
        %v2730 = vsel %vm1205, %v2716, %v2717
        %v2731 = vsel %vm1205, %v2715, %v2716
        %v2732 = vsel %vm1205, %v2714, %v2715
        %v2733 = vsel %vm1205, %v2713, %v2714
        %v2734 = vsel %vm1205, %v2712, %v2713
        %v2735 = vsel %vm1205, %v2711, %v2712
        %v2736 = vsel %vm1205, %v2710, %v2711
        %v2737 = vsel %vm1205, %v2709, %v2710
        %v2738 = vsel %vm1205, %v2708, %v2709
        %v2739 = vsel %vm1205, %v2723, %v2708
        %v2740 = vsel %vm1238, %v2739, 0.0
        %v2741 = vsel %vm1239, %v2738, 0.0
        %v2742 = vsel %vm1240, %v2737, 0.0
        %v2743 = vsel %vm1241, %v2736, 0.0
        %v2744 = vsel %vm1242, %v2735, 0.0
        %v2745 = vsel %vm1243, %v2734, 0.0
        %v2746 = vsel %vm1244, %v2733, 0.0
        %v2747 = vsel %vm1245, %v2732, 0.0
        %v2748 = vsel %vm1246, %v2731, 0.0
        %v2749 = vsel %vm1247, %v2730, 0.0
        %v2750 = vsel %vm1248, %v2729, 0.0
        %v2751 = vsel %vm1249, %v2728, 0.0
        %v2752 = vsel %vm1250, %v2727, 0.0
        %v2753 = vsel %vm1251, %v2726, 0.0
        %v2754 = vsel %vm1252, %v2725, 0.0
        %v2755 = vsel %vm1253, %v2724, 0.0
        %v2756 = vrot.slane %v2692, 1
        %v2757 = vrot.slane %v2693, 1
        %v2758 = vrot.slane %v2694, 1
        %v2759 = vrot.slane %v2695, 1
        %v2760 = vrot.slane %v2696, 1
        %v2761 = vrot.slane %v2697, 1
        %v2762 = vrot.slane %v2698, 1
        %v2763 = vrot.slane %v2699, 1
        %v2764 = vrot.slane %v2700, 1
        %v2765 = vrot.slane %v2701, 1
        %v2766 = vrot.slane %v2702, 1
        %v2767 = vrot.slane %v2703, 1
        %v2768 = vrot.slane %v2704, 1
        %v2769 = vrot.slane %v2705, 1
        %v2770 = vrot.slane %v2706, 1
        %v2771 = vrot.slane %v2707, 1
        %v2772 = vsel %vm1286, %v2770, %v2771
        %v2773 = vsel %vm1286, %v2769, %v2770
        %v2774 = vsel %vm1286, %v2768, %v2769
        %v2775 = vsel %vm1286, %v2767, %v2768
        %v2776 = vsel %vm1286, %v2766, %v2767
        %v2777 = vsel %vm1286, %v2765, %v2766
        %v2778 = vsel %vm1286, %v2764, %v2765
        %v2779 = vsel %vm1286, %v2763, %v2764
        %v2780 = vsel %vm1286, %v2762, %v2763
        %v2781 = vsel %vm1286, %v2761, %v2762
        %v2782 = vsel %vm1286, %v2760, %v2761
        %v2783 = vsel %vm1286, %v2759, %v2760
        %v2784 = vsel %vm1286, %v2758, %v2759
        %v2785 = vsel %vm1286, %v2757, %v2758
        %v2786 = vsel %vm1286, %v2756, %v2757
        %v2787 = vsel %vm1286, %v2771, %v2756
        %v2788 = vsel %vm1319, %v2786, 0.0
        %v2789 = vsel %vm1320, %v2785, 0.0
        %v2790 = vsel %vm1321, %v2784, 0.0
        %v2791 = vsel %vm1322, %v2783, 0.0
        %v2792 = vsel %vm1323, %v2782, 0.0
        %v2793 = vsel %vm1324, %v2781, 0.0
        %v2794 = vsel %vm1325, %v2780, 0.0
        %v2795 = vsel %vm1326, %v2779, 0.0
        %v2796 = vsel %vm1327, %v2778, 0.0
        %v2797 = vsel %vm1328, %v2777, 0.0
        %v2798 = vsel %vm1329, %v2776, 0.0
        %v2799 = vsel %vm1330, %v2775, 0.0
        %v2800 = vsel %vm1331, %v2774, 0.0
        %v2801 = vsel %vm1332, %v2773, 0.0
        %v2802 = vsel %vm1333, %v2772, 0.0
        %v2803 = vsel %vm1334, %v2787, 0.0
        %v2804 = vmul.f32 %v2740, %v1795
        %v2805 = vmul.f32 %v2741, %v1795
        %v2806 = vmul.f32 %v2742, %v1795
        %v2807 = vmul.f32 %v2743, %v1795
        %v2808 = vmul.f32 %v2744, %v1795
        %v2809 = vmul.f32 %v2745, %v1795
        %v2810 = vmul.f32 %v2746, %v1795
        %v2811 = vmul.f32 %v2747, %v1795
        %v2812 = vmul.f32 %v2748, %v1795
        %v2813 = vmul.f32 %v2749, %v1795
        %v2814 = vmul.f32 %v2750, %v1795
        %v2815 = vmul.f32 %v2751, %v1795
        %v2816 = vmul.f32 %v2752, %v1795
        %v2817 = vmul.f32 %v2753, %v1795
        %v2818 = vmul.f32 %v2754, %v1795
        %v2819 = vmul.f32 %v2755, %v1795
        %v2820 = vadd.f32 %v2675, %v2804
        %v2821 = vadd.f32 %v2676, %v2805
        %v2822 = vadd.f32 %v2677, %v2806
        %v2823 = vadd.f32 %v2678, %v2807
        %v2824 = vadd.f32 %v2679, %v2808
        %v2825 = vadd.f32 %v2680, %v2809
        %v2826 = vadd.f32 %v2681, %v2810
        %v2827 = vadd.f32 %v2682, %v2811
        %v2828 = vadd.f32 %v2683, %v2812
        %v2829 = vadd.f32 %v2684, %v2813
        %v2830 = vadd.f32 %v2685, %v2814
        %v2831 = vadd.f32 %v2686, %v2815
        %v2832 = vadd.f32 %v2687, %v2816
        %v2833 = vadd.f32 %v2688, %v2817
        %v2834 = vadd.f32 %v2689, %v2818
        %v2835 = vadd.f32 %v2690, %v2819
        %v2836 = vmul.f32 %v2692, %v1831
        %v2837 = vmul.f32 %v2693, %v1831
        %v2838 = vmul.f32 %v2694, %v1831
        %v2839 = vmul.f32 %v2695, %v1831
        %v2840 = vmul.f32 %v2696, %v1831
        %v2841 = vmul.f32 %v2697, %v1831
        %v2842 = vmul.f32 %v2698, %v1831
        %v2843 = vmul.f32 %v2699, %v1831
        %v2844 = vmul.f32 %v2700, %v1831
        %v2845 = vmul.f32 %v2701, %v1831
        %v2846 = vmul.f32 %v2702, %v1831
        %v2847 = vmul.f32 %v2703, %v1831
        %v2848 = vmul.f32 %v2704, %v1831
        %v2849 = vmul.f32 %v2705, %v1831
        %v2850 = vmul.f32 %v2706, %v1831
        %v2851 = vmul.f32 %v2707, %v1831
        %v2852 = vadd.f32 %v2820, %v2836
        %v2853 = vadd.f32 %v2821, %v2837
        %v2854 = vadd.f32 %v2822, %v2838
        %v2855 = vadd.f32 %v2823, %v2839
        %v2856 = vadd.f32 %v2824, %v2840
        %v2857 = vadd.f32 %v2825, %v2841
        %v2858 = vadd.f32 %v2826, %v2842
        %v2859 = vadd.f32 %v2827, %v2843
        %v2860 = vadd.f32 %v2828, %v2844
        %v2861 = vadd.f32 %v2829, %v2845
        %v2862 = vadd.f32 %v2830, %v2846
        %v2863 = vadd.f32 %v2831, %v2847
        %v2864 = vadd.f32 %v2832, %v2848
        %v2865 = vadd.f32 %v2833, %v2849
        %v2866 = vadd.f32 %v2834, %v2850
        %v2867 = vadd.f32 %v2835, %v2851
        %v2868 = vmul.f32 %v2788, %v1867
        %v2869 = vmul.f32 %v2789, %v1867
        %v2870 = vmul.f32 %v2790, %v1867
        %v2871 = vmul.f32 %v2791, %v1867
        %v2872 = vmul.f32 %v2792, %v1867
        %v2873 = vmul.f32 %v2793, %v1867
        %v2874 = vmul.f32 %v2794, %v1867
        %v2875 = vmul.f32 %v2795, %v1867
        %v2876 = vmul.f32 %v2796, %v1867
        %v2877 = vmul.f32 %v2797, %v1867
        %v2878 = vmul.f32 %v2798, %v1867
        %v2879 = vmul.f32 %v2799, %v1867
        %v2880 = vmul.f32 %v2800, %v1867
        %v2881 = vmul.f32 %v2801, %v1867
        %v2882 = vmul.f32 %v2802, %v1867
        %v2883 = vmul.f32 %v2803, %v1867
        %v2884 = vadd.f32 %v2852, %v2868
        %v2885 = vadd.f32 %v2853, %v2869
        %v2886 = vadd.f32 %v2854, %v2870
        %v2887 = vadd.f32 %v2855, %v2871
        %v2888 = vadd.f32 %v2856, %v2872
        %v2889 = vadd.f32 %v2857, %v2873
        %v2890 = vadd.f32 %v2858, %v2874
        %v2891 = vadd.f32 %v2859, %v2875
        %v2892 = vadd.f32 %v2860, %v2876
        %v2893 = vadd.f32 %v2861, %v2877
        %v2894 = vadd.f32 %v2862, %v2878
        %v2895 = vadd.f32 %v2863, %v2879
        %v2896 = vadd.f32 %v2864, %v2880
        %v2897 = vadd.f32 %v2865, %v2881
        %v2898 = vadd.f32 %v2866, %v2882
        %v2899 = vadd.f32 %v2867, %v2883
        %v2900 = vadd.f32 %v2884, %v1904
        %v2901 = vadd.f32 %v2885, %v1904
        %v2902 = vadd.f32 %v2886, %v1904
        %v2903 = vadd.f32 %v2887, %v1904
        %v2904 = vadd.f32 %v2888, %v1904
        %v2905 = vadd.f32 %v2889, %v1904
        %v2906 = vadd.f32 %v2890, %v1904
        %v2907 = vadd.f32 %v2891, %v1904
        %v2908 = vadd.f32 %v2892, %v1904
        %v2909 = vadd.f32 %v2893, %v1904
        %v2910 = vadd.f32 %v2894, %v1904
        %v2911 = vadd.f32 %v2895, %v1904
        %v2912 = vadd.f32 %v2896, %v1904
        %v2913 = vadd.f32 %v2897, %v1904
        %v2914 = vadd.f32 %v2898, %v1904
        %v2915 = vadd.f32 %v2899, %v1904
        %v2916 = vmul.f32 %v2900, 0.5
        %v2917 = vmul.f32 %v2901, 0.5
        %v2918 = vmul.f32 %v2902, 0.5
        %v2919 = vmul.f32 %v2903, 0.5
        %v2920 = vmul.f32 %v2904, 0.5
        %v2921 = vmul.f32 %v2905, 0.5
        %v2922 = vmul.f32 %v2906, 0.5
        %v2923 = vmul.f32 %v2907, 0.5
        %v2924 = vmul.f32 %v2908, 0.5
        %v2925 = vmul.f32 %v2909, 0.5
        %v2926 = vmul.f32 %v2910, 0.5
        %v2927 = vmul.f32 %v2911, 0.5
        %v2928 = vmul.f32 %v2912, 0.5
        %v2929 = vmul.f32 %v2913, 0.5
        %v2930 = vmul.f32 %v2914, 0.5
        %v2931 = vmul.f32 %v2915, 0.5
        %v2932 = vmul.f32 %v2900, 0.044715
        %v2933 = vmul.f32 %v2901, 0.044715
        %v2934 = vmul.f32 %v2902, 0.044715
        %v2935 = vmul.f32 %v2903, 0.044715
        %v2936 = vmul.f32 %v2904, 0.044715
        %v2937 = vmul.f32 %v2905, 0.044715
        %v2938 = vmul.f32 %v2906, 0.044715
        %v2939 = vmul.f32 %v2907, 0.044715
        %v2940 = vmul.f32 %v2908, 0.044715
        %v2941 = vmul.f32 %v2909, 0.044715
        %v2942 = vmul.f32 %v2910, 0.044715
        %v2943 = vmul.f32 %v2911, 0.044715
        %v2944 = vmul.f32 %v2912, 0.044715
        %v2945 = vmul.f32 %v2913, 0.044715
        %v2946 = vmul.f32 %v2914, 0.044715
        %v2947 = vmul.f32 %v2915, 0.044715
        %v2948 = vmul.f32 %v2932, %v2900
        %v2949 = vmul.f32 %v2933, %v2901
        %v2950 = vmul.f32 %v2934, %v2902
        %v2951 = vmul.f32 %v2935, %v2903
        %v2952 = vmul.f32 %v2936, %v2904
        %v2953 = vmul.f32 %v2937, %v2905
        %v2954 = vmul.f32 %v2938, %v2906
        %v2955 = vmul.f32 %v2939, %v2907
        %v2956 = vmul.f32 %v2940, %v2908
        %v2957 = vmul.f32 %v2941, %v2909
        %v2958 = vmul.f32 %v2942, %v2910
        %v2959 = vmul.f32 %v2943, %v2911
        %v2960 = vmul.f32 %v2944, %v2912
        %v2961 = vmul.f32 %v2945, %v2913
        %v2962 = vmul.f32 %v2946, %v2914
        %v2963 = vmul.f32 %v2947, %v2915
        %v2964 = vmul.f32 %v2948, %v2900
        %v2965 = vmul.f32 %v2949, %v2901
        %v2966 = vmul.f32 %v2950, %v2902
        %v2967 = vmul.f32 %v2951, %v2903
        %v2968 = vmul.f32 %v2952, %v2904
        %v2969 = vmul.f32 %v2953, %v2905
        %v2970 = vmul.f32 %v2954, %v2906
        %v2971 = vmul.f32 %v2955, %v2907
        %v2972 = vmul.f32 %v2956, %v2908
        %v2973 = vmul.f32 %v2957, %v2909
        %v2974 = vmul.f32 %v2958, %v2910
        %v2975 = vmul.f32 %v2959, %v2911
        %v2976 = vmul.f32 %v2960, %v2912
        %v2977 = vmul.f32 %v2961, %v2913
        %v2978 = vmul.f32 %v2962, %v2914
        %v2979 = vmul.f32 %v2963, %v2915
        %v2980 = vadd.f32 %v2900, %v2964
        %v2981 = vadd.f32 %v2901, %v2965
        %v2982 = vadd.f32 %v2902, %v2966
        %v2983 = vadd.f32 %v2903, %v2967
        %v2984 = vadd.f32 %v2904, %v2968
        %v2985 = vadd.f32 %v2905, %v2969
        %v2986 = vadd.f32 %v2906, %v2970
        %v2987 = vadd.f32 %v2907, %v2971
        %v2988 = vadd.f32 %v2908, %v2972
        %v2989 = vadd.f32 %v2909, %v2973
        %v2990 = vadd.f32 %v2910, %v2974
        %v2991 = vadd.f32 %v2911, %v2975
        %v2992 = vadd.f32 %v2912, %v2976
        %v2993 = vadd.f32 %v2913, %v2977
        %v2994 = vadd.f32 %v2914, %v2978
        %v2995 = vadd.f32 %v2915, %v2979
        %v2996 = vmul.f32 %v2980, 0.7978846
        %v2997 = vmul.f32 %v2981, 0.7978846
        %v2998 = vmul.f32 %v2982, 0.7978846
        %v2999 = vmul.f32 %v2983, 0.7978846
        %v3000 = vmul.f32 %v2984, 0.7978846
        %v3001 = vmul.f32 %v2985, 0.7978846
        %v3002 = vmul.f32 %v2986, 0.7978846
        %v3003 = vmul.f32 %v2987, 0.7978846
        %v3004 = vmul.f32 %v2988, 0.7978846
        %v3005 = vmul.f32 %v2989, 0.7978846
        %v3006 = vmul.f32 %v2990, 0.7978846
        %v3007 = vmul.f32 %v2991, 0.7978846
        %v3008 = vmul.f32 %v2992, 0.7978846
        %v3009 = vmul.f32 %v2993, 0.7978846
        %v3010 = vmul.f32 %v2994, 0.7978846
        %v3011 = vmul.f32 %v2995, 0.7978846
        %v3012 = vtanh.pop %v2996
        %v3013 = vtanh.pop %v2997
        %v3014 = vtanh.pop %v2998
        %v3015 = vtanh.pop %v2999
        %v3016 = vtanh.pop %v3000
        %v3017 = vtanh.pop %v3001
        %v3018 = vtanh.pop %v3002
        %v3019 = vtanh.pop %v3003
        %v3020 = vtanh.pop %v3004
        %v3021 = vtanh.pop %v3005
        %v3022 = vtanh.pop %v3006
        %v3023 = vtanh.pop %v3007
        %v3024 = vtanh.pop %v3008
        %v3025 = vtanh.pop %v3009
        %v3026 = vtanh.pop %v3010
        %v3027 = vtanh.pop %v3011
        %v3028 = vadd.f32 %v3012, 1.0
        %v3029 = vadd.f32 %v3013, 1.0
        %v3030 = vadd.f32 %v3014, 1.0
        %v3031 = vadd.f32 %v3015, 1.0
        %v3032 = vadd.f32 %v3016, 1.0
        %v3033 = vadd.f32 %v3017, 1.0
        %v3034 = vadd.f32 %v3018, 1.0
        %v3035 = vadd.f32 %v3019, 1.0
        %v3036 = vadd.f32 %v3020, 1.0
        %v3037 = vadd.f32 %v3021, 1.0
        %v3038 = vadd.f32 %v3022, 1.0
        %v3039 = vadd.f32 %v3023, 1.0
        %v3040 = vadd.f32 %v3024, 1.0
        %v3041 = vadd.f32 %v3025, 1.0
        %v3042 = vadd.f32 %v3026, 1.0
        %v3043 = vadd.f32 %v3027, 1.0
        %v3044 = vmul.f32 %v2916, %v3028
        %v3045 = vmul.f32 %v2917, %v3029
        %v3046 = vmul.f32 %v2918, %v3030
        %v3047 = vmul.f32 %v2919, %v3031
        %v3048 = vmul.f32 %v2920, %v3032
        %v3049 = vmul.f32 %v2921, %v3033
        %v3050 = vmul.f32 %v2922, %v3034
        %v3051 = vmul.f32 %v2923, %v3035
        %v3052 = vmul.f32 %v2924, %v3036
        %v3053 = vmul.f32 %v2925, %v3037
        %v3054 = vmul.f32 %v2926, %v3038
        %v3055 = vmul.f32 %v2927, %v3039
        %v3056 = vmul.f32 %v2928, %v3040
        %v3057 = vmul.f32 %v2929, %v3041
        %v3058 = vmul.f32 %v2930, %v3042
        %v3059 = vmul.f32 %v2931, %v3043
        %v3060 = vpack.c.bf16 %v3045, %v3044
        %v3061 = vpack.c.bf16 %v3047, %v3046
        %v3062 = vpack.c.bf16 %v3049, %v3048
        %v3063 = vpack.c.bf16 %v3051, %v3050
        %v3064 = vpack.c.bf16 %v3053, %v3052
        %v3065 = vpack.c.bf16 %v3055, %v3054
        %v3066 = vpack.c.bf16 %v3057, %v3056
        %v3067 = vpack.c.bf16 %v3059, %v3058
        %3068 = vmatprep.subr.bf16.mxu0 0
        %3069 = vmatpush1.bf16.msra.mxu0 %v2112
        %3070 = vmatprep.subr.bf16.mxu0 0
        %3071 = vmatpush1.bf16.msra.mxu0 %v2113
        %3072 = vmatprep.subr.bf16.mxu0 0
        %3073 = vmatpush1.bf16.msra.mxu0 %v2114
        %3074 = vmatprep.subr.bf16.mxu0 0
        %3075 = vmatpush1.bf16.msra.mxu0 %v2115
        %3076 = vmatprep.subr.bf16.mxu0 0
        %3077 = vmatpush1.bf16.msra.mxu0 %v2116
        %3078 = vmatprep.subr.bf16.mxu0 0
        %3079 = vmatpush1.bf16.msra.mxu0 %v2117
        %3080 = vmatprep.subr.bf16.mxu0 0
        %3081 = vmatpush1.bf16.msra.mxu0 %v2118
        %3082 = vmatprep.subr.bf16.mxu0 0
        %3083 = vmatpush1.bf16.msra.mxu0 %v2119
        %3084 = vmatprep.subr.bf16.mxu0 0
        %3085 = vmatpush1.bf16.msra.mxu0 0
        %3086 = vmatprep.subr.bf16.mxu0 0
        %3087 = vmatpush1.bf16.msra.mxu0 0
        %3088 = vmatprep.subr.bf16.mxu0 0
        %3089 = vmatpush1.bf16.msra.mxu0 0
        %3090 = vmatprep.subr.bf16.mxu0 0
        %3091 = vmatpush1.bf16.msra.mxu0 0
        %3092 = vmatprep.subr.bf16.mxu0 0
        %3093 = vmatpush1.bf16.msra.mxu0 0
        %3094 = vmatprep.subr.bf16.mxu0 0
        %3095 = vmatpush1.bf16.msra.mxu0 0
        %3096 = vmatprep.subr.bf16.mxu0 0
        %3097 = vmatpush1.bf16.msra.mxu0 0
        %3098 = vmatprep.subr.bf16.mxu0 0
        %3099 = vmatpush1.bf16.msra.mxu0 0
        %3100 = vmatprep.mubr.bf16.mxu0 0
        %3101 = vmatmul.mubr.bf16.gmra.mrb[0].mxu0 %v3060
        %v3102 = vpop.f32.mrb[0].mxu0
        %v3103 = vadd.f32 %v2078, %v3102
        %v3104 = vpop.f32.mrb[0].mxu0
        %v3105 = vpop.f32.mrb[0].mxu0
        %v3106 = vadd.f32 %v2078, %v3105
        %v3107 = vpop.f32.mrb[0].mxu0
        %3108 = vmatprep.mubr.bf16.mxu0 0
        %3109 = vmatmul.mubr.bf16.gmra.mrb[0].mxu0 %v3061
        %v3110 = vpop.f32.mrb[0].mxu0
        %v3111 = vadd.f32 %v2078, %v3110
        %v3112 = vpop.f32.mrb[0].mxu0
        %v3113 = vpop.f32.mrb[0].mxu0
        %v3114 = vadd.f32 %v2078, %v3113
        %v3115 = vpop.f32.mrb[0].mxu0
        %3116 = vmatprep.mubr.bf16.mxu0 0
        %3117 = vmatmul.mubr.bf16.gmra.mrb[0].mxu0 %v3062
        %v3118 = vpop.f32.mrb[0].mxu0
        %v3119 = vadd.f32 %v2078, %v3118
        %v3120 = vpop.f32.mrb[0].mxu0
        %v3121 = vpop.f32.mrb[0].mxu0
        %v3122 = vadd.f32 %v2078, %v3121
        %v3123 = vpop.f32.mrb[0].mxu0
        %3124 = vmatprep.mubr.bf16.mxu0 0
        %3125 = vmatmul.mubr.bf16.gmra.mrb[0].mxu0 %v3063
        %v3126 = vpop.f32.mrb[0].mxu0
        %v3127 = vadd.f32 %v2078, %v3126
        %v3128 = vpop.f32.mrb[0].mxu0
        %v3129 = vpop.f32.mrb[0].mxu0
        %v3130 = vadd.f32 %v2078, %v3129
        %v3131 = vpop.f32.mrb[0].mxu0
        %3132 = vmatprep.mubr.bf16.mxu0 0
        %3133 = vmatmul.mubr.bf16.gmra.mrb[0].mxu0 %v3064
        %v3134 = vpop.f32.mrb[0].mxu0
        %v3135 = vadd.f32 %v2078, %v3134
        %v3136 = vpop.f32.mrb[0].mxu0
        %v3137 = vpop.f32.mrb[0].mxu0
        %v3138 = vadd.f32 %v2078, %v3137
        %v3139 = vpop.f32.mrb[0].mxu0
        %3140 = vmatprep.mubr.bf16.mxu0 0
        %3141 = vmatmul.mubr.bf16.gmra.mrb[0].mxu0 %v3065
        %v3142 = vpop.f32.mrb[0].mxu0
        %v3143 = vadd.f32 %v2078, %v3142
        %v3144 = vpop.f32.mrb[0].mxu0
        %v3145 = vpop.f32.mrb[0].mxu0
        %v3146 = vadd.f32 %v2078, %v3145
        %v3147 = vpop.f32.mrb[0].mxu0
        %3148 = vmatprep.mubr.bf16.mxu0 0
        %3149 = vmatmul.mubr.bf16.gmra.mrb[0].mxu0 %v3066
        %v3150 = vpop.f32.mrb[0].mxu0
        %v3151 = vadd.f32 %v2078, %v3150
        %v3152 = vpop.f32.mrb[0].mxu0
        %v3153 = vpop.f32.mrb[0].mxu0
        %v3154 = vadd.f32 %v2078, %v3153
        %v3155 = vpop.f32.mrb[0].mxu0
        %3156 = vmatprep.mubr.bf16.mxu0 0
        %3157 = vmatmul.mubr.bf16.gmra.mrb[0].mxu0 %v3067
        %v3158 = vpop.f32.mrb[0].mxu0
        %v3159 = vadd.f32 %v2078, %v3158
        %v3160 = vpop.f32.mrb[0].mxu0
        %v3161 = vpop.f32.mrb[0].mxu0
        %v3162 = vadd.f32 %v2078, %v3161
        %v3163 = vpop.f32.mrb[0].mxu0
        %3164 = vdwg.mxu0
        %s3165 = scalar_lea.vmem %s266, 128 [#allocation3]
        %v3166 = vld [vmem:[%s3165] sm:$0xff]
        %v3167 = vld [vmem:[%s3165 + $0x8] sm:$0xff]
        %v3168 = vld [vmem:[%s3165 + $0x10] sm:$0xff]
        %v3169 = vld [vmem:[%s3165 + $0x18] sm:$0xff]
        %v3170 = vld [vmem:[%s3165 + $0x20] sm:$0xff]
        %v3171 = vld [vmem:[%s3165 + $0x28] sm:$0xff]
        %v3172 = vld [vmem:[%s3165 + $0x30] sm:$0xff]
        %v3173 = vld [vmem:[%s3165 + $0x38] sm:$0xff]
        %v3174 = vld [vmem:[%s3165 + $0x40] sm:$0xff]
        %v3175 = vld [vmem:[%s3165 + $0x48] sm:$0xff]
        %v3176 = vld [vmem:[%s3165 + $0x50] sm:$0xff]
        %v3177 = vld [vmem:[%s3165 + $0x58] sm:$0xff]
        %v3178 = vld [vmem:[%s3165 + $0x60] sm:$0xff]
        %v3179 = vld [vmem:[%s3165 + $0x68] sm:$0xff]
        %v3180 = vld [vmem:[%s3165 + $0x70] sm:$0xff]
        %v3181 = vld [vmem:[%s3165 + $0x78] sm:$0xff]
        %v3182 = vadd.f32 %v3166, %v3103
        %v3183 = vadd.f32 %v3167, %v3106
        %v3184 = vadd.f32 %v3168, %v3111
        %v3185 = vadd.f32 %v3169, %v3114
        %v3186 = vadd.f32 %v3170, %v3119
        %v3187 = vadd.f32 %v3171, %v3122
        %v3188 = vadd.f32 %v3172, %v3127
        %v3189 = vadd.f32 %v3173, %v3130
        %v3190 = vadd.f32 %v3174, %v3135
        %v3191 = vadd.f32 %v3175, %v3138
        %v3192 = vadd.f32 %v3176, %v3143
        %v3193 = vadd.f32 %v3177, %v3146
        %v3194 = vadd.f32 %v3178, %v3151
        %v3195 = vadd.f32 %v3179, %v3154
        %v3196 = vadd.f32 %v3180, %v3159
        %v3197 = vadd.f32 %v3181, %v3162
        %s3198 = scalar_lea.vmem %s296, 128 [#allocation6]
        %3199 = vst.msk [vmem:[%s3198] sm:$0xff] %vm642, %v3182
        %3200 = vst.msk [vmem:[%s3198 + $0x8] sm:$0xff] %vm642, %v3183
        %3201 = vst.msk [vmem:[%s3198 + $0x10] sm:$0xff] %vm642, %v3184
        %3202 = vst.msk [vmem:[%s3198 + $0x18] sm:$0xff] %vm642, %v3185
        %3203 = vst.msk [vmem:[%s3198 + $0x20] sm:$0xff] %vm642, %v3186
        %3204 = vst.msk [vmem:[%s3198 + $0x28] sm:$0xff] %vm642, %v3187
        %3205 = vst.msk [vmem:[%s3198 + $0x30] sm:$0xff] %vm642, %v3188
        %3206 = vst.msk [vmem:[%s3198 + $0x38] sm:$0xff] %vm642, %v3189
        %3207 = vst.msk [vmem:[%s3198 + $0x40] sm:$0xff] %vm642, %v3190
        %3208 = vst.msk [vmem:[%s3198 + $0x48] sm:$0xff] %vm642, %v3191
        %3209 = vst.msk [vmem:[%s3198 + $0x50] sm:$0xff] %vm642, %v3192
        %3210 = vst.msk [vmem:[%s3198 + $0x58] sm:$0xff] %vm642, %v3193
        %3211 = vst.msk [vmem:[%s3198 + $0x60] sm:$0xff] %vm642, %v3194
        %3212 = vst.msk [vmem:[%s3198 + $0x68] sm:$0xff] %vm642, %v3195
        %3213 = vst.msk [vmem:[%s3198 + $0x70] sm:$0xff] %vm642, %v3196
        %3214 = vst.msk [vmem:[%s3198 + $0x78] sm:$0xff] %vm642, %v3197
        %s3215 = sand.u32 %s184, 1
        %s3216 = scalar_lea.sflag [#allocation5], %s3215
        %s3217 = sand.u32 %s184, 1
        %s3218 = smul.addr %s3217, 256
        %s3219 = scalar_lea.vmem [#allocation6], %s3218
        // Predicated region
        $region53: #{tpu_custom_call.1} parent=47 // pred_check
          %p3220 = pneg %p194
        $region54: #{tpu_custom_call.1} parent=47 // pred_check_branch
          %3222 = sbr.rel (%p3220) target = $region56
        $region55: #{tpu_custom_call.1} parent=47 // pred_region
          %s3224 = ssub.s32 4096, 4096
          %3225 = vsyncadd %s3216, %s3224
          %s3226 = smul.addr %s24, 32
          %s3227 = smul.addr %s3226, 128
          %s3228 = scalar_lea.hbm %s7, %s3227
          %s3229 = sshll.u32 %s3219, 4
          %s3230 = int_to_ptr.vmem [resolvable:$true] %s3229
          %3235 = dma.vmem_to_hbm [thread:$0]  %s3230, 4096, %s3228, %s3216, 128, 128, 8
        $region56: #{tpu_custom_call.1} parent=47 // pred_fallthru
          _
      $region48: #{tpu_custom_call.1} parent=5 // pred_fallthru
        _
      %p3236 = scmp.le.s32.totalorder 2, %s19
      // Predicated region
      $region57: #{tpu_custom_call.1} parent=5 // pred_check
        %p3237 = pneg %p3236
      $region58: #{tpu_custom_call.1} parent=5 // pred_check_branch
        %3239 = sbr.rel (%p3237) target = $region60
      $region59: #{tpu_custom_call.1} parent=5 // pred_region
        %s3240 = ssub.s32 %s19, 2
        // Predicated region
        $region61: #{tpu_custom_call.1} parent=59 // pred_check
          %p3241 = pneg %p200
        $region62: #{tpu_custom_call.1} parent=59 // pred_check_branch
          %3243 = sbr.rel (%p3241) target = $region64
        $region63: #{tpu_custom_call.1} parent=59 // pred_region
          %s3244 = sand.u32 %s185, 1
          %s3245 = scalar_lea.sflag [#allocation5], %s3244
          %s3246 = sand.u32 %s185, 1
          %s3247 = smul.addr %s3246, 256
          %s3248 = scalar_lea.vmem [#allocation6], %s3247
          %3249 = dma.done %s3245, 4096
        $region64: #{tpu_custom_call.1} parent=59 // pred_fallthru
          _
      $region60: #{tpu_custom_call.1} parent=5 // pred_fallthru
        _
    $region6: #{tpu_custom_call.1} parent=1 // loop_footer
      %s23 = sadd.s32 1, %s19
    $region7: #{tpu_custom_call.1} parent=1 // loop_footer_branch
      %18 = sbr.rel target = $region3
    $region8: #{tpu_custom_call.1} parent=1 // loop_exit
      _
    %3250 = vsyncpa [#allocation4], 1
    %s3251 = scalar_lea.sflag [#allocation4], 1
    %3252 = vsyncpa %s3251, 1
    %3253 = vsyncpa [#allocation5], 1
    %s3254 = scalar_lea.sflag [#allocation5], 1
    %3255 = vsyncpa %s3254, 1

</llo_original>
